<compile_context>
chip_gen: v6e
topology: v6e:2x2x1
jax: 0.10.0
libtpu: 0.0.40
codegen_flags: <defaults>
</compile_context>

<pallas_src>
import jax
import jax.numpy as jnp
from jax.experimental import pallas as pl
from jax.experimental.pallas import tpu as pltpu

# ----------------------------- configuration -------------------------------
OUTPUT_LENGTH = 128          # small stand-in for 1001 (multiple of 128 lanes)
CONV_CHANNELS = 8            # small stand-in for 32  (multiple of 8 sublanes)
HIDDEN_DIMS = (32, 32)       # small stand-in for (128, 128)
BATCH = 2
GAMMA = 1.66667
EPS = 1e-8
CPAD = 8                     # 3-channel residual stream padded to 8 sublanes

L = OUTPUT_LENGTH
B = BATCH
BL = B * L                   # batch folded into the lane axis

assert L % 128 == 0 and (L & (L - 1)) == 0
assert CONV_CHANNELS % 8 == 0


def _softplus(x):
    # matches torch.nn.functional.softplus (beta=1, threshold=20)
    return jnp.where(x > 20.0, x, jnp.log1p(jnp.exp(jnp.minimum(x, 20.0))))


# ------------------------------ fused kernel --------------------------------
def _fused_kernel(x_ref, fc1_w, fc1_b,
                  c1a_w, c1a_b, c1b_w, c1b_b,
                  f20_w, f20_b, f21_w, f21_b, f22_w, f22_b,
                  c2a_w, c2a_b, c2b_w, c2b_b,
                  c3a_w, c3a_b, c3b_w, c3b_b, c3c_w, c3c_b,
                  c3d_w, c3d_b, c3e_w, c3e_b, cd_w, cd_b,
                  o_ref):
    f32 = jnp.float32
    lane = jax.lax.broadcasted_iota(jnp.int32, (1, BL), 1)
    lane_mod = lane & (L - 1)                     # lane index within a sample

    # ---- hoisted 'same'-padding boundary masks (one per distinct offset) ----
    mask_cache = {}

    def get_mask(off):
        m = mask_cache.get(off)
        if m is None:
            m = ((lane_mod + off >= 0) & (lane_mod + off < L)).astype(f32)
            mask_cache[off] = m
        return m

    def shift(x, off):
        # y[:, l] = x[:, l + off] if the tap stays inside the same sample, else 0
        if off == 0:
            return x
        rolled = pltpu.roll(x, shift=(-off) % BL, axis=1)
        return rolled * get_mask(off)

    def conv(x, w_ref, b_ref, K, dil, relu):
        # x: (Cin, BL) f32; w_ref: (Cout, K*Cin) bf16; b_ref: (Cout, 1) f32
        pad = dil * (K - 1) // 2
        taps = [shift(x, k * dil - pad).astype(jnp.bfloat16) for k in range(K)]
        xim = jnp.concatenate(taps, axis=0) if K > 1 else taps[0]   # (K*Cin, BL)
        y = jnp.dot(w_ref[...], xim, preferred_element_type=f32) + b_ref[...]
        if relu:
            y = jnp.maximum(y, 0.0)
        return y                                                     # (Cout, BL)

    def to_channels(h):
        # (B, 3L) flat -> (CPAD, B*L) channels-first, pad rows identically zero.
        rows = []
        for c in range(3):
            rows.append(jnp.concatenate(
                [h[b:b + 1, c * L:(c + 1) * L] for b in range(B)], axis=1))
        rows.append(jnp.zeros((CPAD - 3, BL), f32))
        return jnp.concatenate(rows, axis=0)

    def to_flat(xc):
        # (CPAD, B*L) channels-first -> (B, 3L) flat (pad rows dropped).
        rows = []
        for b in range(B):
            rows.append(jnp.concatenate(
                [xc[c:c + 1, b * L:(b + 1) * L] for c in range(3)], axis=1))
        return jnp.concatenate(rows, axis=0)

    # -------- fc1 + ReLU: 6 scalar-broadcast FMAs from SMEM (no MXU pass) ----
    h_rows = []
    for b in range(B):
        acc = fc1_b[...]                                   # (1, 3L)
        for j in range(6):
            acc = acc + x_ref[b, j] * fc1_w[j:j + 1, :]
        h_rows.append(jnp.maximum(acc, 0.0))
    xc = to_channels(jnp.concatenate(h_rows, axis=0))       # (CPAD, BL)

    # ---------------- x = x + conv1(x) ----------------
    t = conv(xc, c1a_w, c1a_b, 5, 1, True)
    t = conv(t, c1b_w, c1b_b, 5, 1, True)
    xc = xc + t

    # ---------------- fc2 MLP on flattened (B, 3L) ----------------
    xf = to_flat(xc)
    xf = jnp.maximum(
        jnp.dot(xf, f20_w[...], preferred_element_type=f32) + f20_b[...], 0.0)
    xf = jnp.maximum(
        jnp.dot(xf, f21_w[...], preferred_element_type=f32) + f21_b[...], 0.0)
    xf = jnp.dot(xf, f22_w[...], preferred_element_type=f32) + f22_b[...]
    xc = to_channels(xf)

    # ---------------- x = x + conv2(x) ----------------
    t = conv(xc, c2a_w, c2a_b, 3, 1, True)
    t = conv(t, c2b_w, c2b_b, 3, 1, False)
    xc = xc + t

    # ---------------- conv3 tower + residual ----------------
    t = conv(xc, c3a_w, c3a_b, 3, 2, True)
    t = conv(t, c3b_w, c3b_b, 3, 2, True)
    t = conv(t, c3c_w, c3c_b, 7, 5, True)
    t = conv(t, c3d_w, c3d_b, 7, 5, True)
    t = conv(t, c3e_w, c3e_b, 3, 2, True)
    z = xc + conv(t, cd_w, cd_b, 3, 2, False)                # (CPAD, BL)

    # ---------------- equation of state ----------------
    d = pltpu.roll(z, shift=BL - 1, axis=1) - z              # d[:, l] = z[:, l+1] - z[:, l]
    e1 = _softplus(d[0:1, :])
    e2 = d[1:2, :]
    e3 = _softplus(d[2:3, :])
    inv = 1.0 / (e1 + EPS)
    rho = e1
    pres = (GAMMA - 1.0) * (e3 - 0.5 * (e2 * e2) * inv)
    u = e2 * inv
    out3 = jnp.concatenate([rho, pres, u], axis=0)           # (3, BL)
    # one lane-dense (3, L) store per sample; column L-1 is invalid (trimmed by wrapper)
    for b in range(B):
        o_ref[b] = out3[:, b * L:(b + 1) * L]


# ------------------------------ parameters ----------------------------------
def make_params(key):
    C = CONV_CHANNELS
    keys = iter(jax.random.split(key, 40))

    def rnd(shape, scale):
        return jax.random.normal(next(keys), shape, jnp.float32) * scale

    def conv_wb(K, Cin, Cout):
        scale = 1.0 / (K * Cin) ** 0.5
        return rnd((K, Cin, Cout), scale), rnd((Cout,), 0.05)

    p = {}
    # fc1: Linear(6, 3L); bias constant 0.1 (init_weights_constant)
    p["fc1_w"] = rnd((6, 3 * L), 1.0 / 6 ** 0.5)
    p["fc1_b"] = jnp.full((3 * L,), 0.1, jnp.float32)
    # conv1: (3->C, k=5, d=1), (C->3, k=5, d=1)
    p["c1a_w"], p["c1a_b"] = conv_wb(5, 3, C)
    p["c1b_w"], p["c1b_b"] = conv_wb(5, C, 3)
    # fc2: [3L -> h0 -> h1 -> 3L], biases constant 0.1
    dims = [3 * L] + list(HIDDEN_DIMS) + [3 * L]
    for i in range(3):
        p[f"fc2_{i}_w"] = rnd((dims[i], dims[i + 1]), 1.0 / dims[i] ** 0.5)
        p[f"fc2_{i}_b"] = jnp.full((dims[i + 1],), 0.1, jnp.float32)
    # conv2: (3->C, k=3, d=1), (C->3, k=3, d=1)
    p["c2a_w"], p["c2a_b"] = conv_wb(3, 3, C)
    p["c2b_w"], p["c2b_b"] = conv_wb(3, C, 3)
    # conv3 tower
    p["c3a_w"], p["c3a_b"] = conv_wb(3, 3, C)            # d=2
    p["c3b_w"], p["c3b_b"] = conv_wb(3, C, 2 * C)        # d=2
    p["c3c_w"], p["c3c_b"] = conv_wb(7, 2 * C, 4 * C)    # d=5
    p["c3d_w"], p["c3d_b"] = conv_wb(7, 4 * C, 2 * C)    # d=5
    p["c3e_w"], p["c3e_b"] = conv_wb(3, 2 * C, C)        # d=2
    p["cd_w"], p["cd_b"] = conv_wb(3, C, 3)              # d=2, no relu
    return p


def _prep_conv(w, b, cin_pad=0, cout_pad=0):
    """(K, Cin, Cout) weight + (Cout,) bias -> kernel layout.

    Zero-pads Cin/Cout up to CPAD (keeps padded residual-stream rows exactly
    zero, including padded biases) and reshapes the weight to (Cout, K*Cin)
    bf16 matching the in-kernel im2col row ordering k*Cin + cin.
    """
    K, Cin, Cout = w.shape
    if cin_pad > Cin:
        w = jnp.pad(w, ((0, 0), (0, cin_pad - Cin), (0, 0)))
        Cin = cin_pad
    if cout_pad > Cout:
        w = jnp.pad(w, ((0, 0), (0, 0), (0, cout_pad - Cout)))
        b = jnp.pad(b, (0, cout_pad - Cout))
        Cout = cout_pad
    w2 = jnp.transpose(w, (2, 0, 1)).reshape(Cout, K * Cin).astype(jnp.bfloat16)
    return w2, b.reshape(Cout, 1).astype(jnp.float32)


def prep_weights(p):
    """One-time re-layout of the raw params into the kernel's format.
    Call once (outside the jitted forward) so there is no per-call XLA glue."""
    c1a = _prep_conv(p["c1a_w"], p["c1a_b"], cin_pad=CPAD)
    c1b = _prep_conv(p["c1b_w"], p["c1b_b"], cout_pad=CPAD)
    c2a = _prep_conv(p["c2a_w"], p["c2a_b"], cin_pad=CPAD)
    c2b = _prep_conv(p["c2b_w"], p["c2b_b"], cout_pad=CPAD)
    c3a = _prep_conv(p["c3a_w"], p["c3a_b"], cin_pad=CPAD)
    c3b = _prep_conv(p["c3b_w"], p["c3b_b"])
    c3c = _prep_conv(p["c3c_w"], p["c3c_b"])
    c3d = _prep_conv(p["c3d_w"], p["c3d_b"])
    c3e = _prep_conv(p["c3e_w"], p["c3e_b"])
    cd = _prep_conv(p["cd_w"], p["cd_b"], cout_pad=CPAD)
    weights = (
        p["fc1_w"], p["fc1_b"].reshape(1, -1),
        *c1a, *c1b,
        p["fc2_0_w"], p["fc2_0_b"].reshape(1, -1),
        p["fc2_1_w"], p["fc2_1_b"].reshape(1, -1),
        p["fc2_2_w"], p["fc2_2_b"].reshape(1, -1),
        *c2a, *c2b,
        *c3a, *c3b, *c3c, *c3d, *c3e, *cd,
    )
    return tuple(jax.block_until_ready(w) for w in weights)


# ------------------------------ forward pass ---------------------------------
@jax.jit
def forward(x, kweights):
    assert x.shape == (B, 6)
    vmem = pl.BlockSpec(memory_space=pltpu.MemorySpace.VMEM)
    out = pl.pallas_call(
        _fused_kernel,
        out_shape=jax.ShapeDtypeStruct((B, 3, L), jnp.float32),
        in_specs=[pl.BlockSpec(memory_space=pltpu.MemorySpace.SMEM)]
                 + [vmem] * len(kweights),
        out_specs=vmem,
    )(x, *kweights)
    # Drop the invalid per-sample last column (wrap-around neighbour difference)
    # to match the PyTorch module's (B, 3, output_length-1) output.
    return out[:, :, : L - 1]


# --------------------------------- main --------------------------------------
if __name__ == "__main__":
    key = jax.random.PRNGKey(0)
    pkey, xkey = jax.random.split(key)
    params = make_params(pkey)
    kweights = prep_weights(params)          # one-time weight re-layout
    x = jax.random.normal(xkey, (BATCH, 6), jnp.float32)

    out = forward(x, kweights)
    out = jax.block_until_ready(out)

    assert out.shape == (BATCH, 3, OUTPUT_LENGTH - 1), out.shape
    assert bool(jnp.all(jnp.isfinite(out)))
    print("KERNEL_OK")
</pallas_src>

<mosaic_0001>
module attributes {stable_mosaic.version = 11 : i64} {
  func.func @_fused_kernel(%arg0: memref<2x6xf32, #tpu.memory_space<smem>>, %arg1: memref<6x384xf32, #tpu.memory_space<vmem>>, %arg2: memref<1x384xf32, #tpu.memory_space<vmem>>, %arg3: memref<8x40xbf16, #tpu.memory_space<vmem>>, %arg4: memref<8x1xf32, #tpu.memory_space<vmem>>, %arg5: memref<8x40xbf16, #tpu.memory_space<vmem>>, %arg6: memref<8x1xf32, #tpu.memory_space<vmem>>, %arg7: memref<384x32xf32, #tpu.memory_space<vmem>>, %arg8: memref<1x32xf32, #tpu.memory_space<vmem>>, %arg9: memref<32x32xf32, #tpu.memory_space<vmem>>, %arg10: memref<1x32xf32, #tpu.memory_space<vmem>>, %arg11: memref<32x384xf32, #tpu.memory_space<vmem>>, %arg12: memref<1x384xf32, #tpu.memory_space<vmem>>, %arg13: memref<8x24xbf16, #tpu.memory_space<vmem>>, %arg14: memref<8x1xf32, #tpu.memory_space<vmem>>, %arg15: memref<8x24xbf16, #tpu.memory_space<vmem>>, %arg16: memref<8x1xf32, #tpu.memory_space<vmem>>, %arg17: memref<8x24xbf16, #tpu.memory_space<vmem>>, %arg18: memref<8x1xf32, #tpu.memory_space<vmem>>, %arg19: memref<16x24xbf16, #tpu.memory_space<vmem>>, %arg20: memref<16x1xf32, #tpu.memory_space<vmem>>, %arg21: memref<32x112xbf16, #tpu.memory_space<vmem>>, %arg22: memref<32x1xf32, #tpu.memory_space<vmem>>, %arg23: memref<16x224xbf16, #tpu.memory_space<vmem>>, %arg24: memref<16x1xf32, #tpu.memory_space<vmem>>, %arg25: memref<8x48xbf16, #tpu.memory_space<vmem>>, %arg26: memref<8x1xf32, #tpu.memory_space<vmem>>, %arg27: memref<8x24xbf16, #tpu.memory_space<vmem>>, %arg28: memref<8x1xf32, #tpu.memory_space<vmem>>, %arg29: memref<2x3x128xf32, #tpu.memory_space<vmem>>) attributes {dimension_semantics = [], scalar_prefetch = 0 : i64, scratch_operands = 0 : i64, tpu.core_type = #tpu.core_type<tc>} {
    %0 = tpu.iota {dimensions = array<i32: 1>} : vector<1x256xi32>
    %c127_i32 = arith.constant 127 : i32
    %1 = vector.broadcast %c127_i32 : i32 to vector<1x256xi32>
    %2 = arith.andi %0, %1 : vector<1x256xi32>
    %c0 = arith.constant 0 : index
    %c0_0 = arith.constant 0 : index
    %3 = vector.load %arg2[%c0, %c0_0] : memref<1x384xf32, #tpu.memory_space<vmem>>, vector<1x384xf32>
    %c0_1 = arith.constant 0 : index
    %c0_2 = arith.constant 0 : index
    %4 = memref.load %arg0[%c0_1, %c0_2] : memref<2x6xf32, #tpu.memory_space<smem>>
    %c0_3 = arith.constant 0 : index
    %c0_4 = arith.constant 0 : index
    %5 = vector.load %arg1[%c0_3, %c0_4] : memref<6x384xf32, #tpu.memory_space<vmem>>, vector<1x384xf32>
    %6 = vector.broadcast %4 : f32 to vector<1x384xf32>
    %7 = arith.mulf %6, %5 : vector<1x384xf32>
    %8 = arith.addf %3, %7 : vector<1x384xf32>
    %c0_5 = arith.constant 0 : index
    %c1 = arith.constant 1 : index
    %9 = memref.load %arg0[%c0_5, %c1] : memref<2x6xf32, #tpu.memory_space<smem>>
    %c1_6 = arith.constant 1 : index
    %c0_7 = arith.constant 0 : index
    %10 = vector.load %arg1[%c1_6, %c0_7] : memref<6x384xf32, #tpu.memory_space<vmem>>, vector<1x384xf32>
    %11 = vector.broadcast %9 : f32 to vector<1x384xf32>
    %12 = arith.mulf %11, %10 : vector<1x384xf32>
    %13 = arith.addf %8, %12 : vector<1x384xf32>
    %c0_8 = arith.constant 0 : index
    %c2 = arith.constant 2 : index
    %14 = memref.load %arg0[%c0_8, %c2] : memref<2x6xf32, #tpu.memory_space<smem>>
    %c2_9 = arith.constant 2 : index
    %c0_10 = arith.constant 0 : index
    %15 = vector.load %arg1[%c2_9, %c0_10] : memref<6x384xf32, #tpu.memory_space<vmem>>, vector<1x384xf32>
    %16 = vector.broadcast %14 : f32 to vector<1x384xf32>
    %17 = arith.mulf %16, %15 : vector<1x384xf32>
    %18 = arith.addf %13, %17 : vector<1x384xf32>
    %c0_11 = arith.constant 0 : index
    %c3 = arith.constant 3 : index
    %19 = memref.load %arg0[%c0_11, %c3] : memref<2x6xf32, #tpu.memory_space<smem>>
    %c3_12 = arith.constant 3 : index
    %c0_13 = arith.constant 0 : index
    %20 = vector.load %arg1[%c3_12, %c0_13] : memref<6x384xf32, #tpu.memory_space<vmem>>, vector<1x384xf32>
    %21 = vector.broadcast %19 : f32 to vector<1x384xf32>
    %22 = arith.mulf %21, %20 : vector<1x384xf32>
    %23 = arith.addf %18, %22 : vector<1x384xf32>
    %c0_14 = arith.constant 0 : index
    %c4 = arith.constant 4 : index
    %24 = memref.load %arg0[%c0_14, %c4] : memref<2x6xf32, #tpu.memory_space<smem>>
    %c4_15 = arith.constant 4 : index
    %c0_16 = arith.constant 0 : index
    %25 = vector.load %arg1[%c4_15, %c0_16] : memref<6x384xf32, #tpu.memory_space<vmem>>, vector<1x384xf32>
    %26 = vector.broadcast %24 : f32 to vector<1x384xf32>
    %27 = arith.mulf %26, %25 : vector<1x384xf32>
    %28 = arith.addf %23, %27 : vector<1x384xf32>
    %c0_17 = arith.constant 0 : index
    %c5 = arith.constant 5 : index
    %29 = memref.load %arg0[%c0_17, %c5] : memref<2x6xf32, #tpu.memory_space<smem>>
    %c5_18 = arith.constant 5 : index
    %c0_19 = arith.constant 0 : index
    %30 = vector.load %arg1[%c5_18, %c0_19] : memref<6x384xf32, #tpu.memory_space<vmem>>, vector<1x384xf32>
    %31 = vector.broadcast %29 : f32 to vector<1x384xf32>
    %32 = arith.mulf %31, %30 : vector<1x384xf32>
    %33 = arith.addf %28, %32 : vector<1x384xf32>
    %cst = arith.constant 0.000000e+00 : f32
    %34 = vector.broadcast %cst : f32 to vector<1x384xf32>
    %35 = arith.maximumf %33, %34 : vector<1x384xf32>
    %c0_20 = arith.constant 0 : index
    %c0_21 = arith.constant 0 : index
    %36 = vector.load %arg2[%c0_20, %c0_21] : memref<1x384xf32, #tpu.memory_space<vmem>>, vector<1x384xf32>
    %c1_22 = arith.constant 1 : index
    %c0_23 = arith.constant 0 : index
    %37 = memref.load %arg0[%c1_22, %c0_23] : memref<2x6xf32, #tpu.memory_space<smem>>
    %c0_24 = arith.constant 0 : index
    %c0_25 = arith.constant 0 : index
    %38 = vector.load %arg1[%c0_24, %c0_25] : memref<6x384xf32, #tpu.memory_space<vmem>>, vector<1x384xf32>
    %39 = vector.broadcast %37 : f32 to vector<1x384xf32>
    %40 = arith.mulf %39, %38 : vector<1x384xf32>
    %41 = arith.addf %36, %40 : vector<1x384xf32>
    %c1_26 = arith.constant 1 : index
    %c1_27 = arith.constant 1 : index
    %42 = memref.load %arg0[%c1_26, %c1_27] : memref<2x6xf32, #tpu.memory_space<smem>>
    %c1_28 = arith.constant 1 : index
    %c0_29 = arith.constant 0 : index
    %43 = vector.load %arg1[%c1_28, %c0_29] : memref<6x384xf32, #tpu.memory_space<vmem>>, vector<1x384xf32>
    %44 = vector.broadcast %42 : f32 to vector<1x384xf32>
    %45 = arith.mulf %44, %43 : vector<1x384xf32>
    %46 = arith.addf %41, %45 : vector<1x384xf32>
    %c1_30 = arith.constant 1 : index
    %c2_31 = arith.constant 2 : index
    %47 = memref.load %arg0[%c1_30, %c2_31] : memref<2x6xf32, #tpu.memory_space<smem>>
    %c2_32 = arith.constant 2 : index
    %c0_33 = arith.constant 0 : index
    %48 = vector.load %arg1[%c2_32, %c0_33] : memref<6x384xf32, #tpu.memory_space<vmem>>, vector<1x384xf32>
    %49 = vector.broadcast %47 : f32 to vector<1x384xf32>
    %50 = arith.mulf %49, %48 : vector<1x384xf32>
    %51 = arith.addf %46, %50 : vector<1x384xf32>
    %c1_34 = arith.constant 1 : index
    %c3_35 = arith.constant 3 : index
    %52 = memref.load %arg0[%c1_34, %c3_35] : memref<2x6xf32, #tpu.memory_space<smem>>
    %c3_36 = arith.constant 3 : index
    %c0_37 = arith.constant 0 : index
    %53 = vector.load %arg1[%c3_36, %c0_37] : memref<6x384xf32, #tpu.memory_space<vmem>>, vector<1x384xf32>
    %54 = vector.broadcast %52 : f32 to vector<1x384xf32>
    %55 = arith.mulf %54, %53 : vector<1x384xf32>
    %56 = arith.addf %51, %55 : vector<1x384xf32>
    %c1_38 = arith.constant 1 : index
    %c4_39 = arith.constant 4 : index
    %57 = memref.load %arg0[%c1_38, %c4_39] : memref<2x6xf32, #tpu.memory_space<smem>>
    %c4_40 = arith.constant 4 : index
    %c0_41 = arith.constant 0 : index
    %58 = vector.load %arg1[%c4_40, %c0_41] : memref<6x384xf32, #tpu.memory_space<vmem>>, vector<1x384xf32>
    %59 = vector.broadcast %57 : f32 to vector<1x384xf32>
    %60 = arith.mulf %59, %58 : vector<1x384xf32>
    %61 = arith.addf %56, %60 : vector<1x384xf32>
    %c1_42 = arith.constant 1 : index
    %c5_43 = arith.constant 5 : index
    %62 = memref.load %arg0[%c1_42, %c5_43] : memref<2x6xf32, #tpu.memory_space<smem>>
    %c5_44 = arith.constant 5 : index
    %c0_45 = arith.constant 0 : index
    %63 = vector.load %arg1[%c5_44, %c0_45] : memref<6x384xf32, #tpu.memory_space<vmem>>, vector<1x384xf32>
    %64 = vector.broadcast %62 : f32 to vector<1x384xf32>
    %65 = arith.mulf %64, %63 : vector<1x384xf32>
    %66 = arith.addf %61, %65 : vector<1x384xf32>
    %cst_46 = arith.constant 0.000000e+00 : f32
    %67 = vector.broadcast %cst_46 : f32 to vector<1x384xf32>
    %68 = arith.maximumf %66, %67 : vector<1x384xf32>
    %69 = tpu.concatenate %35, %68 in 0 : vector<1x384xf32>, vector<1x384xf32> -> vector<2x384xf32>
    %70 = vector.extract_strided_slice %69 {offsets = [0, 0], sizes = [1, 128], strides = [1, 1]} : vector<2x384xf32> to vector<1x128xf32>
    %71 = vector.extract_strided_slice %69 {offsets = [1, 0], sizes = [1, 128], strides = [1, 1]} : vector<2x384xf32> to vector<1x128xf32>
    %72 = tpu.concatenate %70, %71 in 1 : vector<1x128xf32>, vector<1x128xf32> -> vector<1x256xf32>
    %73 = vector.extract_strided_slice %69 {offsets = [0, 128], sizes = [1, 128], strides = [1, 1]} : vector<2x384xf32> to vector<1x128xf32>
    %74 = vector.extract_strided_slice %69 {offsets = [1, 128], sizes = [1, 128], strides = [1, 1]} : vector<2x384xf32> to vector<1x128xf32>
    %75 = tpu.concatenate %73, %74 in 1 : vector<1x128xf32>, vector<1x128xf32> -> vector<1x256xf32>
    %76 = vector.extract_strided_slice %69 {offsets = [0, 256], sizes = [1, 128], strides = [1, 1]} : vector<2x384xf32> to vector<1x128xf32>
    %77 = vector.extract_strided_slice %69 {offsets = [1, 256], sizes = [1, 128], strides = [1, 1]} : vector<2x384xf32> to vector<1x128xf32>
    %78 = tpu.concatenate %76, %77 in 1 : vector<1x128xf32>, vector<1x128xf32> -> vector<1x256xf32>
    %cst_47 = arith.constant 0.000000e+00 : f32
    %79 = vector.broadcast %cst_47 : f32 to vector<5x256xf32>
    %80 = tpu.concatenate %72, %75, %78, %79 in 0 : vector<1x256xf32>, vector<1x256xf32>, vector<1x256xf32>, vector<5x256xf32> -> vector<8x256xf32>
    %c2_i32 = arith.constant 2 : i32
    %81 = tpu.dynamic_rotate %80 by %c2_i32 dim 1 : vector<8x256xf32>, i32 -> vector<8x256xf32>
    %c-2_i32 = arith.constant -2 : i32
    %82 = vector.broadcast %c-2_i32 : i32 to vector<1x256xi32>
    %83 = arith.addi %2, %82 : vector<1x256xi32>
    %c0_i32 = arith.constant 0 : i32
    %84 = vector.broadcast %c0_i32 : i32 to vector<1x256xi32>
    %85 = arith.cmpi sge, %83, %84 : vector<1x256xi32>
    %c-2_i32_48 = arith.constant -2 : i32
    %86 = vector.broadcast %c-2_i32_48 : i32 to vector<1x256xi32>
    %87 = arith.addi %2, %86 : vector<1x256xi32>
    %c128_i32 = arith.constant 128 : i32
    %88 = vector.broadcast %c128_i32 : i32 to vector<1x256xi32>
    %89 = arith.cmpi slt, %87, %88 : vector<1x256xi32>
    %90 = arith.andi %85, %89 : vector<1x256xi1>
    %91 = arith.extui %90 : vector<1x256xi1> to vector<1x256xi32>
    %92 = arith.sitofp %91 : vector<1x256xi32> to vector<1x256xf32>
    %93 = vector.broadcast %92 : vector<1x256xf32> to vector<8x256xf32>
    %94 = arith.mulf %81, %93 : vector<8x256xf32>
    %95 = arith.truncf %94 : vector<8x256xf32> to vector<8x256xbf16>
    %c1_i32 = arith.constant 1 : i32
    %96 = tpu.dynamic_rotate %80 by %c1_i32 dim 1 : vector<8x256xf32>, i32 -> vector<8x256xf32>
    %c-1_i32 = arith.constant -1 : i32
    %97 = vector.broadcast %c-1_i32 : i32 to vector<1x256xi32>
    %98 = arith.addi %2, %97 : vector<1x256xi32>
    %c0_i32_49 = arith.constant 0 : i32
    %99 = vector.broadcast %c0_i32_49 : i32 to vector<1x256xi32>
    %100 = arith.cmpi sge, %98, %99 : vector<1x256xi32>
    %c-1_i32_50 = arith.constant -1 : i32
    %101 = vector.broadcast %c-1_i32_50 : i32 to vector<1x256xi32>
    %102 = arith.addi %2, %101 : vector<1x256xi32>
    %c128_i32_51 = arith.constant 128 : i32
    %103 = vector.broadcast %c128_i32_51 : i32 to vector<1x256xi32>
    %104 = arith.cmpi slt, %102, %103 : vector<1x256xi32>
    %105 = arith.andi %100, %104 : vector<1x256xi1>
    %106 = arith.extui %105 : vector<1x256xi1> to vector<1x256xi32>
    %107 = arith.sitofp %106 : vector<1x256xi32> to vector<1x256xf32>
    %108 = vector.broadcast %107 : vector<1x256xf32> to vector<8x256xf32>
    %109 = arith.mulf %96, %108 : vector<8x256xf32>
    %110 = arith.truncf %109 : vector<8x256xf32> to vector<8x256xbf16>
    %111 = arith.truncf %80 : vector<8x256xf32> to vector<8x256xbf16>
    %c255_i32 = arith.constant 255 : i32
    %112 = tpu.dynamic_rotate %80 by %c255_i32 dim 1 : vector<8x256xf32>, i32 -> vector<8x256xf32>
    %c1_i32_52 = arith.constant 1 : i32
    %113 = vector.broadcast %c1_i32_52 : i32 to vector<1x256xi32>
    %114 = arith.addi %2, %113 : vector<1x256xi32>
    %c0_i32_53 = arith.constant 0 : i32
    %115 = vector.broadcast %c0_i32_53 : i32 to vector<1x256xi32>
    %116 = arith.cmpi sge, %114, %115 : vector<1x256xi32>
    %c1_i32_54 = arith.constant 1 : i32
    %117 = vector.broadcast %c1_i32_54 : i32 to vector<1x256xi32>
    %118 = arith.addi %2, %117 : vector<1x256xi32>
    %c128_i32_55 = arith.constant 128 : i32
    %119 = vector.broadcast %c128_i32_55 : i32 to vector<1x256xi32>
    %120 = arith.cmpi slt, %118, %119 : vector<1x256xi32>
    %121 = arith.andi %116, %120 : vector<1x256xi1>
    %122 = arith.extui %121 : vector<1x256xi1> to vector<1x256xi32>
    %123 = arith.sitofp %122 : vector<1x256xi32> to vector<1x256xf32>
    %124 = vector.broadcast %123 : vector<1x256xf32> to vector<8x256xf32>
    %125 = arith.mulf %112, %124 : vector<8x256xf32>
    %126 = arith.truncf %125 : vector<8x256xf32> to vector<8x256xbf16>
    %c254_i32 = arith.constant 254 : i32
    %127 = tpu.dynamic_rotate %80 by %c254_i32 dim 1 : vector<8x256xf32>, i32 -> vector<8x256xf32>
    %c2_i32_56 = arith.constant 2 : i32
    %128 = vector.broadcast %c2_i32_56 : i32 to vector<1x256xi32>
    %129 = arith.addi %2, %128 : vector<1x256xi32>
    %c0_i32_57 = arith.constant 0 : i32
    %130 = vector.broadcast %c0_i32_57 : i32 to vector<1x256xi32>
    %131 = arith.cmpi sge, %129, %130 : vector<1x256xi32>
    %c2_i32_58 = arith.constant 2 : i32
    %132 = vector.broadcast %c2_i32_58 : i32 to vector<1x256xi32>
    %133 = arith.addi %2, %132 : vector<1x256xi32>
    %c128_i32_59 = arith.constant 128 : i32
    %134 = vector.broadcast %c128_i32_59 : i32 to vector<1x256xi32>
    %135 = arith.cmpi slt, %133, %134 : vector<1x256xi32>
    %136 = arith.andi %131, %135 : vector<1x256xi1>
    %137 = arith.extui %136 : vector<1x256xi1> to vector<1x256xi32>
    %138 = arith.sitofp %137 : vector<1x256xi32> to vector<1x256xf32>
    %139 = vector.broadcast %138 : vector<1x256xf32> to vector<8x256xf32>
    %140 = arith.mulf %127, %139 : vector<8x256xf32>
    %141 = arith.truncf %140 : vector<8x256xf32> to vector<8x256xbf16>
    %142 = tpu.concatenate %95, %110, %111, %126, %141 in 0 : vector<8x256xbf16>, vector<8x256xbf16>, vector<8x256xbf16>, vector<8x256xbf16>, vector<8x256xbf16> -> vector<40x256xbf16>
    %c0_60 = arith.constant 0 : index
    %c0_61 = arith.constant 0 : index
    %143 = vector.load %arg3[%c0_60, %c0_61] : memref<8x40xbf16, #tpu.memory_space<vmem>>, vector<8x40xbf16>
    %cst_62 = arith.constant dense<0.000000e+00> : vector<8x256xf32>
    %144 = tpu.matmul %143, %142, %cst_62 {dimension_numbers = #tpu.dot_dimension_numbers<[1], [0], [0], [1], [0, 0, 1, 1], [], []>} : vector<8x40xbf16>, vector<40x256xbf16>, vector<8x256xf32> -> vector<8x256xf32>
    %c0_63 = arith.constant 0 : index
    %c0_64 = arith.constant 0 : index
    %145 = vector.load %arg4[%c0_63, %c0_64] : memref<8x1xf32, #tpu.memory_space<vmem>>, vector<8x1xf32>
    %146 = vector.broadcast %145 : vector<8x1xf32> to vector<8x256xf32>
    %147 = arith.addf %144, %146 : vector<8x256xf32>
    %cst_65 = arith.constant 0.000000e+00 : f32
    %148 = vector.broadcast %cst_65 : f32 to vector<8x256xf32>
    %149 = arith.maximumf %147, %148 : vector<8x256xf32>
    %c2_i32_66 = arith.constant 2 : i32
    %150 = tpu.dynamic_rotate %149 by %c2_i32_66 dim 1 : vector<8x256xf32>, i32 -> vector<8x256xf32>
    %151 = vector.broadcast %92 : vector<1x256xf32> to vector<8x256xf32>
    %152 = arith.mulf %150, %151 : vector<8x256xf32>
    %153 = arith.truncf %152 : vector<8x256xf32> to vector<8x256xbf16>
    %c1_i32_67 = arith.constant 1 : i32
    %154 = tpu.dynamic_rotate %149 by %c1_i32_67 dim 1 : vector<8x256xf32>, i32 -> vector<8x256xf32>
    %155 = vector.broadcast %107 : vector<1x256xf32> to vector<8x256xf32>
    %156 = arith.mulf %154, %155 : vector<8x256xf32>
    %157 = arith.truncf %156 : vector<8x256xf32> to vector<8x256xbf16>
    %158 = arith.truncf %149 : vector<8x256xf32> to vector<8x256xbf16>
    %c255_i32_68 = arith.constant 255 : i32
    %159 = tpu.dynamic_rotate %149 by %c255_i32_68 dim 1 : vector<8x256xf32>, i32 -> vector<8x256xf32>
    %160 = vector.broadcast %123 : vector<1x256xf32> to vector<8x256xf32>
    %161 = arith.mulf %159, %160 : vector<8x256xf32>
    %162 = arith.truncf %161 : vector<8x256xf32> to vector<8x256xbf16>
    %c254_i32_69 = arith.constant 254 : i32
    %163 = tpu.dynamic_rotate %149 by %c254_i32_69 dim 1 : vector<8x256xf32>, i32 -> vector<8x256xf32>
    %164 = vector.broadcast %138 : vector<1x256xf32> to vector<8x256xf32>
    %165 = arith.mulf %163, %164 : vector<8x256xf32>
    %166 = arith.truncf %165 : vector<8x256xf32> to vector<8x256xbf16>
    %167 = tpu.concatenate %153, %157, %158, %162, %166 in 0 : vector<8x256xbf16>, vector<8x256xbf16>, vector<8x256xbf16>, vector<8x256xbf16>, vector<8x256xbf16> -> vector<40x256xbf16>
    %c0_70 = arith.constant 0 : index
    %c0_71 = arith.constant 0 : index
    %168 = vector.load %arg5[%c0_70, %c0_71] : memref<8x40xbf16, #tpu.memory_space<vmem>>, vector<8x40xbf16>
    %cst_72 = arith.constant dense<0.000000e+00> : vector<8x256xf32>
    %169 = tpu.matmul %168, %167, %cst_72 {dimension_numbers = #tpu.dot_dimension_numbers<[1], [0], [0], [1], [0, 0, 1, 1], [], []>} : vector<8x40xbf16>, vector<40x256xbf16>, vector<8x256xf32> -> vector<8x256xf32>
    %c0_73 = arith.constant 0 : index
    %c0_74 = arith.constant 0 : index
    %170 = vector.load %arg6[%c0_73, %c0_74] : memref<8x1xf32, #tpu.memory_space<vmem>>, vector<8x1xf32>
    %171 = vector.broadcast %170 : vector<8x1xf32> to vector<8x256xf32>
    %172 = arith.addf %169, %171 : vector<8x256xf32>
    %cst_75 = arith.constant 0.000000e+00 : f32
    %173 = vector.broadcast %cst_75 : f32 to vector<8x256xf32>
    %174 = arith.maximumf %172, %173 : vector<8x256xf32>
    %175 = arith.addf %80, %174 : vector<8x256xf32>
    %176 = vector.extract_strided_slice %175 {offsets = [0, 0], sizes = [1, 128], strides = [1, 1]} : vector<8x256xf32> to vector<1x128xf32>
    %177 = vector.extract_strided_slice %175 {offsets = [1, 0], sizes = [1, 128], strides = [1, 1]} : vector<8x256xf32> to vector<1x128xf32>
    %178 = vector.extract_strided_slice %175 {offsets = [2, 0], sizes = [1, 128], strides = [1, 1]} : vector<8x256xf32> to vector<1x128xf32>
    %179 = tpu.concatenate %176, %177, %178 in 1 : vector<1x128xf32>, vector<1x128xf32>, vector<1x128xf32> -> vector<1x384xf32>
    %180 = vector.extract_strided_slice %175 {offsets = [0, 128], sizes = [1, 128], strides = [1, 1]} : vector<8x256xf32> to vector<1x128xf32>
    %181 = vector.extract_strided_slice %175 {offsets = [1, 128], sizes = [1, 128], strides = [1, 1]} : vector<8x256xf32> to vector<1x128xf32>
    %182 = vector.extract_strided_slice %175 {offsets = [2, 128], sizes = [1, 128], strides = [1, 1]} : vector<8x256xf32> to vector<1x128xf32>
    %183 = tpu.concatenate %180, %181, %182 in 1 : vector<1x128xf32>, vector<1x128xf32>, vector<1x128xf32> -> vector<1x384xf32>
    %184 = tpu.concatenate %179, %183 in 0 : vector<1x384xf32>, vector<1x384xf32> -> vector<2x384xf32>
    %c0_76 = arith.constant 0 : index
    %c0_77 = arith.constant 0 : index
    %185 = vector.load %arg7[%c0_76, %c0_77] : memref<384x32xf32, #tpu.memory_space<vmem>>, vector<384x32xf32>
    %cst_78 = arith.constant dense<0.000000e+00> : vector<2x32xf32>
    %186 = tpu.matmul %184, %185, %cst_78 {dimension_numbers = #tpu.dot_dimension_numbers<[1], [0], [0], [1], [0, 0, 1, 1], [], []>} : vector<2x384xf32>, vector<384x32xf32>, vector<2x32xf32> -> vector<2x32xf32>
    %c0_79 = arith.constant 0 : index
    %c0_80 = arith.constant 0 : index
    %187 = vector.load %arg8[%c0_79, %c0_80] : memref<1x32xf32, #tpu.memory_space<vmem>>, vector<1x32xf32>
    %188 = vector.broadcast %187 : vector<1x32xf32> to vector<2x32xf32>
    %189 = arith.addf %186, %188 : vector<2x32xf32>
    %cst_81 = arith.constant 0.000000e+00 : f32
    %190 = vector.broadcast %cst_81 : f32 to vector<2x32xf32>
    %191 = arith.maximumf %189, %190 : vector<2x32xf32>
    %c0_82 = arith.constant 0 : index
    %c0_83 = arith.constant 0 : index
    %192 = vector.load %arg9[%c0_82, %c0_83] : memref<32x32xf32, #tpu.memory_space<vmem>>, vector<32x32xf32>
    %cst_84 = arith.constant dense<0.000000e+00> : vector<2x32xf32>
    %193 = tpu.matmul %191, %192, %cst_84 {dimension_numbers = #tpu.dot_dimension_numbers<[1], [0], [0], [1], [0, 0, 1, 1], [], []>} : vector<2x32xf32>, vector<32x32xf32>, vector<2x32xf32> -> vector<2x32xf32>
    %c0_85 = arith.constant 0 : index
    %c0_86 = arith.constant 0 : index
    %194 = vector.load %arg10[%c0_85, %c0_86] : memref<1x32xf32, #tpu.memory_space<vmem>>, vector<1x32xf32>
    %195 = vector.broadcast %194 : vector<1x32xf32> to vector<2x32xf32>
    %196 = arith.addf %193, %195 : vector<2x32xf32>
    %cst_87 = arith.constant 0.000000e+00 : f32
    %197 = vector.broadcast %cst_87 : f32 to vector<2x32xf32>
    %198 = arith.maximumf %196, %197 : vector<2x32xf32>
    %c0_88 = arith.constant 0 : index
    %c0_89 = arith.constant 0 : index
    %199 = vector.load %arg11[%c0_88, %c0_89] : memref<32x384xf32, #tpu.memory_space<vmem>>, vector<32x384xf32>
    %cst_90 = arith.constant dense<0.000000e+00> : vector<2x384xf32>
    %200 = tpu.matmul %198, %199, %cst_90 {dimension_numbers = #tpu.dot_dimension_numbers<[1], [0], [0], [1], [0, 0, 1, 1], [], []>} : vector<2x32xf32>, vector<32x384xf32>, vector<2x384xf32> -> vector<2x384xf32>
    %c0_91 = arith.constant 0 : index
    %c0_92 = arith.constant 0 : index
    %201 = vector.load %arg12[%c0_91, %c0_92] : memref<1x384xf32, #tpu.memory_space<vmem>>, vector<1x384xf32>
    %202 = vector.broadcast %201 : vector<1x384xf32> to vector<2x384xf32>
    %203 = arith.addf %200, %202 : vector<2x384xf32>
    %204 = vector.extract_strided_slice %203 {offsets = [0, 0], sizes = [1, 128], strides = [1, 1]} : vector<2x384xf32> to vector<1x128xf32>
    %205 = vector.extract_strided_slice %203 {offsets = [1, 0], sizes = [1, 128], strides = [1, 1]} : vector<2x384xf32> to vector<1x128xf32>
    %206 = tpu.concatenate %204, %205 in 1 : vector<1x128xf32>, vector<1x128xf32> -> vector<1x256xf32>
    %207 = vector.extract_strided_slice %203 {offsets = [0, 128], sizes = [1, 128], strides = [1, 1]} : vector<2x384xf32> to vector<1x128xf32>
    %208 = vector.extract_strided_slice %203 {offsets = [1, 128], sizes = [1, 128], strides = [1, 1]} : vector<2x384xf32> to vector<1x128xf32>
    %209 = tpu.concatenate %207, %208 in 1 : vector<1x128xf32>, vector<1x128xf32> -> vector<1x256xf32>
    %210 = vector.extract_strided_slice %203 {offsets = [0, 256], sizes = [1, 128], strides = [1, 1]} : vector<2x384xf32> to vector<1x128xf32>
    %211 = vector.extract_strided_slice %203 {offsets = [1, 256], sizes = [1, 128], strides = [1, 1]} : vector<2x384xf32> to vector<1x128xf32>
    %212 = tpu.concatenate %210, %211 in 1 : vector<1x128xf32>, vector<1x128xf32> -> vector<1x256xf32>
    %cst_93 = arith.constant 0.000000e+00 : f32
    %213 = vector.broadcast %cst_93 : f32 to vector<5x256xf32>
    %214 = tpu.concatenate %206, %209, %212, %213 in 0 : vector<1x256xf32>, vector<1x256xf32>, vector<1x256xf32>, vector<5x256xf32> -> vector<8x256xf32>
    %c1_i32_94 = arith.constant 1 : i32
    %215 = tpu.dynamic_rotate %214 by %c1_i32_94 dim 1 : vector<8x256xf32>, i32 -> vector<8x256xf32>
    %216 = vector.broadcast %107 : vector<1x256xf32> to vector<8x256xf32>
    %217 = arith.mulf %215, %216 : vector<8x256xf32>
    %218 = arith.truncf %217 : vector<8x256xf32> to vector<8x256xbf16>
    %219 = arith.truncf %214 : vector<8x256xf32> to vector<8x256xbf16>
    %c255_i32_95 = arith.constant 255 : i32
    %220 = tpu.dynamic_rotate %214 by %c255_i32_95 dim 1 : vector<8x256xf32>, i32 -> vector<8x256xf32>
    %221 = vector.broadcast %123 : vector<1x256xf32> to vector<8x256xf32>
    %222 = arith.mulf %220, %221 : vector<8x256xf32>
    %223 = arith.truncf %222 : vector<8x256xf32> to vector<8x256xbf16>
    %224 = tpu.concatenate %218, %219, %223 in 0 : vector<8x256xbf16>, vector<8x256xbf16>, vector<8x256xbf16> -> vector<24x256xbf16>
    %c0_96 = arith.constant 0 : index
    %c0_97 = arith.constant 0 : index
    %225 = vector.load %arg13[%c0_96, %c0_97] : memref<8x24xbf16, #tpu.memory_space<vmem>>, vector<8x24xbf16>
    %cst_98 = arith.constant dense<0.000000e+00> : vector<8x256xf32>
    %226 = tpu.matmul %225, %224, %cst_98 {dimension_numbers = #tpu.dot_dimension_numbers<[1], [0], [0], [1], [0, 0, 1, 1], [], []>} : vector<8x24xbf16>, vector<24x256xbf16>, vector<8x256xf32> -> vector<8x256xf32>
    %c0_99 = arith.constant 0 : index
    %c0_100 = arith.constant 0 : index
    %227 = vector.load %arg14[%c0_99, %c0_100] : memref<8x1xf32, #tpu.memory_space<vmem>>, vector<8x1xf32>
    %228 = vector.broadcast %227 : vector<8x1xf32> to vector<8x256xf32>
    %229 = arith.addf %226, %228 : vector<8x256xf32>
    %cst_101 = arith.constant 0.000000e+00 : f32
    %230 = vector.broadcast %cst_101 : f32 to vector<8x256xf32>
    %231 = arith.maximumf %229, %230 : vector<8x256xf32>
    %c1_i32_102 = arith.constant 1 : i32
    %232 = tpu.dynamic_rotate %231 by %c1_i32_102 dim 1 : vector<8x256xf32>, i32 -> vector<8x256xf32>
    %233 = vector.broadcast %107 : vector<1x256xf32> to vector<8x256xf32>
    %234 = arith.mulf %232, %233 : vector<8x256xf32>
    %235 = arith.truncf %234 : vector<8x256xf32> to vector<8x256xbf16>
    %236 = arith.truncf %231 : vector<8x256xf32> to vector<8x256xbf16>
    %c255_i32_103 = arith.constant 255 : i32
    %237 = tpu.dynamic_rotate %231 by %c255_i32_103 dim 1 : vector<8x256xf32>, i32 -> vector<8x256xf32>
    %238 = vector.broadcast %123 : vector<1x256xf32> to vector<8x256xf32>
    %239 = arith.mulf %237, %238 : vector<8x256xf32>
    %240 = arith.truncf %239 : vector<8x256xf32> to vector<8x256xbf16>
    %241 = tpu.concatenate %235, %236, %240 in 0 : vector<8x256xbf16>, vector<8x256xbf16>, vector<8x256xbf16> -> vector<24x256xbf16>
    %c0_104 = arith.constant 0 : index
    %c0_105 = arith.constant 0 : index
    %242 = vector.load %arg15[%c0_104, %c0_105] : memref<8x24xbf16, #tpu.memory_space<vmem>>, vector<8x24xbf16>
    %cst_106 = arith.constant dense<0.000000e+00> : vector<8x256xf32>
    %243 = tpu.matmul %242, %241, %cst_106 {dimension_numbers = #tpu.dot_dimension_numbers<[1], [0], [0], [1], [0, 0, 1, 1], [], []>} : vector<8x24xbf16>, vector<24x256xbf16>, vector<8x256xf32> -> vector<8x256xf32>
    %c0_107 = arith.constant 0 : index
    %c0_108 = arith.constant 0 : index
    %244 = vector.load %arg16[%c0_107, %c0_108] : memref<8x1xf32, #tpu.memory_space<vmem>>, vector<8x1xf32>
    %245 = vector.broadcast %244 : vector<8x1xf32> to vector<8x256xf32>
    %246 = arith.addf %243, %245 : vector<8x256xf32>
    %247 = arith.addf %214, %246 : vector<8x256xf32>
    %c2_i32_109 = arith.constant 2 : i32
    %248 = tpu.dynamic_rotate %247 by %c2_i32_109 dim 1 : vector<8x256xf32>, i32 -> vector<8x256xf32>
    %249 = vector.broadcast %92 : vector<1x256xf32> to vector<8x256xf32>
    %250 = arith.mulf %248, %249 : vector<8x256xf32>
    %251 = arith.truncf %250 : vector<8x256xf32> to vector<8x256xbf16>
    %252 = arith.truncf %247 : vector<8x256xf32> to vector<8x256xbf16>
    %c254_i32_110 = arith.constant 254 : i32
    %253 = tpu.dynamic_rotate %247 by %c254_i32_110 dim 1 : vector<8x256xf32>, i32 -> vector<8x256xf32>
    %254 = vector.broadcast %138 : vector<1x256xf32> to vector<8x256xf32>
    %255 = arith.mulf %253, %254 : vector<8x256xf32>
    %256 = arith.truncf %255 : vector<8x256xf32> to vector<8x256xbf16>
    %257 = tpu.concatenate %251, %252, %256 in 0 : vector<8x256xbf16>, vector<8x256xbf16>, vector<8x256xbf16> -> vector<24x256xbf16>
    %c0_111 = arith.constant 0 : index
    %c0_112 = arith.constant 0 : index
    %258 = vector.load %arg17[%c0_111, %c0_112] : memref<8x24xbf16, #tpu.memory_space<vmem>>, vector<8x24xbf16>
    %cst_113 = arith.constant dense<0.000000e+00> : vector<8x256xf32>
    %259 = tpu.matmul %258, %257, %cst_113 {dimension_numbers = #tpu.dot_dimension_numbers<[1], [0], [0], [1], [0, 0, 1, 1], [], []>} : vector<8x24xbf16>, vector<24x256xbf16>, vector<8x256xf32> -> vector<8x256xf32>
    %c0_114 = arith.constant 0 : index
    %c0_115 = arith.constant 0 : index
    %260 = vector.load %arg18[%c0_114, %c0_115] : memref<8x1xf32, #tpu.memory_space<vmem>>, vector<8x1xf32>
    %261 = vector.broadcast %260 : vector<8x1xf32> to vector<8x256xf32>
    %262 = arith.addf %259, %261 : vector<8x256xf32>
    %cst_116 = arith.constant 0.000000e+00 : f32
    %263 = vector.broadcast %cst_116 : f32 to vector<8x256xf32>
    %264 = arith.maximumf %262, %263 : vector<8x256xf32>
    %c2_i32_117 = arith.constant 2 : i32
    %265 = tpu.dynamic_rotate %264 by %c2_i32_117 dim 1 : vector<8x256xf32>, i32 -> vector<8x256xf32>
    %266 = vector.broadcast %92 : vector<1x256xf32> to vector<8x256xf32>
    %267 = arith.mulf %265, %266 : vector<8x256xf32>
    %268 = arith.truncf %267 : vector<8x256xf32> to vector<8x256xbf16>
    %269 = arith.truncf %264 : vector<8x256xf32> to vector<8x256xbf16>
    %c254_i32_118 = arith.constant 254 : i32
    %270 = tpu.dynamic_rotate %264 by %c254_i32_118 dim 1 : vector<8x256xf32>, i32 -> vector<8x256xf32>
    %271 = vector.broadcast %138 : vector<1x256xf32> to vector<8x256xf32>
    %272 = arith.mulf %270, %271 : vector<8x256xf32>
    %273 = arith.truncf %272 : vector<8x256xf32> to vector<8x256xbf16>
    %274 = tpu.concatenate %268, %269, %273 in 0 : vector<8x256xbf16>, vector<8x256xbf16>, vector<8x256xbf16> -> vector<24x256xbf16>
    %c0_119 = arith.constant 0 : index
    %c0_120 = arith.constant 0 : index
    %275 = vector.load %arg19[%c0_119, %c0_120] : memref<16x24xbf16, #tpu.memory_space<vmem>>, vector<16x24xbf16>
    %cst_121 = arith.constant dense<0.000000e+00> : vector<16x256xf32>
    %276 = tpu.matmul %275, %274, %cst_121 {dimension_numbers = #tpu.dot_dimension_numbers<[1], [0], [0], [1], [0, 0, 1, 1], [], []>} : vector<16x24xbf16>, vector<24x256xbf16>, vector<16x256xf32> -> vector<16x256xf32>
    %c0_122 = arith.constant 0 : index
    %c0_123 = arith.constant 0 : index
    %277 = vector.load %arg20[%c0_122, %c0_123] : memref<16x1xf32, #tpu.memory_space<vmem>>, vector<16x1xf32>
    %278 = vector.broadcast %277 : vector<16x1xf32> to vector<16x256xf32>
    %279 = arith.addf %276, %278 : vector<16x256xf32>
    %cst_124 = arith.constant 0.000000e+00 : f32
    %280 = vector.broadcast %cst_124 : f32 to vector<16x256xf32>
    %281 = arith.maximumf %279, %280 : vector<16x256xf32>
    %c15_i32 = arith.constant 15 : i32
    %282 = tpu.dynamic_rotate %281 by %c15_i32 dim 1 : vector<16x256xf32>, i32 -> vector<16x256xf32>
    %c-15_i32 = arith.constant -15 : i32
    %283 = vector.broadcast %c-15_i32 : i32 to vector<1x256xi32>
    %284 = arith.addi %2, %283 : vector<1x256xi32>
    %c0_i32_125 = arith.constant 0 : i32
    %285 = vector.broadcast %c0_i32_125 : i32 to vector<1x256xi32>
    %286 = arith.cmpi sge, %284, %285 : vector<1x256xi32>
    %c-15_i32_126 = arith.constant -15 : i32
    %287 = vector.broadcast %c-15_i32_126 : i32 to vector<1x256xi32>
    %288 = arith.addi %2, %287 : vector<1x256xi32>
    %c128_i32_127 = arith.constant 128 : i32
    %289 = vector.broadcast %c128_i32_127 : i32 to vector<1x256xi32>
    %290 = arith.cmpi slt, %288, %289 : vector<1x256xi32>
    %291 = arith.andi %286, %290 : vector<1x256xi1>
    %292 = arith.extui %291 : vector<1x256xi1> to vector<1x256xi32>
    %293 = arith.sitofp %292 : vector<1x256xi32> to vector<1x256xf32>
    %294 = vector.broadcast %293 : vector<1x256xf32> to vector<16x256xf32>
    %295 = arith.mulf %282, %294 : vector<16x256xf32>
    %296 = arith.truncf %295 : vector<16x256xf32> to vector<16x256xbf16>
    %c10_i32 = arith.constant 10 : i32
    %297 = tpu.dynamic_rotate %281 by %c10_i32 dim 1 : vector<16x256xf32>, i32 -> vector<16x256xf32>
    %c-10_i32 = arith.constant -10 : i32
    %298 = vector.broadcast %c-10_i32 : i32 to vector<1x256xi32>
    %299 = arith.addi %2, %298 : vector<1x256xi32>
    %c0_i32_128 = arith.constant 0 : i32
    %300 = vector.broadcast %c0_i32_128 : i32 to vector<1x256xi32>
    %301 = arith.cmpi sge, %299, %300 : vector<1x256xi32>
    %c-10_i32_129 = arith.constant -10 : i32
    %302 = vector.broadcast %c-10_i32_129 : i32 to vector<1x256xi32>
    %303 = arith.addi %2, %302 : vector<1x256xi32>
    %c128_i32_130 = arith.constant 128 : i32
    %304 = vector.broadcast %c128_i32_130 : i32 to vector<1x256xi32>
    %305 = arith.cmpi slt, %303, %304 : vector<1x256xi32>
    %306 = arith.andi %301, %305 : vector<1x256xi1>
    %307 = arith.extui %306 : vector<1x256xi1> to vector<1x256xi32>
    %308 = arith.sitofp %307 : vector<1x256xi32> to vector<1x256xf32>
    %309 = vector.broadcast %308 : vector<1x256xf32> to vector<16x256xf32>
    %310 = arith.mulf %297, %309 : vector<16x256xf32>
    %311 = arith.truncf %310 : vector<16x256xf32> to vector<16x256xbf16>
    %c5_i32 = arith.constant 5 : i32
    %312 = tpu.dynamic_rotate %281 by %c5_i32 dim 1 : vector<16x256xf32>, i32 -> vector<16x256xf32>
    %c-5_i32 = arith.constant -5 : i32
    %313 = vector.broadcast %c-5_i32 : i32 to vector<1x256xi32>
    %314 = arith.addi %2, %313 : vector<1x256xi32>
    %c0_i32_131 = arith.constant 0 : i32
    %315 = vector.broadcast %c0_i32_131 : i32 to vector<1x256xi32>
    %316 = arith.cmpi sge, %314, %315 : vector<1x256xi32>
    %c-5_i32_132 = arith.constant -5 : i32
    %317 = vector.broadcast %c-5_i32_132 : i32 to vector<1x256xi32>
    %318 = arith.addi %2, %317 : vector<1x256xi32>
    %c128_i32_133 = arith.constant 128 : i32
    %319 = vector.broadcast %c128_i32_133 : i32 to vector<1x256xi32>
    %320 = arith.cmpi slt, %318, %319 : vector<1x256xi32>
    %321 = arith.andi %316, %320 : vector<1x256xi1>
    %322 = arith.extui %321 : vector<1x256xi1> to vector<1x256xi32>
    %323 = arith.sitofp %322 : vector<1x256xi32> to vector<1x256xf32>
    %324 = vector.broadcast %323 : vector<1x256xf32> to vector<16x256xf32>
    %325 = arith.mulf %312, %324 : vector<16x256xf32>
    %326 = arith.truncf %325 : vector<16x256xf32> to vector<16x256xbf16>
    %327 = arith.truncf %281 : vector<16x256xf32> to vector<16x256xbf16>
    %c251_i32 = arith.constant 251 : i32
    %328 = tpu.dynamic_rotate %281 by %c251_i32 dim 1 : vector<16x256xf32>, i32 -> vector<16x256xf32>
    %c5_i32_134 = arith.constant 5 : i32
    %329 = vector.broadcast %c5_i32_134 : i32 to vector<1x256xi32>
    %330 = arith.addi %2, %329 : vector<1x256xi32>
    %c0_i32_135 = arith.constant 0 : i32
    %331 = vector.broadcast %c0_i32_135 : i32 to vector<1x256xi32>
    %332 = arith.cmpi sge, %330, %331 : vector<1x256xi32>
    %c5_i32_136 = arith.constant 5 : i32
    %333 = vector.broadcast %c5_i32_136 : i32 to vector<1x256xi32>
    %334 = arith.addi %2, %333 : vector<1x256xi32>
    %c128_i32_137 = arith.constant 128 : i32
    %335 = vector.broadcast %c128_i32_137 : i32 to vector<1x256xi32>
    %336 = arith.cmpi slt, %334, %335 : vector<1x256xi32>
    %337 = arith.andi %332, %336 : vector<1x256xi1>
    %338 = arith.extui %337 : vector<1x256xi1> to vector<1x256xi32>
    %339 = arith.sitofp %338 : vector<1x256xi32> to vector<1x256xf32>
    %340 = vector.broadcast %339 : vector<1x256xf32> to vector<16x256xf32>
    %341 = arith.mulf %328, %340 : vector<16x256xf32>
    %342 = arith.truncf %341 : vector<16x256xf32> to vector<16x256xbf16>
    %c246_i32 = arith.constant 246 : i32
    %343 = tpu.dynamic_rotate %281 by %c246_i32 dim 1 : vector<16x256xf32>, i32 -> vector<16x256xf32>
    %c10_i32_138 = arith.constant 10 : i32
    %344 = vector.broadcast %c10_i32_138 : i32 to vector<1x256xi32>
    %345 = arith.addi %2, %344 : vector<1x256xi32>
    %c0_i32_139 = arith.constant 0 : i32
    %346 = vector.broadcast %c0_i32_139 : i32 to vector<1x256xi32>
    %347 = arith.cmpi sge, %345, %346 : vector<1x256xi32>
    %c10_i32_140 = arith.constant 10 : i32
    %348 = vector.broadcast %c10_i32_140 : i32 to vector<1x256xi32>
    %349 = arith.addi %2, %348 : vector<1x256xi32>
    %c128_i32_141 = arith.constant 128 : i32
    %350 = vector.broadcast %c128_i32_141 : i32 to vector<1x256xi32>
    %351 = arith.cmpi slt, %349, %350 : vector<1x256xi32>
    %352 = arith.andi %347, %351 : vector<1x256xi1>
    %353 = arith.extui %352 : vector<1x256xi1> to vector<1x256xi32>
    %354 = arith.sitofp %353 : vector<1x256xi32> to vector<1x256xf32>
    %355 = vector.broadcast %354 : vector<1x256xf32> to vector<16x256xf32>
    %356 = arith.mulf %343, %355 : vector<16x256xf32>
    %357 = arith.truncf %356 : vector<16x256xf32> to vector<16x256xbf16>
    %c241_i32 = arith.constant 241 : i32
    %358 = tpu.dynamic_rotate %281 by %c241_i32 dim 1 : vector<16x256xf32>, i32 -> vector<16x256xf32>
    %c15_i32_142 = arith.constant 15 : i32
    %359 = vector.broadcast %c15_i32_142 : i32 to vector<1x256xi32>
    %360 = arith.addi %2, %359 : vector<1x256xi32>
    %c0_i32_143 = arith.constant 0 : i32
    %361 = vector.broadcast %c0_i32_143 : i32 to vector<1x256xi32>
    %362 = arith.cmpi sge, %360, %361 : vector<1x256xi32>
    %c15_i32_144 = arith.constant 15 : i32
    %363 = vector.broadcast %c15_i32_144 : i32 to vector<1x256xi32>
    %364 = arith.addi %2, %363 : vector<1x256xi32>
    %c128_i32_145 = arith.constant 128 : i32
    %365 = vector.broadcast %c128_i32_145 : i32 to vector<1x256xi32>
    %366 = arith.cmpi slt, %364, %365 : vector<1x256xi32>
    %367 = arith.andi %362, %366 : vector<1x256xi1>
    %368 = arith.extui %367 : vector<1x256xi1> to vector<1x256xi32>
    %369 = arith.sitofp %368 : vector<1x256xi32> to vector<1x256xf32>
    %370 = vector.broadcast %369 : vector<1x256xf32> to vector<16x256xf32>
    %371 = arith.mulf %358, %370 : vector<16x256xf32>
    %372 = arith.truncf %371 : vector<16x256xf32> to vector<16x256xbf16>
    %373 = tpu.concatenate %296, %311, %326, %327, %342, %357, %372 in 0 : vector<16x256xbf16>, vector<16x256xbf16>, vector<16x256xbf16>, vector<16x256xbf16>, vector<16x256xbf16>, vector<16x256xbf16>, vector<16x256xbf16> -> vector<112x256xbf16>
    %c0_146 = arith.constant 0 : index
    %c0_147 = arith.constant 0 : index
    %374 = vector.load %arg21[%c0_146, %c0_147] : memref<32x112xbf16, #tpu.memory_space<vmem>>, vector<32x112xbf16>
    %cst_148 = arith.constant dense<0.000000e+00> : vector<32x256xf32>
    %375 = tpu.matmul %374, %373, %cst_148 {dimension_numbers = #tpu.dot_dimension_numbers<[1], [0], [0], [1], [0, 0, 1, 1], [], []>} : vector<32x112xbf16>, vector<112x256xbf16>, vector<32x256xf32> -> vector<32x256xf32>
    %c0_149 = arith.constant 0 : index
    %c0_150 = arith.constant 0 : index
    %376 = vector.load %arg22[%c0_149, %c0_150] : memref<32x1xf32, #tpu.memory_space<vmem>>, vector<32x1xf32>
    %377 = vector.broadcast %376 : vector<32x1xf32> to vector<32x256xf32>
    %378 = arith.addf %375, %377 : vector<32x256xf32>
    %cst_151 = arith.constant 0.000000e+00 : f32
    %379 = vector.broadcast %cst_151 : f32 to vector<32x256xf32>
    %380 = arith.maximumf %378, %379 : vector<32x256xf32>
    %c15_i32_152 = arith.constant 15 : i32
    %381 = tpu.dynamic_rotate %380 by %c15_i32_152 dim 1 : vector<32x256xf32>, i32 -> vector<32x256xf32>
    %382 = vector.broadcast %293 : vector<1x256xf32> to vector<32x256xf32>
    %383 = arith.mulf %381, %382 : vector<32x256xf32>
    %384 = arith.truncf %383 : vector<32x256xf32> to vector<32x256xbf16>
    %c10_i32_153 = arith.constant 10 : i32
    %385 = tpu.dynamic_rotate %380 by %c10_i32_153 dim 1 : vector<32x256xf32>, i32 -> vector<32x256xf32>
    %386 = vector.broadcast %308 : vector<1x256xf32> to vector<32x256xf32>
    %387 = arith.mulf %385, %386 : vector<32x256xf32>
    %388 = arith.truncf %387 : vector<32x256xf32> to vector<32x256xbf16>
    %c5_i32_154 = arith.constant 5 : i32
    %389 = tpu.dynamic_rotate %380 by %c5_i32_154 dim 1 : vector<32x256xf32>, i32 -> vector<32x256xf32>
    %390 = vector.broadcast %323 : vector<1x256xf32> to vector<32x256xf32>
    %391 = arith.mulf %389, %390 : vector<32x256xf32>
    %392 = arith.truncf %391 : vector<32x256xf32> to vector<32x256xbf16>
    %393 = arith.truncf %380 : vector<32x256xf32> to vector<32x256xbf16>
    %c251_i32_155 = arith.constant 251 : i32
    %394 = tpu.dynamic_rotate %380 by %c251_i32_155 dim 1 : vector<32x256xf32>, i32 -> vector<32x256xf32>
    %395 = vector.broadcast %339 : vector<1x256xf32> to vector<32x256xf32>
    %396 = arith.mulf %394, %395 : vector<32x256xf32>
    %397 = arith.truncf %396 : vector<32x256xf32> to vector<32x256xbf16>
    %c246_i32_156 = arith.constant 246 : i32
    %398 = tpu.dynamic_rotate %380 by %c246_i32_156 dim 1 : vector<32x256xf32>, i32 -> vector<32x256xf32>
    %399 = vector.broadcast %354 : vector<1x256xf32> to vector<32x256xf32>
    %400 = arith.mulf %398, %399 : vector<32x256xf32>
    %401 = arith.truncf %400 : vector<32x256xf32> to vector<32x256xbf16>
    %c241_i32_157 = arith.constant 241 : i32
    %402 = tpu.dynamic_rotate %380 by %c241_i32_157 dim 1 : vector<32x256xf32>, i32 -> vector<32x256xf32>
    %403 = vector.broadcast %369 : vector<1x256xf32> to vector<32x256xf32>
    %404 = arith.mulf %402, %403 : vector<32x256xf32>
    %405 = arith.truncf %404 : vector<32x256xf32> to vector<32x256xbf16>
    %406 = tpu.concatenate %384, %388, %392, %393, %397, %401, %405 in 0 : vector<32x256xbf16>, vector<32x256xbf16>, vector<32x256xbf16>, vector<32x256xbf16>, vector<32x256xbf16>, vector<32x256xbf16>, vector<32x256xbf16> -> vector<224x256xbf16>
    %c0_158 = arith.constant 0 : index
    %c0_159 = arith.constant 0 : index
    %407 = vector.load %arg23[%c0_158, %c0_159] : memref<16x224xbf16, #tpu.memory_space<vmem>>, vector<16x224xbf16>
    %cst_160 = arith.constant dense<0.000000e+00> : vector<16x256xf32>
    %408 = tpu.matmul %407, %406, %cst_160 {dimension_numbers = #tpu.dot_dimension_numbers<[1], [0], [0], [1], [0, 0, 1, 1], [], []>} : vector<16x224xbf16>, vector<224x256xbf16>, vector<16x256xf32> -> vector<16x256xf32>
    %c0_161 = arith.constant 0 : index
    %c0_162 = arith.constant 0 : index
    %409 = vector.load %arg24[%c0_161, %c0_162] : memref<16x1xf32, #tpu.memory_space<vmem>>, vector<16x1xf32>
    %410 = vector.broadcast %409 : vector<16x1xf32> to vector<16x256xf32>
    %411 = arith.addf %408, %410 : vector<16x256xf32>
    %cst_163 = arith.constant 0.000000e+00 : f32
    %412 = vector.broadcast %cst_163 : f32 to vector<16x256xf32>
    %413 = arith.maximumf %411, %412 : vector<16x256xf32>
    %c2_i32_164 = arith.constant 2 : i32
    %414 = tpu.dynamic_rotate %413 by %c2_i32_164 dim 1 : vector<16x256xf32>, i32 -> vector<16x256xf32>
    %415 = vector.broadcast %92 : vector<1x256xf32> to vector<16x256xf32>
    %416 = arith.mulf %414, %415 : vector<16x256xf32>
    %417 = arith.truncf %416 : vector<16x256xf32> to vector<16x256xbf16>
    %418 = arith.truncf %413 : vector<16x256xf32> to vector<16x256xbf16>
    %c254_i32_165 = arith.constant 254 : i32
    %419 = tpu.dynamic_rotate %413 by %c254_i32_165 dim 1 : vector<16x256xf32>, i32 -> vector<16x256xf32>
    %420 = vector.broadcast %138 : vector<1x256xf32> to vector<16x256xf32>
    %421 = arith.mulf %419, %420 : vector<16x256xf32>
    %422 = arith.truncf %421 : vector<16x256xf32> to vector<16x256xbf16>
    %423 = tpu.concatenate %417, %418, %422 in 0 : vector<16x256xbf16>, vector<16x256xbf16>, vector<16x256xbf16> -> vector<48x256xbf16>
    %c0_166 = arith.constant 0 : index
    %c0_167 = arith.constant 0 : index
    %424 = vector.load %arg25[%c0_166, %c0_167] : memref<8x48xbf16, #tpu.memory_space<vmem>>, vector<8x48xbf16>
    %cst_168 = arith.constant dense<0.000000e+00> : vector<8x256xf32>
    %425 = tpu.matmul %424, %423, %cst_168 {dimension_numbers = #tpu.dot_dimension_numbers<[1], [0], [0], [1], [0, 0, 1, 1], [], []>} : vector<8x48xbf16>, vector<48x256xbf16>, vector<8x256xf32> -> vector<8x256xf32>
    %c0_169 = arith.constant 0 : index
    %c0_170 = arith.constant 0 : index
    %426 = vector.load %arg26[%c0_169, %c0_170] : memref<8x1xf32, #tpu.memory_space<vmem>>, vector<8x1xf32>
    %427 = vector.broadcast %426 : vector<8x1xf32> to vector<8x256xf32>
    %428 = arith.addf %425, %427 : vector<8x256xf32>
    %cst_171 = arith.constant 0.000000e+00 : f32
    %429 = vector.broadcast %cst_171 : f32 to vector<8x256xf32>
    %430 = arith.maximumf %428, %429 : vector<8x256xf32>
    %c2_i32_172 = arith.constant 2 : i32
    %431 = tpu.dynamic_rotate %430 by %c2_i32_172 dim 1 : vector<8x256xf32>, i32 -> vector<8x256xf32>
    %432 = vector.broadcast %92 : vector<1x256xf32> to vector<8x256xf32>
    %433 = arith.mulf %431, %432 : vector<8x256xf32>
    %434 = arith.truncf %433 : vector<8x256xf32> to vector<8x256xbf16>
    %435 = arith.truncf %430 : vector<8x256xf32> to vector<8x256xbf16>
    %c254_i32_173 = arith.constant 254 : i32
    %436 = tpu.dynamic_rotate %430 by %c254_i32_173 dim 1 : vector<8x256xf32>, i32 -> vector<8x256xf32>
    %437 = vector.broadcast %138 : vector<1x256xf32> to vector<8x256xf32>
    %438 = arith.mulf %436, %437 : vector<8x256xf32>
    %439 = arith.truncf %438 : vector<8x256xf32> to vector<8x256xbf16>
    %440 = tpu.concatenate %434, %435, %439 in 0 : vector<8x256xbf16>, vector<8x256xbf16>, vector<8x256xbf16> -> vector<24x256xbf16>
    %c0_174 = arith.constant 0 : index
    %c0_175 = arith.constant 0 : index
    %441 = vector.load %arg27[%c0_174, %c0_175] : memref<8x24xbf16, #tpu.memory_space<vmem>>, vector<8x24xbf16>
    %cst_176 = arith.constant dense<0.000000e+00> : vector<8x256xf32>
    %442 = tpu.matmul %441, %440, %cst_176 {dimension_numbers = #tpu.dot_dimension_numbers<[1], [0], [0], [1], [0, 0, 1, 1], [], []>} : vector<8x24xbf16>, vector<24x256xbf16>, vector<8x256xf32> -> vector<8x256xf32>
    %c0_177 = arith.constant 0 : index
    %c0_178 = arith.constant 0 : index
    %443 = vector.load %arg28[%c0_177, %c0_178] : memref<8x1xf32, #tpu.memory_space<vmem>>, vector<8x1xf32>
    %444 = vector.broadcast %443 : vector<8x1xf32> to vector<8x256xf32>
    %445 = arith.addf %442, %444 : vector<8x256xf32>
    %446 = arith.addf %247, %445 : vector<8x256xf32>
    %c255_i32_179 = arith.constant 255 : i32
    %447 = tpu.dynamic_rotate %446 by %c255_i32_179 dim 1 : vector<8x256xf32>, i32 -> vector<8x256xf32>
    %448 = arith.subf %447, %446 : vector<8x256xf32>
    %449 = vector.extract_strided_slice %448 {offsets = [0, 0], sizes = [1, 256], strides = [1, 1]} : vector<8x256xf32> to vector<1x256xf32>
    %cst_180 = arith.constant 2.000000e+01 : f32
    %450 = vector.broadcast %cst_180 : f32 to vector<1x256xf32>
    %451 = arith.cmpf ogt, %449, %450 : vector<1x256xf32>
    %cst_181 = arith.constant 2.000000e+01 : f32
    %452 = vector.broadcast %cst_181 : f32 to vector<1x256xf32>
    %453 = arith.minimumf %449, %452 : vector<1x256xf32>
    %454 = math.exp %453 : vector<1x256xf32>
    %455 = math.log1p %454 : vector<1x256xf32>
    %456 = arith.select %451, %449, %455 : vector<1x256xi1>, vector<1x256xf32>
    %457 = vector.extract_strided_slice %448 {offsets = [1, 0], sizes = [1, 256], strides = [1, 1]} : vector<8x256xf32> to vector<1x256xf32>
    %458 = vector.extract_strided_slice %448 {offsets = [2, 0], sizes = [1, 256], strides = [1, 1]} : vector<8x256xf32> to vector<1x256xf32>
    %cst_182 = arith.constant 2.000000e+01 : f32
    %459 = vector.broadcast %cst_182 : f32 to vector<1x256xf32>
    %460 = arith.cmpf ogt, %458, %459 : vector<1x256xf32>
    %cst_183 = arith.constant 2.000000e+01 : f32
    %461 = vector.broadcast %cst_183 : f32 to vector<1x256xf32>
    %462 = arith.minimumf %458, %461 : vector<1x256xf32>
    %463 = math.exp %462 : vector<1x256xf32>
    %464 = math.log1p %463 : vector<1x256xf32>
    %465 = arith.select %460, %458, %464 : vector<1x256xi1>, vector<1x256xf32>
    %cst_184 = arith.constant 9.99999993E-9 : f32
    %466 = vector.broadcast %cst_184 : f32 to vector<1x256xf32>
    %467 = arith.addf %456, %466 : vector<1x256xf32>
    %cst_185 = arith.constant 1.000000e+00 : f32
    %468 = vector.broadcast %cst_185 : f32 to vector<1x256xf32>
    %469 = arith.divf %468, %467 : vector<1x256xf32>
    %470 = arith.mulf %457, %457 : vector<1x256xf32>
    %cst_186 = arith.constant 5.000000e-01 : f32
    %471 = vector.broadcast %cst_186 : f32 to vector<1x256xf32>
    %472 = arith.mulf %471, %470 : vector<1x256xf32>
    %473 = arith.mulf %472, %469 : vector<1x256xf32>
    %474 = arith.subf %465, %473 : vector<1x256xf32>
    %cst_187 = arith.constant 6.666700e-01 : f32
    %475 = vector.broadcast %cst_187 : f32 to vector<1x256xf32>
    %476 = arith.mulf %475, %474 : vector<1x256xf32>
    %477 = arith.mulf %457, %469 : vector<1x256xf32>
    %478 = tpu.concatenate %456, %476, %477 in 0 : vector<1x256xf32>, vector<1x256xf32>, vector<1x256xf32> -> vector<3x256xf32>
    %479 = vector.extract_strided_slice %478 {offsets = [0, 0], sizes = [3, 128], strides = [1, 1]} : vector<3x256xf32> to vector<3x128xf32>
    %c0_188 = arith.constant 0 : index
    %c0_189 = arith.constant 0 : index
    %c0_190 = arith.constant 0 : index
    %480 = vector.load %arg29[%c0_188, %c0_189, %c0_190] : memref<2x3x128xf32, #tpu.memory_space<vmem>>, vector<1x3x128xf32>
    %481 = vector.shape_cast %480 : vector<1x3x128xf32> to vector<3x128xf32>
    %482 = vector.shape_cast %479 : vector<3x128xf32> to vector<1x3x128xf32>
    tpu.vector_store %arg29[%c0_188, %c0_189, %c0_190], %482 {strides = array<i32>} : memref<2x3x128xf32, #tpu.memory_space<vmem>>, vector<1x3x128xf32>,
    %483 = vector.extract_strided_slice %478 {offsets = [0, 128], sizes = [3, 128], strides = [1, 1]} : vector<3x256xf32> to vector<3x128xf32>
    %c1_191 = arith.constant 1 : index
    %c0_192 = arith.constant 0 : index
    %c0_193 = arith.constant 0 : index
    %484 = vector.load %arg29[%c1_191, %c0_192, %c0_193] : memref<2x3x128xf32, #tpu.memory_space<vmem>>, vector<1x3x128xf32>
    %485 = vector.shape_cast %484 : vector<1x3x128xf32> to vector<3x128xf32>
    %486 = vector.shape_cast %483 : vector<3x128xf32> to vector<1x3x128xf32>
    tpu.vector_store %arg29[%c1_191, %c0_192, %c0_193], %486 {strides = array<i32>} : memref<2x3x128xf32, #tpu.memory_space<vmem>>, vector<1x3x128xf32>,
    return
  }
}

</mosaic_0001>

<llo_original>
// kernel: forward.1
$region0: #{forward.1}
  #allocation0 [shape = 'u32[]', space=smem, size = 0x4, offset = 0x4, fixed_abs, tag = 'smem constant byte address 0x4 - core index']
  #allocation1 [shape = 'u32[144,128]{1,0:T(1,128)}', space=vmem, size = 0x12000, scoped, tag = 'internal scratch']
  %s0 = inlined_call_operand.smem [shape: u32[30], index: -1, kind: input, shape index: {}]
  %s1 = sld [smem:[%s0]]
  %s2 = scalar_lea.smem %s0, 1
  %s3 = sld [smem:[%s2]]
  %s4 = scalar_lea.smem %s0, 2
  %s5 = sld [smem:[%s4]]
  %s6 = scalar_lea.smem %s0, 3
  %s7 = sld [smem:[%s6]]
  %s8 = scalar_lea.smem %s0, 4
  %s9 = sld [smem:[%s8]]
  %s10 = scalar_lea.smem %s0, 5
  %s11 = sld [smem:[%s10]]
  %s12 = scalar_lea.smem %s0, 6
  %s13 = sld [smem:[%s12]]
  %s14 = scalar_lea.smem %s0, 7
  %s15 = sld [smem:[%s14]]
  %s16 = scalar_lea.smem %s0, 8
  %s17 = sld [smem:[%s16]]
  %s18 = scalar_lea.smem %s0, 9
  %s19 = sld [smem:[%s18]]
  %s20 = scalar_lea.smem %s0, 10
  %s21 = sld [smem:[%s20]]
  %s22 = scalar_lea.smem %s0, 11
  %s23 = sld [smem:[%s22]]
  %s24 = scalar_lea.smem %s0, 12
  %s25 = sld [smem:[%s24]]
  %s26 = scalar_lea.smem %s0, 13
  %s27 = sld [smem:[%s26]]
  %s28 = scalar_lea.smem %s0, 14
  %s29 = sld [smem:[%s28]]
  %s30 = scalar_lea.smem %s0, 15
  %s31 = sld [smem:[%s30]]
  %s32 = scalar_lea.smem %s0, 16
  %s33 = sld [smem:[%s32]]
  %s34 = scalar_lea.smem %s0, 17
  %s35 = sld [smem:[%s34]]
  %s36 = scalar_lea.smem %s0, 18
  %s37 = sld [smem:[%s36]]
  %s38 = scalar_lea.smem %s0, 19
  %s39 = sld [smem:[%s38]]
  %s40 = scalar_lea.smem %s0, 20
  %s41 = sld [smem:[%s40]]
  %s42 = scalar_lea.smem %s0, 21
  %s43 = sld [smem:[%s42]]
  %s44 = scalar_lea.smem %s0, 22
  %s45 = sld [smem:[%s44]]
  %s46 = scalar_lea.smem %s0, 23
  %s47 = sld [smem:[%s46]]
  %s48 = scalar_lea.smem %s0, 24
  %s49 = sld [smem:[%s48]]
  %s50 = scalar_lea.smem %s0, 25
  %s51 = sld [smem:[%s50]]
  %s52 = scalar_lea.smem %s0, 26
  %s53 = sld [smem:[%s52]]
  %s54 = scalar_lea.smem %s0, 27
  %s55 = sld [smem:[%s54]]
  %s56 = scalar_lea.smem %s0, 28
  %s57 = sld [smem:[%s56]]
  %s58 = scalar_lea.smem %s0, 29
  %s59 = sld [smem:[%s58]]
  %s60 = sld [smem:[#allocation0]]
  $region130: #{forward.1} parent=0
    _
  %s62 = ssub.s32 1, %s60
  %s63 = scalar_select 0, %s62, %s60
  $region1: #{forward.1} parent=0
    #allocation2 [shape = 'u8[1024]{0}', space=smem, size = 0x400, scoped, tag = 'input window, operand 0, single buffered']
    #allocation3 [shape = 's32[1]{0}', space=sflag, size = 0x4, scoped, tag = 'scoped memory for forward.1']
    %64 = vsyncpa [#allocation3], 0
    // Predicated region
    $region2: #{forward.1} parent=1 // pred_check
      _
    $region3: #{forward.1} parent=1 // pred_check_branch
      %66 = sbr.rel (0) target = $region5
    $region4: #{forward.1} parent=1 // pred_region
      %s68 = ssub.s32 32, 32
      %69 = vsyncadd [#allocation3], %s68
      %s71 = sshll.u32 %s1, 4
      %s72 = int_to_ptr.vmem [resolvable:$true] %s71
      %74 = dma.vmem_to_smem %s72, 32, [#allocation2], [#allocation3]
    $region5: #{forward.1} parent=1 // pred_fallthru
      _
    // Predicated region
    $region6: #{forward.1} parent=1 // pred_check
      _
    $region7: #{forward.1} parent=1 // pred_check_branch
      %76 = sbr.rel (0) target = $region9
    $region8: #{forward.1} parent=1 // pred_region
      _
    $region9: #{forward.1} parent=1 // pred_fallthru
      _
    // Predicated region
    $region10: #{forward.1} parent=1 // pred_check
      _
    $region11: #{forward.1} parent=1 // pred_check_branch
      %78 = sbr.rel (0) target = $region13
    $region12: #{forward.1} parent=1 // pred_region
      _
    $region13: #{forward.1} parent=1 // pred_fallthru
      _
    // Predicated region
    $region14: #{forward.1} parent=1 // pred_check
      _
    $region15: #{forward.1} parent=1 // pred_check_branch
      %80 = sbr.rel (0) target = $region17
    $region16: #{forward.1} parent=1 // pred_region
      _
    $region17: #{forward.1} parent=1 // pred_fallthru
      _
    // Predicated region
    $region18: #{forward.1} parent=1 // pred_check
      _
    $region19: #{forward.1} parent=1 // pred_check_branch
      %82 = sbr.rel (0) target = $region21
    $region20: #{forward.1} parent=1 // pred_region
      _
    $region21: #{forward.1} parent=1 // pred_fallthru
      _
    // Predicated region
    $region22: #{forward.1} parent=1 // pred_check
      _
    $region23: #{forward.1} parent=1 // pred_check_branch
      %84 = sbr.rel (0) target = $region25
    $region24: #{forward.1} parent=1 // pred_region
      _
    $region25: #{forward.1} parent=1 // pred_fallthru
      _
    // Predicated region
    $region26: #{forward.1} parent=1 // pred_check
      _
    $region27: #{forward.1} parent=1 // pred_check_branch
      %86 = sbr.rel (0) target = $region29
    $region28: #{forward.1} parent=1 // pred_region
      _
    $region29: #{forward.1} parent=1 // pred_fallthru
      _
    // Predicated region
    $region30: #{forward.1} parent=1 // pred_check
      _
    $region31: #{forward.1} parent=1 // pred_check_branch
      %88 = sbr.rel (0) target = $region33
    $region32: #{forward.1} parent=1 // pred_region
      _
    $region33: #{forward.1} parent=1 // pred_fallthru
      _
    // Predicated region
    $region34: #{forward.1} parent=1 // pred_check
      _
    $region35: #{forward.1} parent=1 // pred_check_branch
      %90 = sbr.rel (0) target = $region37
    $region36: #{forward.1} parent=1 // pred_region
      _
    $region37: #{forward.1} parent=1 // pred_fallthru
      _
    // Predicated region
    $region38: #{forward.1} parent=1 // pred_check
      _
    $region39: #{forward.1} parent=1 // pred_check_branch
      %92 = sbr.rel (0) target = $region41
    $region40: #{forward.1} parent=1 // pred_region
      _
    $region41: #{forward.1} parent=1 // pred_fallthru
      _
    // Predicated region
    $region42: #{forward.1} parent=1 // pred_check
      _
    $region43: #{forward.1} parent=1 // pred_check_branch
      %94 = sbr.rel (0) target = $region45
    $region44: #{forward.1} parent=1 // pred_region
      _
    $region45: #{forward.1} parent=1 // pred_fallthru
      _
    // Predicated region
    $region46: #{forward.1} parent=1 // pred_check
      _
    $region47: #{forward.1} parent=1 // pred_check_branch
      %96 = sbr.rel (0) target = $region49
    $region48: #{forward.1} parent=1 // pred_region
      _
    $region49: #{forward.1} parent=1 // pred_fallthru
      _
    // Predicated region
    $region50: #{forward.1} parent=1 // pred_check
      _
    $region51: #{forward.1} parent=1 // pred_check_branch
      %98 = sbr.rel (0) target = $region53
    $region52: #{forward.1} parent=1 // pred_region
      _
    $region53: #{forward.1} parent=1 // pred_fallthru
      _
    // Predicated region
    $region54: #{forward.1} parent=1 // pred_check
      _
    $region55: #{forward.1} parent=1 // pred_check_branch
      %100 = sbr.rel (0) target = $region57
    $region56: #{forward.1} parent=1 // pred_region
      _
    $region57: #{forward.1} parent=1 // pred_fallthru
      _
    // Predicated region
    $region58: #{forward.1} parent=1 // pred_check
      _
    $region59: #{forward.1} parent=1 // pred_check_branch
      %102 = sbr.rel (0) target = $region61
    $region60: #{forward.1} parent=1 // pred_region
      _
    $region61: #{forward.1} parent=1 // pred_fallthru
      _
    // Predicated region
    $region62: #{forward.1} parent=1 // pred_check
      _
    $region63: #{forward.1} parent=1 // pred_check_branch
      %104 = sbr.rel (0) target = $region65
    $region64: #{forward.1} parent=1 // pred_region
      _
    $region65: #{forward.1} parent=1 // pred_fallthru
      _
    // Predicated region
    $region66: #{forward.1} parent=1 // pred_check
      _
    $region67: #{forward.1} parent=1 // pred_check_branch
      %106 = sbr.rel (0) target = $region69
    $region68: #{forward.1} parent=1 // pred_region
      _
    $region69: #{forward.1} parent=1 // pred_fallthru
      _
    // Predicated region
    $region70: #{forward.1} parent=1 // pred_check
      _
    $region71: #{forward.1} parent=1 // pred_check_branch
      %108 = sbr.rel (0) target = $region73
    $region72: #{forward.1} parent=1 // pred_region
      _
    $region73: #{forward.1} parent=1 // pred_fallthru
      _
    // Predicated region
    $region74: #{forward.1} parent=1 // pred_check
      _
    $region75: #{forward.1} parent=1 // pred_check_branch
      %110 = sbr.rel (0) target = $region77
    $region76: #{forward.1} parent=1 // pred_region
      _
    $region77: #{forward.1} parent=1 // pred_fallthru
      _
    // Predicated region
    $region78: #{forward.1} parent=1 // pred_check
      _
    $region79: #{forward.1} parent=1 // pred_check_branch
      %112 = sbr.rel (0) target = $region81
    $region80: #{forward.1} parent=1 // pred_region
      _
    $region81: #{forward.1} parent=1 // pred_fallthru
      _
    // Predicated region
    $region82: #{forward.1} parent=1 // pred_check
      _
    $region83: #{forward.1} parent=1 // pred_check_branch
      %114 = sbr.rel (0) target = $region85
    $region84: #{forward.1} parent=1 // pred_region
      _
    $region85: #{forward.1} parent=1 // pred_fallthru
      _
    // Predicated region
    $region86: #{forward.1} parent=1 // pred_check
      _
    $region87: #{forward.1} parent=1 // pred_check_branch
      %116 = sbr.rel (0) target = $region89
    $region88: #{forward.1} parent=1 // pred_region
      _
    $region89: #{forward.1} parent=1 // pred_fallthru
      _
    // Predicated region
    $region90: #{forward.1} parent=1 // pred_check
      _
    $region91: #{forward.1} parent=1 // pred_check_branch
      %118 = sbr.rel (0) target = $region93
    $region92: #{forward.1} parent=1 // pred_region
      _
    $region93: #{forward.1} parent=1 // pred_fallthru
      _
    // Predicated region
    $region94: #{forward.1} parent=1 // pred_check
      _
    $region95: #{forward.1} parent=1 // pred_check_branch
      %120 = sbr.rel (0) target = $region97
    $region96: #{forward.1} parent=1 // pred_region
      _
    $region97: #{forward.1} parent=1 // pred_fallthru
      _
    // Predicated region
    $region98: #{forward.1} parent=1 // pred_check
      _
    $region99: #{forward.1} parent=1 // pred_check_branch
      %122 = sbr.rel (0) target = $region101
    $region100: #{forward.1} parent=1 // pred_region
      _
    $region101: #{forward.1} parent=1 // pred_fallthru
      _
    // Predicated region
    $region102: #{forward.1} parent=1 // pred_check
      _
    $region103: #{forward.1} parent=1 // pred_check_branch
      %124 = sbr.rel (0) target = $region105
    $region104: #{forward.1} parent=1 // pred_region
      _
    $region105: #{forward.1} parent=1 // pred_fallthru
      _
    // Predicated region
    $region106: #{forward.1} parent=1 // pred_check
      _
    $region107: #{forward.1} parent=1 // pred_check_branch
      %126 = sbr.rel (0) target = $region109
    $region108: #{forward.1} parent=1 // pred_region
      _
    $region109: #{forward.1} parent=1 // pred_fallthru
      _
    // Predicated region
    $region110: #{forward.1} parent=1 // pred_check
      _
    $region111: #{forward.1} parent=1 // pred_check_branch
      %128 = sbr.rel (0) target = $region113
    $region112: #{forward.1} parent=1 // pred_region
      _
    $region113: #{forward.1} parent=1 // pred_fallthru
      _
    // Predicated region
    $region114: #{forward.1} parent=1 // pred_check
      _
    $region115: #{forward.1} parent=1 // pred_check_branch
      %130 = sbr.rel (0) target = $region117
    $region116: #{forward.1} parent=1 // pred_region
      _
    $region117: #{forward.1} parent=1 // pred_fallthru
      _
    // Predicated region
    $region118: #{forward.1} parent=1 // pred_check
      _
    $region119: #{forward.1} parent=1 // pred_check_branch
      %132 = sbr.rel (0) target = $region121
    $region120: #{forward.1} parent=1 // pred_region
      %133 = dma.done [#allocation3], 32
    $region121: #{forward.1} parent=1 // pred_fallthru
      _
    %134 = sfence
    %v136 = vlaneseq
    %v137 = vand.u32 %v136, 127
    %v138 = vadd.s32 %v137, 128
    %v139 = vand.u32 %v137, 127
    %v140 = vand.u32 %v138, 127
    %v141 = vld [vmem:[%s5] sm:$0x7]
    %s142 = sld [smem:[#allocation2]]
    %v143 = vld [vmem:[%s3] ss:$8 sm:$0x7]
    %v144 = vstv %s142
    %v145 = vmul.f32 %v144, %v143
    %v146 = vadd.f32 %v141, %v145
    %s147 = sld [smem:[#allocation2 + $0x1]]
    %s148 = scalar_lea.vmem %s3, 1
    %v149 = vld [vmem:[%s148] ss:$8 sm:$0x7]
    %v150 = vstv %s147
    %v151 = vmul.f32 %v150, %v149
    %v152 = vadd.f32 %v146, %v151
    %s153 = sld [smem:[#allocation2 + $0x2]]
    %s154 = scalar_lea.vmem %s3, 2
    %v155 = vld [vmem:[%s154] ss:$8 sm:$0x7]
    %v156 = vstv %s153
    %v157 = vmul.f32 %v156, %v155
    %v158 = vadd.f32 %v152, %v157
    %s159 = sld [smem:[#allocation2 + $0x3]]
    %s160 = scalar_lea.vmem %s3, 3
    %v161 = vld [vmem:[%s160] ss:$8 sm:$0x7]
    %v162 = vstv %s159
    %v163 = vmul.f32 %v162, %v161
    %v164 = vadd.f32 %v158, %v163
    %s165 = sld [smem:[#allocation2 + $0x4]]
    %s166 = scalar_lea.vmem %s3, 4
    %v167 = vld [vmem:[%s166] ss:$8 sm:$0x7]
    %v168 = vstv %s165
    %v169 = vmul.f32 %v168, %v167
    %v170 = vadd.f32 %v164, %v169
    %s171 = sld [smem:[#allocation2 + $0x5]]
    %s172 = scalar_lea.vmem %s3, 5
    %v173 = vld [vmem:[%s172] ss:$8 sm:$0x7]
    %v174 = vstv %s171
    %v175 = vmul.f32 %v174, %v173
    %v176 = vadd.f32 %v170, %v175
    %v177 = vmax.f32 %v176, 0.0
    %s178 = sld [smem:[#allocation2 + $0x80]]
    %v179 = vstv %s178
    %v180 = vmul.f32 %v179, %v143
    %v181 = vadd.f32 %v141, %v180
    %s182 = sld [smem:[#allocation2 + $0x81]]
    %v183 = vstv %s182
    %v184 = vmul.f32 %v183, %v149
    %v185 = vadd.f32 %v181, %v184
    %s186 = sld [smem:[#allocation2 + $0x82]]
    %v187 = vstv %s186
    %v188 = vmul.f32 %v187, %v155
    %v189 = vadd.f32 %v185, %v188
    %s190 = sld [smem:[#allocation2 + $0x83]]
    %v191 = vstv %s190
    %v192 = vmul.f32 %v191, %v161
    %v193 = vadd.f32 %v189, %v192
    %s194 = sld [smem:[#allocation2 + $0x84]]
    %v195 = vstv %s194
    %v196 = vmul.f32 %v195, %v167
    %v197 = vadd.f32 %v193, %v196
    %s198 = sld [smem:[#allocation2 + $0x85]]
    %v199 = vstv %s198
    %v200 = vmul.f32 %v199, %v173
    %v201 = vadd.f32 %v197, %v200
    %v202 = vmax.f32 %v201, 0.0
    %v204 = vlaneseq
    %v205 = vshrl.u32 %v204, 7
    %v206 = vsub.s32 0, %v205
    %v207 = vrot.slane %v177, %v206
    %v208 = vlaneseq
    %v209 = vshrl.u32 %v208, 7
    %v210 = vsub.s32 1, %v209
    %v211 = vrot.slane %v177, %v210
    %v212 = vlaneseq
    %v213 = vshrl.u32 %v212, 7
    %v214 = vsub.s32 2, %v213
    %v215 = vrot.slane %v177, %v214
    %v220 = vlaneseq
    %v221 = vshrl.u32 %v220, 7
    %v222 = vsub.s32 0, %v221
    %v223 = vrot.slane %v202, %v222
    %v224 = vlaneseq
    %v225 = vshrl.u32 %v224, 7
    %v226 = vsub.s32 1, %v225
    %v227 = vrot.slane %v202, %v226
    %v228 = vlaneseq
    %v229 = vshrl.u32 %v228, 7
    %v230 = vsub.s32 2, %v229
    %v231 = vrot.slane %v202, %v230
    %vm235 = vcmask 1040384
    %v236 = vsel %vm235, %v207, %v223
    %v237 = vsel %vm235, %v211, %v227
    %v238 = vsel %vm235, %v215, %v231
    %v240 = vrot.slane %v236, 1
    %v243 = vrot.slane %v237, 1
    %v245 = vrot.slane %v238, 1
    %v246 = vrot.slane %v237, 7
    %v247 = vrot.slane %v243, 7
    %v250 = vrot.slane %v238, 6
    %v251 = vrot.slane %v245, 6
    %v254 = vsel %vm235, %v236, %v246
    %v255 = vsel %vm235, %v240, %v247
    %vm256 = vcmask 1041408
    %v257 = vsel %vm256, %v254, %v250
    %v258 = vsel %vm256, %v255, %v251
    %vm259 = vcmask 1042432
    %v260 = vsel %vm259, %v257, 0.0
    %v261 = vsel %vm259, %v258, 0.0
    %262 = vrot.lane.b32.xlu0 %v260, 2
    %v263 = vpop.permute.xlu0 %262
    %264 = vrot.lane.b32.xlu0 %v261, 2
    %v265 = vpop.permute.xlu0 %264
    %vm266 = vcmp.lt.s32.totalorder %v137, 2
    %v267 = vsel %vm266, %v263, %v265
    %v268 = vsel %vm266, %v265, %v263
    %v269 = vadd.s32 %v139, 4294967294
    %v270 = vadd.s32 %v140, 4294967294
    %vm271 = vcmp.ge.s32.totalorder %v269, 0
    %vm272 = vcmp.ge.s32.totalorder %v270, 0
    %vm273 = vcmp.lt.s32.totalorder %v269, 128
    %vm274 = vcmp.lt.s32.totalorder %v270, 128
    %vm275 = vmand %vm271, %vm273
    %vm276 = vmand %vm272, %vm274
    %v277 = vsel %vm275, 1, 0
    %v278 = vsel %vm276, 1, 0
    %v279 = vcvt.s32.f32 %v277
    %v280 = vcvt.s32.f32 %v278
    %v281 = vmul.f32 %v268, %v279
    %v282 = vmul.f32 %v267, %v280
    %v283 = vpack.c.bf16 %v281, %v281
    %v284 = vpack.c.bf16 %v282, %v282
    %285 = vrot.lane.b32.xlu0 %v260, 1
    %v286 = vpop.permute.xlu0 %285
    %287 = vrot.lane.b32.xlu0 %v261, 1
    %v288 = vpop.permute.xlu0 %287
    %vm289 = vcmp.lt.s32.totalorder %v137, 1
    %v290 = vsel %vm289, %v286, %v288
    %v291 = vsel %vm289, %v288, %v286
    %v292 = vadd.s32 %v139, 4294967295
    %v293 = vadd.s32 %v140, 4294967295
    %vm294 = vcmp.ge.s32.totalorder %v292, 0
    %vm295 = vcmp.ge.s32.totalorder %v293, 0
    %vm296 = vcmp.lt.s32.totalorder %v292, 128
    %vm297 = vcmp.lt.s32.totalorder %v293, 128
    %vm298 = vmand %vm294, %vm296
    %vm299 = vmand %vm295, %vm297
    %v300 = vsel %vm298, 1, 0
    %v301 = vsel %vm299, 1, 0
    %v302 = vcvt.s32.f32 %v300
    %v303 = vcvt.s32.f32 %v301
    %v304 = vmul.f32 %v291, %v302
    %v305 = vmul.f32 %v290, %v303
    %v306 = vpack.c.bf16 %v304, %v304
    %v307 = vpack.c.bf16 %v305, %v305
    %v308 = vpack.c.bf16 %v260, %v260
    %v309 = vpack.c.bf16 %v261, %v261
    %310 = vrot.lane.b32.xlu0 %v260, 127
    %v311 = vpop.permute.xlu0 %310
    %312 = vrot.lane.b32.xlu0 %v261, 127
    %v313 = vpop.permute.xlu0 %312
    %vm314 = vcmp.lt.s32.totalorder %v137, 127
    %v315 = vsel %vm314, %v311, %v313
    %v316 = vsel %vm314, %v313, %v311
    %v317 = vadd.s32 %v139, 1
    %v318 = vadd.s32 %v140, 1
    %vm319 = vcmp.ge.s32.totalorder %v317, 0
    %vm320 = vcmp.ge.s32.totalorder %v318, 0
    %vm321 = vcmp.lt.s32.totalorder %v317, 128
    %vm322 = vcmp.lt.s32.totalorder %v318, 128
    %vm323 = vmand %vm319, %vm321
    %vm324 = vmand %vm320, %vm322
    %v325 = vsel %vm323, 1, 0
    %v326 = vsel %vm324, 1, 0
    %v327 = vcvt.s32.f32 %v325
    %v328 = vcvt.s32.f32 %v326
    %v329 = vmul.f32 %v315, %v327
    %v330 = vmul.f32 %v316, %v328
    %v331 = vpack.c.bf16 %v329, %v329
    %v332 = vpack.c.bf16 %v330, %v330
    %333 = vrot.lane.b32.xlu0 %v260, 126
    %v334 = vpop.permute.xlu0 %333
    %335 = vrot.lane.b32.xlu0 %v261, 126
    %v336 = vpop.permute.xlu0 %335
    %vm337 = vcmp.lt.s32.totalorder %v137, 126
    %v338 = vsel %vm337, %v334, %v336
    %v339 = vsel %vm337, %v336, %v334
    %v340 = vadd.s32 %v139, 2
    %v341 = vadd.s32 %v140, 2
    %vm342 = vcmp.ge.s32.totalorder %v340, 0
    %vm343 = vcmp.ge.s32.totalorder %v341, 0
    %vm344 = vcmp.lt.s32.totalorder %v340, 128
    %vm345 = vcmp.lt.s32.totalorder %v341, 128
    %vm346 = vmand %vm342, %vm344
    %vm347 = vmand %vm343, %vm345
    %v348 = vsel %vm346, 1, 0
    %v349 = vsel %vm347, 1, 0
    %v350 = vcvt.s32.f32 %v348
    %v351 = vcvt.s32.f32 %v349
    %v352 = vmul.f32 %v338, %v350
    %v353 = vmul.f32 %v339, %v351
    %v354 = vpack.c.bf16 %v352, %v352
    %v355 = vpack.c.bf16 %v353, %v353
    %v358 = vrot.slane %v306, 4
    %v359 = vrot.slane %v307, 4
    %v362 = vrot.slane %v331, 4
    %v363 = vrot.slane %v332, 4
    %vm364 = vcmask 1043456
    %v367 = vsel %vm364, %v283, %v358
    %v371 = vsel %vm364, %v284, %v359
    %v375 = vsel %vm364, %v308, %v362
    %v379 = vsel %vm364, %v309, %v363
    %v381 = vld [vmem:[%s7] sm:$0xf]
    %v382 = vld [vmem:[%s9] sm:$0xff]
    %384 = vset.pattern.permute.xlu0 0
    %385 = vperm.xlu0 %384, %v382
    %v386 = vpop.permute.xlu0 %385
    %vm388 = vcmask 326656
    %v390 = vsel %vm388, %v381, 0
    %v393 = vsel %vm364, %v354, 0
    %v396 = vsel %vm364, %v355, 0
    %398 = vmatprep.subr.bf16.mxu0 0
    %399 = vmatpush1.bf16.msra.mxu0 0
    %400 = vmatprep.subr.bf16.mxu0 0
    %401 = vmatpush1.bf16.msra.mxu0 0
    %402 = vmatprep.subr.bf16.mxu0 0
    %403 = vmatpush1.bf16.msra.mxu0 0
    %404 = vmatprep.subr.bf16.mxu0 0
    %405 = vmatpush1.bf16.msra.mxu0 0
    %406 = vmatprep.subr.bf16.mxu0 0
    %407 = vmatpush1.bf16.msra.mxu0 0
    %408 = vmatprep.subr.bf16.mxu0 %v396
    %409 = vmatpush1.bf16.msra.mxu0 %v393
    %410 = vmatprep.subr.bf16.mxu0 %v379
    %411 = vmatpush1.bf16.msra.mxu0 %v375
    %412 = vmatprep.subr.bf16.mxu0 %v371
    %413 = vmatpush1.bf16.msra.mxu0 %v367
    %414 = vmatprep.subr.bf16.mxu0 0
    %415 = vmatpush2.bf16.msra.mxu0 0
    %416 = vmatprep.subr.bf16.mxu0 0
    %417 = vmatpush2.bf16.msra.mxu0 0
    %418 = vmatprep.subr.bf16.mxu0 0
    %419 = vmatpush2.bf16.msra.mxu0 0
    %420 = vmatprep.subr.bf16.mxu0 0
    %421 = vmatpush2.bf16.msra.mxu0 0
    %422 = vmatprep.subr.bf16.mxu0 0
    %423 = vmatpush2.bf16.msra.mxu0 0
    %424 = vmatprep.subr.bf16.mxu0 0
    %425 = vmatpush2.bf16.msra.mxu0 0
    %426 = vmatprep.subr.bf16.mxu0 0
    %427 = vmatpush2.bf16.msra.mxu0 0
    %428 = vmatprep.subr.bf16.mxu0 0
    %429 = vmatpush2.bf16.msra.mxu0 0
    %430 = vmatprep.mubr.bf16.mxu0 0
    %431 = vmatmul.mubr.bf16.gmra.mxu0 %v390
    %v432 = vpop.f32.mrf.mxu0
    %v433 = vadd.f32 %v386, %v432
    %v434 = vpop.f32.mrf.mxu0
    %v435 = vadd.f32 %v386, %v434
    %v436 = vpop.f32.mrf.mxu0
    %v437 = vpop.f32.mrf.mxu0
    %438 = vdwg.mxu0
    %v439 = vmax.f32 %v433, 0.0
    %v440 = vmax.f32 %v435, 0.0
    %441 = vrot.lane.b32.xlu0 %v439, 2
    %v442 = vpop.permute.xlu0 %441
    %443 = vrot.lane.b32.xlu0 %v440, 2
    %v444 = vpop.permute.xlu0 %443
    %v445 = vsel %vm266, %v442, %v444
    %v446 = vsel %vm266, %v444, %v442
    %v447 = vmul.f32 %v446, %v279
    %v448 = vmul.f32 %v445, %v280
    %v449 = vpack.c.bf16 %v447, %v447
    %v450 = vpack.c.bf16 %v448, %v448
    %451 = vrot.lane.b32.xlu0 %v439, 1
    %v452 = vpop.permute.xlu0 %451
    %453 = vrot.lane.b32.xlu0 %v440, 1
    %v454 = vpop.permute.xlu0 %453
    %v455 = vsel %vm289, %v452, %v454
    %v456 = vsel %vm289, %v454, %v452
    %v457 = vmul.f32 %v456, %v302
    %v458 = vmul.f32 %v455, %v303
    %v459 = vpack.c.bf16 %v457, %v457
    %v460 = vpack.c.bf16 %v458, %v458
    %v461 = vpack.c.bf16 %v439, %v439
    %v462 = vpack.c.bf16 %v440, %v440
    %463 = vrot.lane.b32.xlu0 %v439, 127
    %v464 = vpop.permute.xlu0 %463
    %465 = vrot.lane.b32.xlu0 %v440, 127
    %v466 = vpop.permute.xlu0 %465
    %v467 = vsel %vm314, %v464, %v466
    %v468 = vsel %vm314, %v466, %v464
    %v469 = vmul.f32 %v467, %v327
    %v470 = vmul.f32 %v468, %v328
    %v471 = vpack.c.bf16 %v469, %v469
    %v472 = vpack.c.bf16 %v470, %v470
    %473 = vrot.lane.b32.xlu0 %v439, 126
    %v474 = vpop.permute.xlu0 %473
    %475 = vrot.lane.b32.xlu0 %v440, 126
    %v476 = vpop.permute.xlu0 %475
    %v477 = vsel %vm337, %v474, %v476
    %v478 = vsel %vm337, %v476, %v474
    %v479 = vmul.f32 %v477, %v350
    %v480 = vmul.f32 %v478, %v351
    %v481 = vpack.c.bf16 %v479, %v479
    %v482 = vpack.c.bf16 %v480, %v480
    %v485 = vrot.slane %v459, 4
    %v486 = vrot.slane %v460, 4
    %v489 = vrot.slane %v471, 4
    %v490 = vrot.slane %v472, 4
    %v493 = vsel %vm364, %v449, %v485
    %v497 = vsel %vm364, %v450, %v486
    %v501 = vsel %vm364, %v461, %v489
    %v505 = vsel %vm364, %v462, %v490
    %v507 = vld [vmem:[%s11] sm:$0xf]
    %v508 = vld [vmem:[%s13] sm:$0xff]
    %510 = vset.pattern.permute.xlu0 0
    %511 = vperm.xlu0 %510, %v508
    %v512 = vpop.permute.xlu0 %511
    %v515 = vsel %vm388, %v507, 0
    %v518 = vsel %vm364, %v481, 0
    %v521 = vsel %vm364, %v482, 0
    %523 = vmatprep.subr.bf16.mxu0 0
    %524 = vmatpush1.bf16.msra.mxu0 0
    %525 = vmatprep.subr.bf16.mxu0 0
    %526 = vmatpush1.bf16.msra.mxu0 0
    %527 = vmatprep.subr.bf16.mxu0 0
    %528 = vmatpush1.bf16.msra.mxu0 0
    %529 = vmatprep.subr.bf16.mxu0 0
    %530 = vmatpush1.bf16.msra.mxu0 0
    %531 = vmatprep.subr.bf16.mxu0 0
    %532 = vmatpush1.bf16.msra.mxu0 0
    %533 = vmatprep.subr.bf16.mxu0 %v521
    %534 = vmatpush1.bf16.msra.mxu0 %v518
    %535 = vmatprep.subr.bf16.mxu0 %v505
    %536 = vmatpush1.bf16.msra.mxu0 %v501
    %537 = vmatprep.subr.bf16.mxu0 %v497
    %538 = vmatpush1.bf16.msra.mxu0 %v493
    %539 = vmatprep.subr.bf16.mxu0 0
    %540 = vmatpush2.bf16.msra.mxu0 0
    %541 = vmatprep.subr.bf16.mxu0 0
    %542 = vmatpush2.bf16.msra.mxu0 0
    %543 = vmatprep.subr.bf16.mxu0 0
    %544 = vmatpush2.bf16.msra.mxu0 0
    %545 = vmatprep.subr.bf16.mxu0 0
    %546 = vmatpush2.bf16.msra.mxu0 0
    %547 = vmatprep.subr.bf16.mxu0 0
    %548 = vmatpush2.bf16.msra.mxu0 0
    %549 = vmatprep.subr.bf16.mxu0 0
    %550 = vmatpush2.bf16.msra.mxu0 0
    %551 = vmatprep.subr.bf16.mxu0 0
    %552 = vmatpush2.bf16.msra.mxu0 0
    %553 = vmatprep.subr.bf16.mxu0 0
    %554 = vmatpush2.bf16.msra.mxu0 0
    %555 = vmatprep.mubr.bf16.mxu0 0
    %556 = vmatmul.mubr.bf16.gmra.mxu0 %v515
    %v557 = vpop.f32.mrf.mxu0
    %v558 = vadd.f32 %v512, %v557
    %v559 = vpop.f32.mrf.mxu0
    %v560 = vadd.f32 %v512, %v559
    %v561 = vpop.f32.mrf.mxu0
    %v562 = vpop.f32.mrf.mxu0
    %563 = vdwg.mxu0
    %v564 = vmax.f32 %v558, 0.0
    %v565 = vmax.f32 %v560, 0.0
    %v566 = vadd.f32 %v260, %v564
    %v567 = vadd.f32 %v261, %v565
    %v569 = vrot.slane %v566, 1
    %v571 = vrot.slane %v566, 2
    %v574 = vrot.slane %v567, 1
    %v575 = vrot.slane %v567, 2
    %v576 = vrot.slane %v567, 7
    %v577 = vrot.slane %v574, 7
    %v578 = vrot.slane %v575, 7
    %v582 = vsel %vm235, %v566, %v576
    %v583 = vsel %vm235, %v569, %v577
    %v584 = vsel %vm235, %v571, %v578
    %v585 = vld [vmem:[%s15] sm:$0xff]
    %v586 = vld [vmem:[%s15 + $0x8] sm:$0xff]
    %v587 = vld [vmem:[%s15 + $0x10] sm:$0xff]
    %v588 = vld [vmem:[%s15 + $0x18] sm:$0xff]
    %v589 = vld [vmem:[%s15 + $0x20] sm:$0xff]
    %v590 = vld [vmem:[%s15 + $0x28] sm:$0xff]
    %v591 = vld [vmem:[%s15 + $0x30] sm:$0xff]
    %v592 = vld [vmem:[%s15 + $0x38] sm:$0xff]
    %v593 = vld [vmem:[%s15 + $0x40] sm:$0xff]
    %v594 = vld [vmem:[%s15 + $0x48] sm:$0xff]
    %v595 = vld [vmem:[%s15 + $0x50] sm:$0xff]
    %v596 = vld [vmem:[%s15 + $0x58] sm:$0xff]
    %v597 = vld [vmem:[%s15 + $0x60] sm:$0xff]
    %v598 = vld [vmem:[%s15 + $0x68] sm:$0xff]
    %v599 = vld [vmem:[%s15 + $0x70] sm:$0xff]
    %v600 = vld [vmem:[%s15 + $0x78] sm:$0xff]
    %v601 = vld [vmem:[%s15 + $0x80] sm:$0xff]
    %v602 = vld [vmem:[%s15 + $0x88] sm:$0xff]
    %v603 = vld [vmem:[%s15 + $0x90] sm:$0xff]
    %v604 = vld [vmem:[%s15 + $0x98] sm:$0xff]
    %v605 = vld [vmem:[%s15 + $0xa0] sm:$0xff]
    %v606 = vld [vmem:[%s15 + $0xa8] sm:$0xff]
    %v607 = vld [vmem:[%s15 + $0xb0] sm:$0xff]
    %v608 = vld [vmem:[%s15 + $0xb8] sm:$0xff]
    %v609 = vld [vmem:[%s15 + $0xc0] sm:$0xff]
    %v610 = vld [vmem:[%s15 + $0xc8] sm:$0xff]
    %v611 = vld [vmem:[%s15 + $0xd0] sm:$0xff]
    %v612 = vld [vmem:[%s15 + $0xd8] sm:$0xff]
    %v613 = vld [vmem:[%s15 + $0xe0] sm:$0xff]
    %v614 = vld [vmem:[%s15 + $0xe8] sm:$0xff]
    %v615 = vld [vmem:[%s15 + $0xf0] sm:$0xff]
    %v616 = vld [vmem:[%s15 + $0xf8] sm:$0xff]
    %v617 = vld [vmem:[%s15 + $0x100] sm:$0xff]
    %v618 = vld [vmem:[%s15 + $0x108] sm:$0xff]
    %v619 = vld [vmem:[%s15 + $0x110] sm:$0xff]
    %v620 = vld [vmem:[%s15 + $0x118] sm:$0xff]
    %v621 = vld [vmem:[%s15 + $0x120] sm:$0xff]
    %v622 = vld [vmem:[%s15 + $0x128] sm:$0xff]
    %v623 = vld [vmem:[%s15 + $0x130] sm:$0xff]
    %v624 = vld [vmem:[%s15 + $0x138] sm:$0xff]
    %v625 = vld [vmem:[%s15 + $0x140] sm:$0xff]
    %v626 = vld [vmem:[%s15 + $0x148] sm:$0xff]
    %v627 = vld [vmem:[%s15 + $0x150] sm:$0xff]
    %v628 = vld [vmem:[%s15 + $0x158] sm:$0xff]
    %v629 = vld [vmem:[%s15 + $0x160] sm:$0xff]
    %v630 = vld [vmem:[%s15 + $0x168] sm:$0xff]
    %v631 = vld [vmem:[%s15 + $0x170] sm:$0xff]
    %v632 = vld [vmem:[%s15 + $0x178] sm:$0xff]
    %v633 = vld [vmem:[%s17] sm:$0x1]
    %v635 = vlaneseq
    %v636 = vshrl.u32 %v635, 7
    %v637 = vsub.s32 0, %v636
    %v638 = vrot.slane %v633, %v637
    %640 = vmatprep.subr.mxu0 0.0
    %641 = vmatpush1.msra.mxu0 %v600
    %642 = vmatprep.subr.mxu0 0.0
    %643 = vmatpush1.msra.mxu0 %v599
    %644 = vmatprep.subr.mxu0 0.0
    %645 = vmatpush1.msra.mxu0 %v598
    %646 = vmatprep.subr.mxu0 0.0
    %647 = vmatpush1.msra.mxu0 %v597
    %648 = vmatprep.subr.mxu0 0.0
    %649 = vmatpush1.msra.mxu0 %v596
    %650 = vmatprep.subr.mxu0 0.0
    %651 = vmatpush1.msra.mxu0 %v595
    %652 = vmatprep.subr.mxu0 0.0
    %653 = vmatpush1.msra.mxu0 %v594
    %654 = vmatprep.subr.mxu0 0.0
    %655 = vmatpush1.msra.mxu0 %v593
    %656 = vmatprep.subr.mxu0 0.0
    %657 = vmatpush1.msra.mxu0 %v592
    %658 = vmatprep.subr.mxu0 0.0
    %659 = vmatpush1.msra.mxu0 %v591
    %660 = vmatprep.subr.mxu0 0.0
    %661 = vmatpush1.msra.mxu0 %v590
    %662 = vmatprep.subr.mxu0 0.0
    %663 = vmatpush1.msra.mxu0 %v589
    %664 = vmatprep.subr.mxu0 0.0
    %665 = vmatpush1.msra.mxu0 %v588
    %666 = vmatprep.subr.mxu0 0.0
    %667 = vmatpush1.msra.mxu0 %v587
    %668 = vmatprep.subr.mxu0 0.0
    %669 = vmatpush1.msra.mxu0 %v586
    %670 = vmatprep.subr.mxu0 0.0
    %671 = vmatpush1.msra.mxu0 %v585
    %672 = vmatprep.subr.mxu0 0.0
    %673 = vmatpush2.msra.mxu0 %v616
    %674 = vmatprep.subr.mxu0 0.0
    %675 = vmatpush2.msra.mxu0 %v615
    %676 = vmatprep.subr.mxu0 0.0
    %677 = vmatpush2.msra.mxu0 %v614
    %678 = vmatprep.subr.mxu0 0.0
    %679 = vmatpush2.msra.mxu0 %v613
    %680 = vmatprep.subr.mxu0 0.0
    %681 = vmatpush2.msra.mxu0 %v612
    %682 = vmatprep.subr.mxu0 0.0
    %683 = vmatpush2.msra.mxu0 %v611
    %684 = vmatprep.subr.mxu0 0.0
    %685 = vmatpush2.msra.mxu0 %v610
    %686 = vmatprep.subr.mxu0 0.0
    %687 = vmatpush2.msra.mxu0 %v609
    %688 = vmatprep.subr.mxu0 0.0
    %689 = vmatpush2.msra.mxu0 %v608
    %690 = vmatprep.subr.mxu0 0.0
    %691 = vmatpush2.msra.mxu0 %v607
    %692 = vmatprep.subr.mxu0 0.0
    %693 = vmatpush2.msra.mxu0 %v606
    %694 = vmatprep.subr.mxu0 0.0
    %695 = vmatpush2.msra.mxu0 %v605
    %696 = vmatprep.subr.mxu0 0.0
    %697 = vmatpush2.msra.mxu0 %v604
    %698 = vmatprep.subr.mxu0 0.0
    %699 = vmatpush2.msra.mxu0 %v603
    %700 = vmatprep.subr.mxu0 0.0
    %701 = vmatpush2.msra.mxu0 %v602
    %702 = vmatprep.subr.mxu0 0.0
    %703 = vmatpush2.msra.mxu0 %v601
    %704 = vmatprep.mubr.f32.mxu0 %v583
    %705 = vmatmul.mubr.f32.gmra.mxu0 %v582
    %v706 = vpop.f32.mrf.mxu0
    %v707 = vadd.f32 %v638, %v706
    %v708 = vpop.f32.mrf.mxu0
    %709 = vdwg.mxu0
    %710 = vmatprep.subr.mxu0 0.0
    %711 = vmatpush1.msra.mxu0 %v632
    %712 = vmatprep.subr.mxu0 0.0
    %713 = vmatpush1.msra.mxu0 %v631
    %714 = vmatprep.subr.mxu0 0.0
    %715 = vmatpush1.msra.mxu0 %v630
    %716 = vmatprep.subr.mxu0 0.0
    %717 = vmatpush1.msra.mxu0 %v629
    %718 = vmatprep.subr.mxu0 0.0
    %719 = vmatpush1.msra.mxu0 %v628
    %720 = vmatprep.subr.mxu0 0.0
    %721 = vmatpush1.msra.mxu0 %v627
    %722 = vmatprep.subr.mxu0 0.0
    %723 = vmatpush1.msra.mxu0 %v626
    %724 = vmatprep.subr.mxu0 0.0
    %725 = vmatpush1.msra.mxu0 %v625
    %726 = vmatprep.subr.mxu0 0.0
    %727 = vmatpush1.msra.mxu0 %v624
    %728 = vmatprep.subr.mxu0 0.0
    %729 = vmatpush1.msra.mxu0 %v623
    %730 = vmatprep.subr.mxu0 0.0
    %731 = vmatpush1.msra.mxu0 %v622
    %732 = vmatprep.subr.mxu0 0.0
    %733 = vmatpush1.msra.mxu0 %v621
    %734 = vmatprep.subr.mxu0 0.0
    %735 = vmatpush1.msra.mxu0 %v620
    %736 = vmatprep.subr.mxu0 0.0
    %737 = vmatpush1.msra.mxu0 %v619
    %738 = vmatprep.subr.mxu0 0.0
    %739 = vmatpush1.msra.mxu0 %v618
    %740 = vmatprep.subr.mxu0 0.0
    %741 = vmatpush1.msra.mxu0 %v617
    %742 = vmatprep.subr.mxu0 0.0
    %743 = vmatpush2.msra.mxu0 0.0
    %744 = vmatprep.subr.mxu0 0.0
    %745 = vmatpush2.msra.mxu0 0.0
    %746 = vmatprep.subr.mxu0 0.0
    %747 = vmatpush2.msra.mxu0 0.0
    %748 = vmatprep.subr.mxu0 0.0
    %749 = vmatpush2.msra.mxu0 0.0
    %750 = vmatprep.subr.mxu0 0.0
    %751 = vmatpush2.msra.mxu0 0.0
    %752 = vmatprep.subr.mxu0 0.0
    %753 = vmatpush2.msra.mxu0 0.0
    %754 = vmatprep.subr.mxu0 0.0
    %755 = vmatpush2.msra.mxu0 0.0
    %756 = vmatprep.subr.mxu0 0.0
    %757 = vmatpush2.msra.mxu0 0.0
    %758 = vmatprep.subr.mxu0 0.0
    %759 = vmatpush2.msra.mxu0 0.0
    %760 = vmatprep.subr.mxu0 0.0
    %761 = vmatpush2.msra.mxu0 0.0
    %762 = vmatprep.subr.mxu0 0.0
    %763 = vmatpush2.msra.mxu0 0.0
    %764 = vmatprep.subr.mxu0 0.0
    %765 = vmatpush2.msra.mxu0 0.0
    %766 = vmatprep.subr.mxu0 0.0
    %767 = vmatpush2.msra.mxu0 0.0
    %768 = vmatprep.subr.mxu0 0.0
    %769 = vmatpush2.msra.mxu0 0.0
    %770 = vmatprep.subr.mxu0 0.0
    %771 = vmatpush2.msra.mxu0 0.0
    %772 = vmatprep.subr.mxu0 0.0
    %773 = vmatpush2.msra.mxu0 0.0
    %774 = vmatprep.mubr.f32.mxu0 0.0
    %775 = vmatmul.mubr.f32.gmra.mxu0 %v584
    %v776 = vpop.f32.mrf.mxu0
    %v777 = vadd.f32 %v707, %v776
    %v778 = vpop.f32.mrf.mxu0
    %779 = vdwg.mxu0
    %v780 = vmax.f32 %v777, 0.0
    %v781 = vld [vmem:[%s19] sm:$0xff]
    %v782 = vld [vmem:[%s19 + $0x8] sm:$0xff]
    %v783 = vld [vmem:[%s19 + $0x10] sm:$0xff]
    %v784 = vld [vmem:[%s19 + $0x18] sm:$0xff]
    %v785 = vld [vmem:[%s21] sm:$0x1]
    %v787 = vlaneseq
    %v788 = vshrl.u32 %v787, 7
    %v789 = vsub.s32 0, %v788
    %v790 = vrot.slane %v785, %v789
    %vm792 = vcmask 261120
    %v794 = vsel %vm792, %v780, 0
    %796 = vmatprep.subr.mxu0 0.0
    %797 = vmatpush1.msra.mxu0 0.0
    %798 = vmatprep.subr.mxu0 0.0
    %799 = vmatpush1.msra.mxu0 0.0
    %800 = vmatprep.subr.mxu0 0.0
    %801 = vmatpush1.msra.mxu0 0.0
    %802 = vmatprep.subr.mxu0 0.0
    %803 = vmatpush1.msra.mxu0 0.0
    %804 = vmatprep.subr.mxu0 0.0
    %805 = vmatpush1.msra.mxu0 0.0
    %806 = vmatprep.subr.mxu0 0.0
    %807 = vmatpush1.msra.mxu0 0.0
    %808 = vmatprep.subr.mxu0 0.0
    %809 = vmatpush1.msra.mxu0 0.0
    %810 = vmatprep.subr.mxu0 0.0
    %811 = vmatpush1.msra.mxu0 0.0
    %812 = vmatprep.subr.mxu0 0.0
    %813 = vmatpush1.msra.mxu0 0.0
    %814 = vmatprep.subr.mxu0 0.0
    %815 = vmatpush1.msra.mxu0 0.0
    %816 = vmatprep.subr.mxu0 0.0
    %817 = vmatpush1.msra.mxu0 0.0
    %818 = vmatprep.subr.mxu0 0.0
    %819 = vmatpush1.msra.mxu0 0.0
    %820 = vmatprep.subr.mxu0 0.0
    %821 = vmatpush1.msra.mxu0 %v784
    %822 = vmatprep.subr.mxu0 0.0
    %823 = vmatpush1.msra.mxu0 %v783
    %824 = vmatprep.subr.mxu0 0.0
    %825 = vmatpush1.msra.mxu0 %v782
    %826 = vmatprep.subr.mxu0 0.0
    %827 = vmatpush1.msra.mxu0 %v781
    %828 = vmatprep.subr.mxu0 0.0
    %829 = vmatpush2.msra.mxu0 0.0
    %830 = vmatprep.subr.mxu0 0.0
    %831 = vmatpush2.msra.mxu0 0.0
    %832 = vmatprep.subr.mxu0 0.0
    %833 = vmatpush2.msra.mxu0 0.0
    %834 = vmatprep.subr.mxu0 0.0
    %835 = vmatpush2.msra.mxu0 0.0
    %836 = vmatprep.subr.mxu0 0.0
    %837 = vmatpush2.msra.mxu0 0.0
    %838 = vmatprep.subr.mxu0 0.0
    %839 = vmatpush2.msra.mxu0 0.0
    %840 = vmatprep.subr.mxu0 0.0
    %841 = vmatpush2.msra.mxu0 0.0
    %842 = vmatprep.subr.mxu0 0.0
    %843 = vmatpush2.msra.mxu0 0.0
    %844 = vmatprep.subr.mxu0 0.0
    %845 = vmatpush2.msra.mxu0 0.0
    %846 = vmatprep.subr.mxu0 0.0
    %847 = vmatpush2.msra.mxu0 0.0
    %848 = vmatprep.subr.mxu0 0.0
    %849 = vmatpush2.msra.mxu0 0.0
    %850 = vmatprep.subr.mxu0 0.0
    %851 = vmatpush2.msra.mxu0 0.0
    %852 = vmatprep.subr.mxu0 0.0
    %853 = vmatpush2.msra.mxu0 0.0
    %854 = vmatprep.subr.mxu0 0.0
    %855 = vmatpush2.msra.mxu0 0.0
    %856 = vmatprep.subr.mxu0 0.0
    %857 = vmatpush2.msra.mxu0 0.0
    %858 = vmatprep.subr.mxu0 0.0
    %859 = vmatpush2.msra.mxu0 0.0
    %860 = vmatprep.mubr.f32.mxu0 0.0
    %861 = vmatmul.mubr.f32.gmra.mxu0 %v794
    %v862 = vpop.f32.mrf.mxu0
    %v863 = vadd.f32 %v790, %v862
    %v864 = vpop.f32.mrf.mxu0
    %865 = vdwg.mxu0
    %v866 = vmax.f32 %v863, 0.0
    %v867 = vld [vmem:[%s23] sm:$0xff]
    %v868 = vld [vmem:[%s23 + $0x8] sm:$0xff]
    %v869 = vld [vmem:[%s23 + $0x10] sm:$0xff]
    %v870 = vld [vmem:[%s23 + $0x18] sm:$0xff]
    %v871 = vld [vmem:[%s23 + $0x20] sm:$0xff]
    %v872 = vld [vmem:[%s23 + $0x28] sm:$0xff]
    %v873 = vld [vmem:[%s23 + $0x30] sm:$0xff]
    %v874 = vld [vmem:[%s23 + $0x38] sm:$0xff]
    %v875 = vld [vmem:[%s23 + $0x40] sm:$0xff]
    %v876 = vld [vmem:[%s23 + $0x48] sm:$0xff]
    %v877 = vld [vmem:[%s23 + $0x50] sm:$0xff]
    %v878 = vld [vmem:[%s23 + $0x58] sm:$0xff]
    %v879 = vld [vmem:[%s25] sm:$0x7]
    %v881 = vlaneseq
    %v882 = vshrl.u32 %v881, 7
    %v883 = vsub.s32 0, %v882
    %v884 = vrot.slane %v879, %v883
    %v885 = vlaneseq
    %v886 = vshrl.u32 %v885, 7
    %v887 = vsub.s32 1, %v886
    %v888 = vrot.slane %v879, %v887
    %v889 = vlaneseq
    %v890 = vshrl.u32 %v889, 7
    %v891 = vsub.s32 2, %v890
    %v892 = vrot.slane %v879, %v891
    %v897 = vsel %vm792, %v866, 0
    %899 = vmatprep.subr.mxu0 0.0
    %900 = vmatpush1.msra.mxu0 0.0
    %901 = vmatprep.subr.mxu0 0.0
    %902 = vmatpush1.msra.mxu0 0.0
    %903 = vmatprep.subr.mxu0 0.0
    %904 = vmatpush1.msra.mxu0 0.0
    %905 = vmatprep.subr.mxu0 0.0
    %906 = vmatpush1.msra.mxu0 0.0
    %907 = vmatprep.subr.mxu0 0.0
    %908 = vmatpush1.msra.mxu0 0.0
    %909 = vmatprep.subr.mxu0 0.0
    %910 = vmatpush1.msra.mxu0 0.0
    %911 = vmatprep.subr.mxu0 0.0
    %912 = vmatpush1.msra.mxu0 0.0
    %913 = vmatprep.subr.mxu0 0.0
    %914 = vmatpush1.msra.mxu0 0.0
    %915 = vmatprep.subr.mxu0 0.0
    %916 = vmatpush1.msra.mxu0 0.0
    %917 = vmatprep.subr.mxu0 0.0
    %918 = vmatpush1.msra.mxu0 0.0
    %919 = vmatprep.subr.mxu0 0.0
    %920 = vmatpush1.msra.mxu0 0.0
    %921 = vmatprep.subr.mxu0 0.0
    %922 = vmatpush1.msra.mxu0 0.0
    %923 = vmatprep.subr.mxu0 %v877
    %924 = vmatpush1.msra.mxu0 %v876
    %925 = vmatprep.subr.mxu0 %v874
    %926 = vmatpush1.msra.mxu0 %v873
    %927 = vmatprep.subr.mxu0 %v871
    %928 = vmatpush1.msra.mxu0 %v870
    %929 = vmatprep.subr.mxu0 %v868
    %930 = vmatpush1.msra.mxu0 %v867
    %931 = vmatprep.subr.mxu0 0.0
    %932 = vmatpush2.msra.mxu0 0.0
    %933 = vmatprep.subr.mxu0 0.0
    %934 = vmatpush2.msra.mxu0 0.0
    %935 = vmatprep.subr.mxu0 0.0
    %936 = vmatpush2.msra.mxu0 0.0
    %937 = vmatprep.subr.mxu0 0.0
    %938 = vmatpush2.msra.mxu0 0.0
    %939 = vmatprep.subr.mxu0 0.0
    %940 = vmatpush2.msra.mxu0 0.0
    %941 = vmatprep.subr.mxu0 0.0
    %942 = vmatpush2.msra.mxu0 0.0
    %943 = vmatprep.subr.mxu0 0.0
    %944 = vmatpush2.msra.mxu0 0.0
    %945 = vmatprep.subr.mxu0 0.0
    %946 = vmatpush2.msra.mxu0 0.0
    %947 = vmatprep.subr.mxu0 0.0
    %948 = vmatpush2.msra.mxu0 0.0
    %949 = vmatprep.subr.mxu0 0.0
    %950 = vmatpush2.msra.mxu0 0.0
    %951 = vmatprep.subr.mxu0 0.0
    %952 = vmatpush2.msra.mxu0 0.0
    %953 = vmatprep.subr.mxu0 0.0
    %954 = vmatpush2.msra.mxu0 0.0
    %955 = vmatprep.subr.mxu0 0.0
    %956 = vmatpush2.msra.mxu0 0.0
    %957 = vmatprep.subr.mxu0 0.0
    %958 = vmatpush2.msra.mxu0 0.0
    %959 = vmatprep.subr.mxu0 0.0
    %960 = vmatpush2.msra.mxu0 0.0
    %961 = vmatprep.subr.mxu0 0.0
    %962 = vmatpush2.msra.mxu0 0.0
    %963 = vmatprep.mubr.f32.mxu0 0.0
    %964 = vmatmul.mubr.f32.gmra.mxu0 %v897
    %v965 = vpop.f32.mrf.mxu0
    %v966 = vadd.f32 %v884, %v965
    %v967 = vpop.f32.mrf.mxu0
    %v968 = vadd.f32 %v888, %v967
    %969 = vdwg.mxu0
    %970 = vmatprep.subr.mxu0 0.0
    %971 = vmatpush1.msra.mxu0 0.0
    %972 = vmatprep.subr.mxu0 0.0
    %973 = vmatpush1.msra.mxu0 0.0
    %974 = vmatprep.subr.mxu0 0.0
    %975 = vmatpush1.msra.mxu0 0.0
    %976 = vmatprep.subr.mxu0 0.0
    %977 = vmatpush1.msra.mxu0 0.0
    %978 = vmatprep.subr.mxu0 0.0
    %979 = vmatpush1.msra.mxu0 0.0
    %980 = vmatprep.subr.mxu0 0.0
    %981 = vmatpush1.msra.mxu0 0.0
    %982 = vmatprep.subr.mxu0 0.0
    %983 = vmatpush1.msra.mxu0 0.0
    %984 = vmatprep.subr.mxu0 0.0
    %985 = vmatpush1.msra.mxu0 0.0
    %986 = vmatprep.subr.mxu0 0.0
    %987 = vmatpush1.msra.mxu0 0.0
    %988 = vmatprep.subr.mxu0 0.0
    %989 = vmatpush1.msra.mxu0 0.0
    %990 = vmatprep.subr.mxu0 0.0
    %991 = vmatpush1.msra.mxu0 0.0
    %992 = vmatprep.subr.mxu0 0.0
    %993 = vmatpush1.msra.mxu0 0.0
    %994 = vmatprep.subr.mxu0 0.0
    %995 = vmatpush1.msra.mxu0 %v878
    %996 = vmatprep.subr.mxu0 0.0
    %997 = vmatpush1.msra.mxu0 %v875
    %998 = vmatprep.subr.mxu0 0.0
    %999 = vmatpush1.msra.mxu0 %v872
    %1000 = vmatprep.subr.mxu0 0.0
    %1001 = vmatpush1.msra.mxu0 %v869
    %1002 = vmatprep.subr.mxu0 0.0
    %1003 = vmatpush2.msra.mxu0 0.0
    %1004 = vmatprep.subr.mxu0 0.0
    %1005 = vmatpush2.msra.mxu0 0.0
    %1006 = vmatprep.subr.mxu0 0.0
    %1007 = vmatpush2.msra.mxu0 0.0
    %1008 = vmatprep.subr.mxu0 0.0
    %1009 = vmatpush2.msra.mxu0 0.0
    %1010 = vmatprep.subr.mxu0 0.0
    %1011 = vmatpush2.msra.mxu0 0.0
    %1012 = vmatprep.subr.mxu0 0.0
    %1013 = vmatpush2.msra.mxu0 0.0
    %1014 = vmatprep.subr.mxu0 0.0
    %1015 = vmatpush2.msra.mxu0 0.0
    %1016 = vmatprep.subr.mxu0 0.0
    %1017 = vmatpush2.msra.mxu0 0.0
    %1018 = vmatprep.subr.mxu0 0.0
    %1019 = vmatpush2.msra.mxu0 0.0
    %1020 = vmatprep.subr.mxu0 0.0
    %1021 = vmatpush2.msra.mxu0 0.0
    %1022 = vmatprep.subr.mxu0 0.0
    %1023 = vmatpush2.msra.mxu0 0.0
    %1024 = vmatprep.subr.mxu0 0.0
    %1025 = vmatpush2.msra.mxu0 0.0
    %1026 = vmatprep.subr.mxu0 0.0
    %1027 = vmatpush2.msra.mxu0 0.0
    %1028 = vmatprep.subr.mxu0 0.0
    %1029 = vmatpush2.msra.mxu0 0.0
    %1030 = vmatprep.subr.mxu0 0.0
    %1031 = vmatpush2.msra.mxu0 0.0
    %1032 = vmatprep.subr.mxu0 0.0
    %1033 = vmatpush2.msra.mxu0 0.0
    %1034 = vmatprep.mubr.f32.mxu0 0.0
    %1035 = vmatmul.mubr.f32.gmra.mxu0 %v897
    %v1036 = vpop.f32.mrf.mxu0
    %v1037 = vadd.f32 %v892, %v1036
    %v1038 = vpop.f32.mrf.mxu0
    %1039 = vdwg.mxu0
    %v1041 = vrot.slane %v966, 1
    %v1044 = vrot.slane %v968, 1
    %v1046 = vrot.slane %v1037, 1
    %v1047 = vrot.slane %v968, 7
    %v1048 = vrot.slane %v1044, 7
    %v1051 = vrot.slane %v1037, 6
    %v1052 = vrot.slane %v1046, 6
    %v1055 = vsel %vm235, %v966, %v1047
    %v1056 = vsel %vm235, %v1041, %v1048
    %v1057 = vsel %vm256, %v1055, %v1051
    %v1058 = vsel %vm256, %v1056, %v1052
    %v1059 = vsel %vm259, %v1057, 0.0
    %v1060 = vsel %vm259, %v1058, 0.0
    %1061 = vrot.lane.b32.xlu0 %v1059, 1
    %v1062 = vpop.permute.xlu0 %1061
    %1063 = vrot.lane.b32.xlu0 %v1060, 1
    %v1064 = vpop.permute.xlu0 %1063
    %v1065 = vsel %vm289, %v1062, %v1064
    %v1066 = vsel %vm289, %v1064, %v1062
    %v1067 = vmul.f32 %v1066, %v302
    %v1068 = vmul.f32 %v1065, %v303
    %v1069 = vpack.c.bf16 %v1067, %v1067
    %v1070 = vpack.c.bf16 %v1068, %v1068
    %v1071 = vpack.c.bf16 %v1059, %v1059
    %v1072 = vpack.c.bf16 %v1060, %v1060
    %1073 = vrot.lane.b32.xlu0 %v1059, 127
    %v1074 = vpop.permute.xlu0 %1073
    %1075 = vrot.lane.b32.xlu0 %v1060, 127
    %v1076 = vpop.permute.xlu0 %1075
    %v1077 = vsel %vm314, %v1074, %v1076
    %v1078 = vsel %vm314, %v1076, %v1074
    %v1079 = vmul.f32 %v1077, %v327
    %v1080 = vmul.f32 %v1078, %v328
    %v1081 = vpack.c.bf16 %v1079, %v1079
    %v1082 = vpack.c.bf16 %v1080, %v1080
    %v1085 = vrot.slane %v1071, 4
    %v1086 = vrot.slane %v1072, 4
    %v1089 = vsel %vm364, %v1069, %v1085
    %v1093 = vsel %vm364, %v1070, %v1086
    %v1095 = vld [vmem:[%s27] sm:$0xf]
    %v1096 = vld [vmem:[%s29] sm:$0xff]
    %1098 = vset.pattern.permute.xlu0 0
    %1099 = vperm.xlu0 %1098, %v1096
    %v1100 = vpop.permute.xlu0 %1099
    %vm1102 = vcmask 195584
    %v1104 = vsel %vm1102, %v1095, 0
    %v1107 = vsel %vm364, %v1081, 0
    %v1110 = vsel %vm364, %v1082, 0
    %1112 = vmatprep.subr.bf16.mxu0 0
    %1113 = vmatpush1.bf16.msra.mxu0 0
    %1114 = vmatprep.subr.bf16.mxu0 0
    %1115 = vmatpush1.bf16.msra.mxu0 0
    %1116 = vmatprep.subr.bf16.mxu0 0
    %1117 = vmatpush1.bf16.msra.mxu0 0
    %1118 = vmatprep.subr.bf16.mxu0 0
    %1119 = vmatpush1.bf16.msra.mxu0 0
    %1120 = vmatprep.subr.bf16.mxu0 0
    %1121 = vmatpush1.bf16.msra.mxu0 0
    %1122 = vmatprep.subr.bf16.mxu0 0
    %1123 = vmatpush1.bf16.msra.mxu0 0
    %1124 = vmatprep.subr.bf16.mxu0 %v1110
    %1125 = vmatpush1.bf16.msra.mxu0 %v1107
    %1126 = vmatprep.subr.bf16.mxu0 %v1093
    %1127 = vmatpush1.bf16.msra.mxu0 %v1089
    %1128 = vmatprep.subr.bf16.mxu0 0
    %1129 = vmatpush2.bf16.msra.mxu0 0
    %1130 = vmatprep.subr.bf16.mxu0 0
    %1131 = vmatpush2.bf16.msra.mxu0 0
    %1132 = vmatprep.subr.bf16.mxu0 0
    %1133 = vmatpush2.bf16.msra.mxu0 0
    %1134 = vmatprep.subr.bf16.mxu0 0
    %1135 = vmatpush2.bf16.msra.mxu0 0
    %1136 = vmatprep.subr.bf16.mxu0 0
    %1137 = vmatpush2.bf16.msra.mxu0 0
    %1138 = vmatprep.subr.bf16.mxu0 0
    %1139 = vmatpush2.bf16.msra.mxu0 0
    %1140 = vmatprep.subr.bf16.mxu0 0
    %1141 = vmatpush2.bf16.msra.mxu0 0
    %1142 = vmatprep.subr.bf16.mxu0 0
    %1143 = vmatpush2.bf16.msra.mxu0 0
    %1144 = vmatprep.mubr.bf16.mxu0 0
    %1145 = vmatmul.mubr.bf16.gmra.mxu0 %v1104
    %v1146 = vpop.f32.mrf.mxu0
    %v1147 = vadd.f32 %v1100, %v1146
    %v1148 = vpop.f32.mrf.mxu0
    %v1149 = vadd.f32 %v1100, %v1148
    %v1150 = vpop.f32.mrf.mxu0
    %v1151 = vpop.f32.mrf.mxu0
    %1152 = vdwg.mxu0
    %v1153 = vmax.f32 %v1147, 0.0
    %v1154 = vmax.f32 %v1149, 0.0
    %1155 = vrot.lane.b32.xlu0 %v1153, 1
    %v1156 = vpop.permute.xlu0 %1155
    %1157 = vrot.lane.b32.xlu0 %v1154, 1
    %v1158 = vpop.permute.xlu0 %1157
    %v1159 = vsel %vm289, %v1156, %v1158
    %v1160 = vsel %vm289, %v1158, %v1156
    %v1161 = vmul.f32 %v1160, %v302
    %v1162 = vmul.f32 %v1159, %v303
    %v1163 = vpack.c.bf16 %v1161, %v1161
    %v1164 = vpack.c.bf16 %v1162, %v1162
    %v1165 = vpack.c.bf16 %v1153, %v1153
    %v1166 = vpack.c.bf16 %v1154, %v1154
    %1167 = vrot.lane.b32.xlu0 %v1153, 127
    %v1168 = vpop.permute.xlu0 %1167
    %1169 = vrot.lane.b32.xlu0 %v1154, 127
    %v1170 = vpop.permute.xlu0 %1169
    %v1171 = vsel %vm314, %v1168, %v1170
    %v1172 = vsel %vm314, %v1170, %v1168
    %v1173 = vmul.f32 %v1171, %v327
    %v1174 = vmul.f32 %v1172, %v328
    %v1175 = vpack.c.bf16 %v1173, %v1173
    %v1176 = vpack.c.bf16 %v1174, %v1174
    %v1179 = vrot.slane %v1165, 4
    %v1180 = vrot.slane %v1166, 4
    %v1183 = vsel %vm364, %v1163, %v1179
    %v1187 = vsel %vm364, %v1164, %v1180
    %v1189 = vld [vmem:[%s31] sm:$0xf]
    %v1190 = vld [vmem:[%s33] sm:$0xff]
    %1192 = vset.pattern.permute.xlu0 0
    %1193 = vperm.xlu0 %1192, %v1190
    %v1194 = vpop.permute.xlu0 %1193
    %v1197 = vsel %vm1102, %v1189, 0
    %v1200 = vsel %vm364, %v1175, 0
    %v1203 = vsel %vm364, %v1176, 0
    %1205 = vmatprep.subr.bf16.mxu0 0
    %1206 = vmatpush1.bf16.msra.mxu0 0
    %1207 = vmatprep.subr.bf16.mxu0 0
    %1208 = vmatpush1.bf16.msra.mxu0 0
    %1209 = vmatprep.subr.bf16.mxu0 0
    %1210 = vmatpush1.bf16.msra.mxu0 0
    %1211 = vmatprep.subr.bf16.mxu0 0
    %1212 = vmatpush1.bf16.msra.mxu0 0
    %1213 = vmatprep.subr.bf16.mxu0 0
    %1214 = vmatpush1.bf16.msra.mxu0 0
    %1215 = vmatprep.subr.bf16.mxu0 0
    %1216 = vmatpush1.bf16.msra.mxu0 0
    %1217 = vmatprep.subr.bf16.mxu0 %v1203
    %1218 = vmatpush1.bf16.msra.mxu0 %v1200
    %1219 = vmatprep.subr.bf16.mxu0 %v1187
    %1220 = vmatpush1.bf16.msra.mxu0 %v1183
    %1221 = vmatprep.subr.bf16.mxu0 0
    %1222 = vmatpush2.bf16.msra.mxu0 0
    %1223 = vmatprep.subr.bf16.mxu0 0
    %1224 = vmatpush2.bf16.msra.mxu0 0
    %1225 = vmatprep.subr.bf16.mxu0 0
    %1226 = vmatpush2.bf16.msra.mxu0 0
    %1227 = vmatprep.subr.bf16.mxu0 0
    %1228 = vmatpush2.bf16.msra.mxu0 0
    %1229 = vmatprep.subr.bf16.mxu0 0
    %1230 = vmatpush2.bf16.msra.mxu0 0
    %1231 = vmatprep.subr.bf16.mxu0 0
    %1232 = vmatpush2.bf16.msra.mxu0 0
    %1233 = vmatprep.subr.bf16.mxu0 0
    %1234 = vmatpush2.bf16.msra.mxu0 0
    %1235 = vmatprep.subr.bf16.mxu0 0
    %1236 = vmatpush2.bf16.msra.mxu0 0
    %1237 = vmatprep.mubr.bf16.mxu0 0
    %1238 = vmatmul.mubr.bf16.gmra.mxu0 %v1197
    %v1239 = vpop.f32.mrf.mxu0
    %v1240 = vadd.f32 %v1194, %v1239
    %v1241 = vpop.f32.mrf.mxu0
    %v1242 = vadd.f32 %v1194, %v1241
    %v1243 = vpop.f32.mrf.mxu0
    %v1244 = vpop.f32.mrf.mxu0
    %1245 = vdwg.mxu0
    %v1246 = vadd.f32 %v1059, %v1240
    %v1247 = vadd.f32 %v1060, %v1242
    %1248 = vrot.lane.b32.xlu0 %v1246, 2
    %v1249 = vpop.permute.xlu0 %1248
    %1250 = vrot.lane.b32.xlu0 %v1247, 2
    %v1251 = vpop.permute.xlu0 %1250
    %v1252 = vsel %vm266, %v1249, %v1251
    %v1253 = vsel %vm266, %v1251, %v1249
    %v1254 = vmul.f32 %v1253, %v279
    %v1255 = vmul.f32 %v1252, %v280
    %v1256 = vpack.c.bf16 %v1254, %v1254
    %v1257 = vpack.c.bf16 %v1255, %v1255
    %v1258 = vpack.c.bf16 %v1246, %v1246
    %v1259 = vpack.c.bf16 %v1247, %v1247
    %1260 = vrot.lane.b32.xlu0 %v1246, 126
    %v1261 = vpop.permute.xlu0 %1260
    %1262 = vrot.lane.b32.xlu0 %v1247, 126
    %v1263 = vpop.permute.xlu0 %1262
    %v1264 = vsel %vm337, %v1261, %v1263
    %v1265 = vsel %vm337, %v1263, %v1261
    %v1266 = vmul.f32 %v1264, %v350
    %v1267 = vmul.f32 %v1265, %v351
    %v1268 = vpack.c.bf16 %v1266, %v1266
    %v1269 = vpack.c.bf16 %v1267, %v1267
    %v1272 = vrot.slane %v1258, 4
    %v1273 = vrot.slane %v1259, 4
    %v1276 = vsel %vm364, %v1256, %v1272
    %v1280 = vsel %vm364, %v1257, %v1273
    %v1282 = vld [vmem:[%s35] sm:$0xf]
    %v1283 = vld [vmem:[%s37] sm:$0xff]
    %1285 = vset.pattern.permute.xlu0 0
    %1286 = vperm.xlu0 %1285, %v1283
    %v1287 = vpop.permute.xlu0 %1286
    %v1290 = vsel %vm1102, %v1282, 0
    %v1293 = vsel %vm364, %v1268, 0
    %v1296 = vsel %vm364, %v1269, 0
    %1298 = vmatprep.subr.bf16.mxu0 0
    %1299 = vmatpush1.bf16.msra.mxu0 0
    %1300 = vmatprep.subr.bf16.mxu0 0
    %1301 = vmatpush1.bf16.msra.mxu0 0
    %1302 = vmatprep.subr.bf16.mxu0 0
    %1303 = vmatpush1.bf16.msra.mxu0 0
    %1304 = vmatprep.subr.bf16.mxu0 0
    %1305 = vmatpush1.bf16.msra.mxu0 0
    %1306 = vmatprep.subr.bf16.mxu0 0
    %1307 = vmatpush1.bf16.msra.mxu0 0
    %1308 = vmatprep.subr.bf16.mxu0 0
    %1309 = vmatpush1.bf16.msra.mxu0 0
    %1310 = vmatprep.subr.bf16.mxu0 %v1296
    %1311 = vmatpush1.bf16.msra.mxu0 %v1293
    %1312 = vmatprep.subr.bf16.mxu0 %v1280
    %1313 = vmatpush1.bf16.msra.mxu0 %v1276
    %1314 = vmatprep.subr.bf16.mxu0 0
    %1315 = vmatpush2.bf16.msra.mxu0 0
    %1316 = vmatprep.subr.bf16.mxu0 0
    %1317 = vmatpush2.bf16.msra.mxu0 0
    %1318 = vmatprep.subr.bf16.mxu0 0
    %1319 = vmatpush2.bf16.msra.mxu0 0
    %1320 = vmatprep.subr.bf16.mxu0 0
    %1321 = vmatpush2.bf16.msra.mxu0 0
    %1322 = vmatprep.subr.bf16.mxu0 0
    %1323 = vmatpush2.bf16.msra.mxu0 0
    %1324 = vmatprep.subr.bf16.mxu0 0
    %1325 = vmatpush2.bf16.msra.mxu0 0
    %1326 = vmatprep.subr.bf16.mxu0 0
    %1327 = vmatpush2.bf16.msra.mxu0 0
    %1328 = vmatprep.subr.bf16.mxu0 0
    %1329 = vmatpush2.bf16.msra.mxu0 0
    %1330 = vmatprep.mubr.bf16.mxu0 0
    %1331 = vmatmul.mubr.bf16.gmra.mxu0 %v1290
    %v1332 = vpop.f32.mrf.mxu0
    %v1333 = vadd.f32 %v1287, %v1332
    %v1334 = vpop.f32.mrf.mxu0
    %v1335 = vadd.f32 %v1287, %v1334
    %v1336 = vpop.f32.mrf.mxu0
    %v1337 = vpop.f32.mrf.mxu0
    %1338 = vdwg.mxu0
    %v1339 = vmax.f32 %v1333, 0.0
    %v1340 = vmax.f32 %v1335, 0.0
    %1341 = vrot.lane.b32.xlu0 %v1339, 2
    %v1342 = vpop.permute.xlu0 %1341
    %1343 = vrot.lane.b32.xlu0 %v1340, 2
    %v1344 = vpop.permute.xlu0 %1343
    %v1345 = vsel %vm266, %v1342, %v1344
    %v1346 = vsel %vm266, %v1344, %v1342
    %v1347 = vmul.f32 %v1346, %v279
    %v1348 = vmul.f32 %v1345, %v280
    %v1349 = vpack.c.bf16 %v1347, %v1347
    %v1350 = vpack.c.bf16 %v1348, %v1348
    %v1351 = vpack.c.bf16 %v1339, %v1339
    %v1352 = vpack.c.bf16 %v1340, %v1340
    %1353 = vrot.lane.b32.xlu0 %v1339, 126
    %v1354 = vpop.permute.xlu0 %1353
    %1355 = vrot.lane.b32.xlu0 %v1340, 126
    %v1356 = vpop.permute.xlu0 %1355
    %v1357 = vsel %vm337, %v1354, %v1356
    %v1358 = vsel %vm337, %v1356, %v1354
    %v1359 = vmul.f32 %v1357, %v350
    %v1360 = vmul.f32 %v1358, %v351
    %v1361 = vpack.c.bf16 %v1359, %v1359
    %v1362 = vpack.c.bf16 %v1360, %v1360
    %v1365 = vrot.slane %v1351, 4
    %v1366 = vrot.slane %v1352, 4
    %v1369 = vsel %vm364, %v1349, %v1365
    %v1373 = vsel %vm364, %v1350, %v1366
    %v1375 = vld [vmem:[%s39] sm:$0xf]
    %v1376 = vld [vmem:[%s39 + $0x4] sm:$0xf]
    %v1377 = vld [vmem:[%s41] sm:$0xff]
    %v1378 = vld [vmem:[%s41 + $0x8] sm:$0xff]
    %1380 = vset.pattern.permute.xlu0 0
    %1381 = vperm.xlu0 %1380, %v1377
    %v1382 = vpop.permute.xlu0 %1381
    %1385 = vset.pattern.permute.xlu0 0
    %1386 = vperm.xlu0 %1385, %v1378
    %v1387 = vpop.permute.xlu0 %1386
    %v1391 = vunpack.c.l.b16 %v1375
    %v1392 = vunpack.c.l.b16 %v1376
    %v1393 = vpack.c.b16 %v1392, %v1391
    %v1395 = vsel %vm1102, %v1393, 0
    %v1398 = vsel %vm364, %v1361, 0
    %v1401 = vsel %vm364, %v1362, 0
    %1403 = vmatprep.subr.bf16.mxu0 0
    %1404 = vmatpush1.bf16.msra.mxu0 0
    %1405 = vmatprep.subr.bf16.mxu0 0
    %1406 = vmatpush1.bf16.msra.mxu0 0
    %1407 = vmatprep.subr.bf16.mxu0 0
    %1408 = vmatpush1.bf16.msra.mxu0 0
    %1409 = vmatprep.subr.bf16.mxu0 0
    %1410 = vmatpush1.bf16.msra.mxu0 0
    %1411 = vmatprep.subr.bf16.mxu0 0
    %1412 = vmatpush1.bf16.msra.mxu0 0
    %1413 = vmatprep.subr.bf16.mxu0 0
    %1414 = vmatpush1.bf16.msra.mxu0 0
    %1415 = vmatprep.subr.bf16.mxu0 %v1401
    %1416 = vmatpush1.bf16.msra.mxu0 %v1398
    %1417 = vmatprep.subr.bf16.mxu0 %v1373
    %1418 = vmatpush1.bf16.msra.mxu0 %v1369
    %1419 = vmatprep.subr.bf16.mxu0 0
    %1420 = vmatpush2.bf16.msra.mxu0 0
    %1421 = vmatprep.subr.bf16.mxu0 0
    %1422 = vmatpush2.bf16.msra.mxu0 0
    %1423 = vmatprep.subr.bf16.mxu0 0
    %1424 = vmatpush2.bf16.msra.mxu0 0
    %1425 = vmatprep.subr.bf16.mxu0 0
    %1426 = vmatpush2.bf16.msra.mxu0 0
    %1427 = vmatprep.subr.bf16.mxu0 0
    %1428 = vmatpush2.bf16.msra.mxu0 0
    %1429 = vmatprep.subr.bf16.mxu0 0
    %1430 = vmatpush2.bf16.msra.mxu0 0
    %1431 = vmatprep.subr.bf16.mxu0 0
    %1432 = vmatpush2.bf16.msra.mxu0 0
    %1433 = vmatprep.subr.bf16.mxu0 0
    %1434 = vmatpush2.bf16.msra.mxu0 0
    %1435 = vmatprep.mubr.bf16.mxu0 0
    %1436 = vmatmul.mubr.bf16.gmra.mxu0 %v1395
    %v1437 = vpop.f32.mrf.mxu0
    %v1438 = vadd.f32 %v1382, %v1437
    %v1439 = vpop.f32.mrf.mxu0
    %v1440 = vadd.f32 %v1382, %v1439
    %v1441 = vpop.f32.mrf.mxu0
    %v1442 = vadd.f32 %v1387, %v1441
    %v1443 = vpop.f32.mrf.mxu0
    %v1444 = vadd.f32 %v1387, %v1443
    %1445 = vdwg.mxu0
    %v1446 = vmax.f32 %v1438, 0.0
    %v1447 = vmax.f32 %v1440, 0.0
    %v1448 = vmax.f32 %v1442, 0.0
    %v1449 = vmax.f32 %v1444, 0.0
    %1450 = vrot.lane.b32.xlu0 %v1446, 15
    %v1451 = vpop.permute.xlu0 %1450
    %1452 = vrot.lane.b32.xlu0 %v1448, 15
    %v1453 = vpop.permute.xlu0 %1452
    %1454 = vrot.lane.b32.xlu0 %v1447, 15
    %v1455 = vpop.permute.xlu0 %1454
    %1456 = vrot.lane.b32.xlu0 %v1449, 15
    %v1457 = vpop.permute.xlu0 %1456
    %vm1458 = vcmp.lt.s32.totalorder %v137, 15
    %v1459 = vsel %vm1458, %v1451, %v1455
    %v1460 = vsel %vm1458, %v1453, %v1457
    %v1461 = vsel %vm1458, %v1455, %v1451
    %v1462 = vsel %vm1458, %v1457, %v1453
    %v1463 = vadd.s32 %v139, 4294967281
    %v1464 = vadd.s32 %v140, 4294967281
    %vm1465 = vcmp.ge.s32.totalorder %v1463, 0
    %vm1466 = vcmp.ge.s32.totalorder %v1464, 0
    %vm1467 = vcmp.lt.s32.totalorder %v1463, 128
    %vm1468 = vcmp.lt.s32.totalorder %v1464, 128
    %vm1469 = vmand %vm1465, %vm1467
    %vm1470 = vmand %vm1466, %vm1468
    %v1471 = vsel %vm1469, 1, 0
    %v1472 = vsel %vm1470, 1, 0
    %v1473 = vcvt.s32.f32 %v1471
    %v1474 = vcvt.s32.f32 %v1472
    %v1475 = vmul.f32 %v1461, %v1473
    %v1476 = vmul.f32 %v1459, %v1474
    %v1477 = vmul.f32 %v1462, %v1473
    %v1478 = vmul.f32 %v1460, %v1474
    %v1479 = vpack.c.bf16 %v1477, %v1475
    %v1480 = vpack.c.bf16 %v1478, %v1476
    %1481 = vrot.lane.b32.xlu0 %v1446, 10
    %v1482 = vpop.permute.xlu0 %1481
    %1483 = vrot.lane.b32.xlu0 %v1448, 10
    %v1484 = vpop.permute.xlu0 %1483
    %1485 = vrot.lane.b32.xlu0 %v1447, 10
    %v1486 = vpop.permute.xlu0 %1485
    %1487 = vrot.lane.b32.xlu0 %v1449, 10
    %v1488 = vpop.permute.xlu0 %1487
    %vm1489 = vcmp.lt.s32.totalorder %v137, 10
    %v1490 = vsel %vm1489, %v1482, %v1486
    %v1491 = vsel %vm1489, %v1484, %v1488
    %v1492 = vsel %vm1489, %v1486, %v1482
    %v1493 = vsel %vm1489, %v1488, %v1484
    %v1494 = vadd.s32 %v139, 4294967286
    %v1495 = vadd.s32 %v140, 4294967286
    %vm1496 = vcmp.ge.s32.totalorder %v1494, 0
    %vm1497 = vcmp.ge.s32.totalorder %v1495, 0
    %vm1498 = vcmp.lt.s32.totalorder %v1494, 128
    %vm1499 = vcmp.lt.s32.totalorder %v1495, 128
    %vm1500 = vmand %vm1496, %vm1498
    %vm1501 = vmand %vm1497, %vm1499
    %v1502 = vsel %vm1500, 1, 0
    %v1503 = vsel %vm1501, 1, 0
    %v1504 = vcvt.s32.f32 %v1502
    %v1505 = vcvt.s32.f32 %v1503
    %v1506 = vmul.f32 %v1492, %v1504
    %v1507 = vmul.f32 %v1490, %v1505
    %v1508 = vmul.f32 %v1493, %v1504
    %v1509 = vmul.f32 %v1491, %v1505
    %v1510 = vpack.c.bf16 %v1508, %v1506
    %v1511 = vpack.c.bf16 %v1509, %v1507
    %1512 = vrot.lane.b32.xlu0 %v1446, 5
    %v1513 = vpop.permute.xlu0 %1512
    %1514 = vrot.lane.b32.xlu0 %v1448, 5
    %v1515 = vpop.permute.xlu0 %1514
    %1516 = vrot.lane.b32.xlu0 %v1447, 5
    %v1517 = vpop.permute.xlu0 %1516
    %1518 = vrot.lane.b32.xlu0 %v1449, 5
    %v1519 = vpop.permute.xlu0 %1518
    %vm1520 = vcmp.lt.s32.totalorder %v137, 5
    %v1521 = vsel %vm1520, %v1513, %v1517
    %v1522 = vsel %vm1520, %v1515, %v1519
    %v1523 = vsel %vm1520, %v1517, %v1513
    %v1524 = vsel %vm1520, %v1519, %v1515
    %v1525 = vadd.s32 %v139, 4294967291
    %v1526 = vadd.s32 %v140, 4294967291
    %vm1527 = vcmp.ge.s32.totalorder %v1525, 0
    %vm1528 = vcmp.ge.s32.totalorder %v1526, 0
    %vm1529 = vcmp.lt.s32.totalorder %v1525, 128
    %vm1530 = vcmp.lt.s32.totalorder %v1526, 128
    %vm1531 = vmand %vm1527, %vm1529
    %vm1532 = vmand %vm1528, %vm1530
    %v1533 = vsel %vm1531, 1, 0
    %v1534 = vsel %vm1532, 1, 0
    %v1535 = vcvt.s32.f32 %v1533
    %v1536 = vcvt.s32.f32 %v1534
    %v1537 = vmul.f32 %v1523, %v1535
    %v1538 = vmul.f32 %v1521, %v1536
    %v1539 = vmul.f32 %v1524, %v1535
    %v1540 = vmul.f32 %v1522, %v1536
    %v1541 = vpack.c.bf16 %v1539, %v1537
    %v1542 = vpack.c.bf16 %v1540, %v1538
    %v1543 = vpack.c.bf16 %v1448, %v1446
    %v1544 = vpack.c.bf16 %v1449, %v1447
    %1545 = vrot.lane.b32.xlu0 %v1446, 123
    %v1546 = vpop.permute.xlu0 %1545
    %1547 = vrot.lane.b32.xlu0 %v1448, 123
    %v1548 = vpop.permute.xlu0 %1547
    %1549 = vrot.lane.b32.xlu0 %v1447, 123
    %v1550 = vpop.permute.xlu0 %1549
    %1551 = vrot.lane.b32.xlu0 %v1449, 123
    %v1552 = vpop.permute.xlu0 %1551
    %vm1553 = vcmp.lt.s32.totalorder %v137, 123
    %v1554 = vsel %vm1553, %v1546, %v1550
    %v1555 = vsel %vm1553, %v1548, %v1552
    %v1556 = vsel %vm1553, %v1550, %v1546
    %v1557 = vsel %vm1553, %v1552, %v1548
    %v1558 = vadd.s32 %v139, 5
    %v1559 = vadd.s32 %v140, 5
    %vm1560 = vcmp.ge.s32.totalorder %v1558, 0
    %vm1561 = vcmp.ge.s32.totalorder %v1559, 0
    %vm1562 = vcmp.lt.s32.totalorder %v1558, 128
    %vm1563 = vcmp.lt.s32.totalorder %v1559, 128
    %vm1564 = vmand %vm1560, %vm1562
    %vm1565 = vmand %vm1561, %vm1563
    %v1566 = vsel %vm1564, 1, 0
    %v1567 = vsel %vm1565, 1, 0
    %v1568 = vcvt.s32.f32 %v1566
    %v1569 = vcvt.s32.f32 %v1567
    %v1570 = vmul.f32 %v1554, %v1568
    %v1571 = vmul.f32 %v1556, %v1569
    %v1572 = vmul.f32 %v1555, %v1568
    %v1573 = vmul.f32 %v1557, %v1569
    %v1574 = vpack.c.bf16 %v1572, %v1570
    %v1575 = vpack.c.bf16 %v1573, %v1571
    %1576 = vrot.lane.b32.xlu0 %v1446, 118
    %v1577 = vpop.permute.xlu0 %1576
    %1578 = vrot.lane.b32.xlu0 %v1448, 118
    %v1579 = vpop.permute.xlu0 %1578
    %1580 = vrot.lane.b32.xlu0 %v1447, 118
    %v1581 = vpop.permute.xlu0 %1580
    %1582 = vrot.lane.b32.xlu0 %v1449, 118
    %v1583 = vpop.permute.xlu0 %1582
    %vm1584 = vcmp.lt.s32.totalorder %v137, 118
    %v1585 = vsel %vm1584, %v1577, %v1581
    %v1586 = vsel %vm1584, %v1579, %v1583
    %v1587 = vsel %vm1584, %v1581, %v1577
    %v1588 = vsel %vm1584, %v1583, %v1579
    %v1589 = vadd.s32 %v139, 10
    %v1590 = vadd.s32 %v140, 10
    %vm1591 = vcmp.ge.s32.totalorder %v1589, 0
    %vm1592 = vcmp.ge.s32.totalorder %v1590, 0
    %vm1593 = vcmp.lt.s32.totalorder %v1589, 128
    %vm1594 = vcmp.lt.s32.totalorder %v1590, 128
    %vm1595 = vmand %vm1591, %vm1593
    %vm1596 = vmand %vm1592, %vm1594
    %v1597 = vsel %vm1595, 1, 0
    %v1598 = vsel %vm1596, 1, 0
    %v1599 = vcvt.s32.f32 %v1597
    %v1600 = vcvt.s32.f32 %v1598
    %v1601 = vmul.f32 %v1585, %v1599
    %v1602 = vmul.f32 %v1587, %v1600
    %v1603 = vmul.f32 %v1586, %v1599
    %v1604 = vmul.f32 %v1588, %v1600
    %v1605 = vpack.c.bf16 %v1603, %v1601
    %v1606 = vpack.c.bf16 %v1604, %v1602
    %1607 = vrot.lane.b32.xlu0 %v1446, 113
    %v1608 = vpop.permute.xlu0 %1607
    %1609 = vrot.lane.b32.xlu0 %v1448, 113
    %v1610 = vpop.permute.xlu0 %1609
    %1611 = vrot.lane.b32.xlu0 %v1447, 113
    %v1612 = vpop.permute.xlu0 %1611
    %1613 = vrot.lane.b32.xlu0 %v1449, 113
    %v1614 = vpop.permute.xlu0 %1613
    %vm1615 = vcmp.lt.s32.totalorder %v137, 113
    %v1616 = vsel %vm1615, %v1608, %v1612
    %v1617 = vsel %vm1615, %v1610, %v1614
    %v1618 = vsel %vm1615, %v1612, %v1608
    %v1619 = vsel %vm1615, %v1614, %v1610
    %v1620 = vadd.s32 %v139, 15
    %v1621 = vadd.s32 %v140, 15
    %vm1622 = vcmp.ge.s32.totalorder %v1620, 0
    %vm1623 = vcmp.ge.s32.totalorder %v1621, 0
    %vm1624 = vcmp.lt.s32.totalorder %v1620, 128
    %vm1625 = vcmp.lt.s32.totalorder %v1621, 128
    %vm1626 = vmand %vm1622, %vm1624
    %vm1627 = vmand %vm1623, %vm1625
    %v1628 = vsel %vm1626, 1, 0
    %v1629 = vsel %vm1627, 1, 0
    %v1630 = vcvt.s32.f32 %v1628
    %v1631 = vcvt.s32.f32 %v1629
    %v1632 = vmul.f32 %v1616, %v1630
    %v1633 = vmul.f32 %v1618, %v1631
    %v1634 = vmul.f32 %v1617, %v1630
    %v1635 = vmul.f32 %v1619, %v1631
    %v1636 = vpack.c.bf16 %v1634, %v1632
    %v1637 = vpack.c.bf16 %v1635, %v1633
    %v1638 = vld [vmem:[%s43] sm:$0xf]
    %v1639 = vld [vmem:[%s43 + $0x4] sm:$0xf]
    %v1640 = vld [vmem:[%s43 + $0x8] sm:$0xf]
    %v1641 = vld [vmem:[%s43 + $0xc] sm:$0xf]
    %v1642 = vld [vmem:[%s45] sm:$0xff]
    %v1643 = vld [vmem:[%s45 + $0x8] sm:$0xff]
    %v1644 = vld [vmem:[%s45 + $0x10] sm:$0xff]
    %v1645 = vld [vmem:[%s45 + $0x18] sm:$0xff]
    %1647 = vset.pattern.permute.xlu0 0
    %1648 = vperm.xlu0 %1647, %v1642
    %v1649 = vpop.permute.xlu0 %1648
    %1652 = vset.pattern.permute.xlu0 0
    %1653 = vperm.xlu0 %1652, %v1643
    %v1654 = vpop.permute.xlu0 %1653
    %1657 = vset.pattern.permute.xlu0 0
    %1658 = vperm.xlu0 %1657, %v1644
    %v1659 = vpop.permute.xlu0 %1658
    %1662 = vset.pattern.permute.xlu0 0
    %1663 = vperm.xlu0 %1662, %v1645
    %v1664 = vpop.permute.xlu0 %1663
    %v1670 = vunpack.c.l.b16 %v1638
    %v1671 = vunpack.c.l.b16 %v1639
    %v1672 = vunpack.c.l.b16 %v1640
    %v1673 = vunpack.c.l.b16 %v1641
    %v1674 = vpack.c.b16 %v1671, %v1670
    %v1675 = vpack.c.b16 %v1673, %v1672
    %vm1676 = vcmask 916480
    %v1678 = vsel %vm1676, %v1674, 0
    %v1681 = vsel %vm1676, %v1675, 0
    %1683 = vmatprep.subr.bf16.mxu0 0
    %1684 = vmatpush1.bf16.msra.mxu0 0
    %1685 = vmatprep.subr.bf16.mxu0 %v1637
    %1686 = vmatpush1.bf16.msra.mxu0 %v1636
    %1687 = vmatprep.subr.bf16.mxu0 %v1606
    %1688 = vmatpush1.bf16.msra.mxu0 %v1605
    %1689 = vmatprep.subr.bf16.mxu0 %v1575
    %1690 = vmatpush1.bf16.msra.mxu0 %v1574
    %1691 = vmatprep.subr.bf16.mxu0 %v1544
    %1692 = vmatpush1.bf16.msra.mxu0 %v1543
    %1693 = vmatprep.subr.bf16.mxu0 %v1542
    %1694 = vmatpush1.bf16.msra.mxu0 %v1541
    %1695 = vmatprep.subr.bf16.mxu0 %v1511
    %1696 = vmatpush1.bf16.msra.mxu0 %v1510
    %1697 = vmatprep.subr.bf16.mxu0 %v1480
    %1698 = vmatpush1.bf16.msra.mxu0 %v1479
    %1699 = vmatprep.subr.bf16.mxu0 0
    %1700 = vmatpush2.bf16.msra.mxu0 0
    %1701 = vmatprep.subr.bf16.mxu0 0
    %1702 = vmatpush2.bf16.msra.mxu0 0
    %1703 = vmatprep.subr.bf16.mxu0 0
    %1704 = vmatpush2.bf16.msra.mxu0 0
    %1705 = vmatprep.subr.bf16.mxu0 0
    %1706 = vmatpush2.bf16.msra.mxu0 0
    %1707 = vmatprep.subr.bf16.mxu0 0
    %1708 = vmatpush2.bf16.msra.mxu0 0
    %1709 = vmatprep.subr.bf16.mxu0 0
    %1710 = vmatpush2.bf16.msra.mxu0 0
    %1711 = vmatprep.subr.bf16.mxu0 0
    %1712 = vmatpush2.bf16.msra.mxu0 0
    %1713 = vmatprep.subr.bf16.mxu0 0
    %1714 = vmatpush2.bf16.msra.mxu0 0
    %1715 = vmatprep.mubr.bf16.mxu0 0
    %1716 = vmatmul.mubr.bf16.gmra.mxu0 %v1678
    %v1717 = vpop.f32.mrf.mxu0
    %v1718 = vadd.f32 %v1649, %v1717
    %v1719 = vpop.f32.mrf.mxu0
    %v1720 = vadd.f32 %v1649, %v1719
    %v1721 = vpop.f32.mrf.mxu0
    %v1722 = vadd.f32 %v1654, %v1721
    %v1723 = vpop.f32.mrf.mxu0
    %v1724 = vadd.f32 %v1654, %v1723
    %1725 = vmatprep.mubr.bf16.mxu0 0
    %1726 = vmatmul.mubr.bf16.gmra.mxu0 %v1681
    %v1727 = vpop.f32.mrf.mxu0
    %v1728 = vadd.f32 %v1659, %v1727
    %v1729 = vpop.f32.mrf.mxu0
    %v1730 = vadd.f32 %v1659, %v1729
    %v1731 = vpop.f32.mrf.mxu0
    %v1732 = vadd.f32 %v1664, %v1731
    %v1733 = vpop.f32.mrf.mxu0
    %v1734 = vadd.f32 %v1664, %v1733
    %1735 = vdwg.mxu0
    %v1736 = vmax.f32 %v1718, 0.0
    %v1737 = vmax.f32 %v1720, 0.0
    %v1738 = vmax.f32 %v1722, 0.0
    %v1739 = vmax.f32 %v1724, 0.0
    %v1740 = vmax.f32 %v1728, 0.0
    %v1741 = vmax.f32 %v1730, 0.0
    %v1742 = vmax.f32 %v1732, 0.0
    %v1743 = vmax.f32 %v1734, 0.0
    %1744 = vrot.lane.b32.xlu0 %v1736, 15
    %v1745 = vpop.permute.xlu0 %1744
    %1746 = vrot.lane.b32.xlu0 %v1738, 15
    %v1747 = vpop.permute.xlu0 %1746
    %1748 = vrot.lane.b32.xlu0 %v1740, 15
    %v1749 = vpop.permute.xlu0 %1748
    %1750 = vrot.lane.b32.xlu0 %v1742, 15
    %v1751 = vpop.permute.xlu0 %1750
    %1752 = vrot.lane.b32.xlu0 %v1737, 15
    %v1753 = vpop.permute.xlu0 %1752
    %1754 = vrot.lane.b32.xlu0 %v1739, 15
    %v1755 = vpop.permute.xlu0 %1754
    %1756 = vrot.lane.b32.xlu0 %v1741, 15
    %v1757 = vpop.permute.xlu0 %1756
    %1758 = vrot.lane.b32.xlu0 %v1743, 15
    %v1759 = vpop.permute.xlu0 %1758
    %v1760 = vsel %vm1458, %v1745, %v1753
    %v1761 = vsel %vm1458, %v1747, %v1755
    %v1762 = vsel %vm1458, %v1749, %v1757
    %v1763 = vsel %vm1458, %v1751, %v1759
    %v1764 = vsel %vm1458, %v1753, %v1745
    %v1765 = vsel %vm1458, %v1755, %v1747
    %v1766 = vsel %vm1458, %v1757, %v1749
    %v1767 = vsel %vm1458, %v1759, %v1751
    %v1768 = vmul.f32 %v1764, %v1473
    %v1769 = vmul.f32 %v1760, %v1474
    %v1770 = vmul.f32 %v1765, %v1473
    %v1771 = vmul.f32 %v1761, %v1474
    %v1772 = vmul.f32 %v1766, %v1473
    %v1773 = vmul.f32 %v1762, %v1474
    %v1774 = vmul.f32 %v1767, %v1473
    %v1775 = vmul.f32 %v1763, %v1474
    %v1776 = vpack.c.bf16 %v1770, %v1768
    %v1777 = vpack.c.bf16 %v1771, %v1769
    %v1778 = vpack.c.bf16 %v1774, %v1772
    %v1779 = vpack.c.bf16 %v1775, %v1773
    %1780 = vrot.lane.b32.xlu0 %v1736, 10
    %v1781 = vpop.permute.xlu0 %1780
    %1782 = vrot.lane.b32.xlu0 %v1738, 10
    %v1783 = vpop.permute.xlu0 %1782
    %1784 = vrot.lane.b32.xlu0 %v1740, 10
    %v1785 = vpop.permute.xlu0 %1784
    %1786 = vrot.lane.b32.xlu0 %v1742, 10
    %v1787 = vpop.permute.xlu0 %1786
    %1788 = vrot.lane.b32.xlu0 %v1737, 10
    %v1789 = vpop.permute.xlu0 %1788
    %1790 = vrot.lane.b32.xlu0 %v1739, 10
    %v1791 = vpop.permute.xlu0 %1790
    %1792 = vrot.lane.b32.xlu0 %v1741, 10
    %v1793 = vpop.permute.xlu0 %1792
    %1794 = vrot.lane.b32.xlu0 %v1743, 10
    %v1795 = vpop.permute.xlu0 %1794
    %v1796 = vsel %vm1489, %v1781, %v1789
    %v1797 = vsel %vm1489, %v1783, %v1791
    %v1798 = vsel %vm1489, %v1785, %v1793
    %v1799 = vsel %vm1489, %v1787, %v1795
    %v1800 = vsel %vm1489, %v1789, %v1781
    %v1801 = vsel %vm1489, %v1791, %v1783
    %v1802 = vsel %vm1489, %v1793, %v1785
    %v1803 = vsel %vm1489, %v1795, %v1787
    %v1804 = vmul.f32 %v1800, %v1504
    %v1805 = vmul.f32 %v1796, %v1505
    %v1806 = vmul.f32 %v1801, %v1504
    %v1807 = vmul.f32 %v1797, %v1505
    %v1808 = vmul.f32 %v1802, %v1504
    %v1809 = vmul.f32 %v1798, %v1505
    %v1810 = vmul.f32 %v1803, %v1504
    %v1811 = vmul.f32 %v1799, %v1505
    %v1812 = vpack.c.bf16 %v1806, %v1804
    %v1813 = vpack.c.bf16 %v1807, %v1805
    %v1814 = vpack.c.bf16 %v1810, %v1808
    %v1815 = vpack.c.bf16 %v1811, %v1809
    %1816 = vrot.lane.b32.xlu0 %v1736, 5
    %v1817 = vpop.permute.xlu0 %1816
    %1818 = vrot.lane.b32.xlu0 %v1738, 5
    %v1819 = vpop.permute.xlu0 %1818
    %1820 = vrot.lane.b32.xlu0 %v1740, 5
    %v1821 = vpop.permute.xlu0 %1820
    %1822 = vrot.lane.b32.xlu0 %v1742, 5
    %v1823 = vpop.permute.xlu0 %1822
    %1824 = vrot.lane.b32.xlu0 %v1737, 5
    %v1825 = vpop.permute.xlu0 %1824
    %1826 = vrot.lane.b32.xlu0 %v1739, 5
    %v1827 = vpop.permute.xlu0 %1826
    %1828 = vrot.lane.b32.xlu0 %v1741, 5
    %v1829 = vpop.permute.xlu0 %1828
    %1830 = vrot.lane.b32.xlu0 %v1743, 5
    %v1831 = vpop.permute.xlu0 %1830
    %v1832 = vsel %vm1520, %v1817, %v1825
    %v1833 = vsel %vm1520, %v1819, %v1827
    %v1834 = vsel %vm1520, %v1821, %v1829
    %v1835 = vsel %vm1520, %v1823, %v1831
    %v1836 = vsel %vm1520, %v1825, %v1817
    %v1837 = vsel %vm1520, %v1827, %v1819
    %v1838 = vsel %vm1520, %v1829, %v1821
    %v1839 = vsel %vm1520, %v1831, %v1823
    %v1840 = vmul.f32 %v1836, %v1535
    %v1841 = vmul.f32 %v1832, %v1536
    %v1842 = vmul.f32 %v1837, %v1535
    %v1843 = vmul.f32 %v1833, %v1536
    %v1844 = vmul.f32 %v1838, %v1535
    %v1845 = vmul.f32 %v1834, %v1536
    %v1846 = vmul.f32 %v1839, %v1535
    %v1847 = vmul.f32 %v1835, %v1536
    %v1848 = vpack.c.bf16 %v1842, %v1840
    %v1849 = vpack.c.bf16 %v1843, %v1841
    %v1850 = vpack.c.bf16 %v1846, %v1844
    %v1851 = vpack.c.bf16 %v1847, %v1845
    %v1852 = vpack.c.bf16 %v1738, %v1736
    %v1853 = vpack.c.bf16 %v1739, %v1737
    %v1854 = vpack.c.bf16 %v1742, %v1740
    %v1855 = vpack.c.bf16 %v1743, %v1741
    %1856 = vrot.lane.b32.xlu0 %v1736, 123
    %v1857 = vpop.permute.xlu0 %1856
    %1858 = vrot.lane.b32.xlu0 %v1738, 123
    %v1859 = vpop.permute.xlu0 %1858
    %1860 = vrot.lane.b32.xlu0 %v1740, 123
    %v1861 = vpop.permute.xlu0 %1860
    %1862 = vrot.lane.b32.xlu0 %v1742, 123
    %v1863 = vpop.permute.xlu0 %1862
    %1864 = vrot.lane.b32.xlu0 %v1737, 123
    %v1865 = vpop.permute.xlu0 %1864
    %1866 = vrot.lane.b32.xlu0 %v1739, 123
    %v1867 = vpop.permute.xlu0 %1866
    %1868 = vrot.lane.b32.xlu0 %v1741, 123
    %v1869 = vpop.permute.xlu0 %1868
    %1870 = vrot.lane.b32.xlu0 %v1743, 123
    %v1871 = vpop.permute.xlu0 %1870
    %v1872 = vsel %vm1553, %v1857, %v1865
    %v1873 = vsel %vm1553, %v1859, %v1867
    %v1874 = vsel %vm1553, %v1861, %v1869
    %v1875 = vsel %vm1553, %v1863, %v1871
    %v1876 = vsel %vm1553, %v1865, %v1857
    %v1877 = vsel %vm1553, %v1867, %v1859
    %v1878 = vsel %vm1553, %v1869, %v1861
    %v1879 = vsel %vm1553, %v1871, %v1863
    %v1880 = vmul.f32 %v1872, %v1568
    %v1881 = vmul.f32 %v1876, %v1569
    %v1882 = vmul.f32 %v1873, %v1568
    %v1883 = vmul.f32 %v1877, %v1569
    %v1884 = vmul.f32 %v1874, %v1568
    %v1885 = vmul.f32 %v1878, %v1569
    %v1886 = vmul.f32 %v1875, %v1568
    %v1887 = vmul.f32 %v1879, %v1569
    %v1888 = vpack.c.bf16 %v1882, %v1880
    %v1889 = vpack.c.bf16 %v1883, %v1881
    %v1890 = vpack.c.bf16 %v1886, %v1884
    %v1891 = vpack.c.bf16 %v1887, %v1885
    %1892 = vrot.lane.b32.xlu0 %v1736, 118
    %v1893 = vpop.permute.xlu0 %1892
    %1894 = vrot.lane.b32.xlu0 %v1738, 118
    %v1895 = vpop.permute.xlu0 %1894
    %1896 = vrot.lane.b32.xlu0 %v1740, 118
    %v1897 = vpop.permute.xlu0 %1896
    %1898 = vrot.lane.b32.xlu0 %v1742, 118
    %v1899 = vpop.permute.xlu0 %1898
    %1900 = vrot.lane.b32.xlu0 %v1737, 118
    %v1901 = vpop.permute.xlu0 %1900
    %1902 = vrot.lane.b32.xlu0 %v1739, 118
    %v1903 = vpop.permute.xlu0 %1902
    %1904 = vrot.lane.b32.xlu0 %v1741, 118
    %v1905 = vpop.permute.xlu0 %1904
    %1906 = vrot.lane.b32.xlu0 %v1743, 118
    %v1907 = vpop.permute.xlu0 %1906
    %v1908 = vsel %vm1584, %v1893, %v1901
    %v1909 = vsel %vm1584, %v1895, %v1903
    %v1910 = vsel %vm1584, %v1897, %v1905
    %v1911 = vsel %vm1584, %v1899, %v1907
    %v1912 = vsel %vm1584, %v1901, %v1893
    %v1913 = vsel %vm1584, %v1903, %v1895
    %v1914 = vsel %vm1584, %v1905, %v1897
    %v1915 = vsel %vm1584, %v1907, %v1899
    %v1916 = vmul.f32 %v1908, %v1599
    %v1917 = vmul.f32 %v1912, %v1600
    %v1918 = vmul.f32 %v1909, %v1599
    %v1919 = vmul.f32 %v1913, %v1600
    %v1920 = vmul.f32 %v1910, %v1599
    %v1921 = vmul.f32 %v1914, %v1600
    %v1922 = vmul.f32 %v1911, %v1599
    %v1923 = vmul.f32 %v1915, %v1600
    %v1924 = vpack.c.bf16 %v1918, %v1916
    %v1925 = vpack.c.bf16 %v1919, %v1917
    %v1926 = vpack.c.bf16 %v1922, %v1920
    %v1927 = vpack.c.bf16 %v1923, %v1921
    %1928 = vrot.lane.b32.xlu0 %v1736, 113
    %v1929 = vpop.permute.xlu0 %1928
    %1930 = vrot.lane.b32.xlu0 %v1738, 113
    %v1931 = vpop.permute.xlu0 %1930
    %1932 = vrot.lane.b32.xlu0 %v1740, 113
    %v1933 = vpop.permute.xlu0 %1932
    %1934 = vrot.lane.b32.xlu0 %v1742, 113
    %v1935 = vpop.permute.xlu0 %1934
    %1936 = vrot.lane.b32.xlu0 %v1737, 113
    %v1937 = vpop.permute.xlu0 %1936
    %1938 = vrot.lane.b32.xlu0 %v1739, 113
    %v1939 = vpop.permute.xlu0 %1938
    %1940 = vrot.lane.b32.xlu0 %v1741, 113
    %v1941 = vpop.permute.xlu0 %1940
    %1942 = vrot.lane.b32.xlu0 %v1743, 113
    %v1943 = vpop.permute.xlu0 %1942
    %v1944 = vsel %vm1615, %v1929, %v1937
    %v1945 = vsel %vm1615, %v1931, %v1939
    %v1946 = vsel %vm1615, %v1933, %v1941
    %v1947 = vsel %vm1615, %v1935, %v1943
    %v1948 = vsel %vm1615, %v1937, %v1929
    %v1949 = vsel %vm1615, %v1939, %v1931
    %v1950 = vsel %vm1615, %v1941, %v1933
    %v1951 = vsel %vm1615, %v1943, %v1935
    %v1952 = vmul.f32 %v1944, %v1630
    %v1953 = vmul.f32 %v1948, %v1631
    %v1954 = vmul.f32 %v1945, %v1630
    %v1955 = vmul.f32 %v1949, %v1631
    %v1956 = vmul.f32 %v1946, %v1630
    %v1957 = vmul.f32 %v1950, %v1631
    %v1958 = vmul.f32 %v1947, %v1630
    %v1959 = vmul.f32 %v1951, %v1631
    %v1960 = vpack.c.bf16 %v1954, %v1952
    %v1961 = vpack.c.bf16 %v1955, %v1953
    %v1962 = vpack.c.bf16 %v1958, %v1956
    %v1963 = vpack.c.bf16 %v1959, %v1957
    %v1964 = vld [vmem:[%s47] sm:$0xff]
    %v1965 = vld [vmem:[%s47 + $0x8] sm:$0xff]
    %v1966 = vld [vmem:[%s49] sm:$0xff]
    %v1967 = vld [vmem:[%s49 + $0x8] sm:$0xff]
    %1969 = vset.pattern.permute.xlu0 0
    %1970 = vperm.xlu0 %1969, %v1966
    %v1971 = vpop.permute.xlu0 %1970
    %1974 = vset.pattern.permute.xlu0 0
    %1975 = vperm.xlu0 %1974, %v1967
    %v1976 = vpop.permute.xlu0 %1975
    %v1980 = vunpack.c.l.b16 %v1964
    %v1981 = vunpack.c.h.b16 %v1964
    %v1982 = vunpack.c.l.b16 %v1965
    %v1983 = vunpack.c.h.b16 %v1965
    %v1984 = vpack.c.b16 %v1982, %v1980
    %v1985 = vpack.c.b16 %v1983, %v1981
    %vm1987 = vcmask 785408
    %v1989 = vsel %vm1987, %v1985, 0
    %1991 = vmatprep.subr.bf16.mxu0 %v1855
    %1992 = vmatpush1.bf16.msra.mxu0 %v1854
    %1993 = vmatprep.subr.bf16.mxu0 %v1853
    %1994 = vmatpush1.bf16.msra.mxu0 %v1852
    %1995 = vmatprep.subr.bf16.mxu0 %v1851
    %1996 = vmatpush1.bf16.msra.mxu0 %v1850
    %1997 = vmatprep.subr.bf16.mxu0 %v1849
    %1998 = vmatpush1.bf16.msra.mxu0 %v1848
    %1999 = vmatprep.subr.bf16.mxu0 %v1815
    %2000 = vmatpush1.bf16.msra.mxu0 %v1814
    %2001 = vmatprep.subr.bf16.mxu0 %v1813
    %2002 = vmatpush1.bf16.msra.mxu0 %v1812
    %2003 = vmatprep.subr.bf16.mxu0 %v1779
    %2004 = vmatpush1.bf16.msra.mxu0 %v1778
    %2005 = vmatprep.subr.bf16.mxu0 %v1777
    %2006 = vmatpush1.bf16.msra.mxu0 %v1776
    %2007 = vmatprep.subr.bf16.mxu0 0
    %2008 = vmatpush2.bf16.msra.mxu0 0
    %2009 = vmatprep.subr.bf16.mxu0 0
    %2010 = vmatpush2.bf16.msra.mxu0 0
    %2011 = vmatprep.subr.bf16.mxu0 %v1963
    %2012 = vmatpush2.bf16.msra.mxu0 %v1962
    %2013 = vmatprep.subr.bf16.mxu0 %v1961
    %2014 = vmatpush2.bf16.msra.mxu0 %v1960
    %2015 = vmatprep.subr.bf16.mxu0 %v1927
    %2016 = vmatpush2.bf16.msra.mxu0 %v1926
    %2017 = vmatprep.subr.bf16.mxu0 %v1925
    %2018 = vmatpush2.bf16.msra.mxu0 %v1924
    %2019 = vmatprep.subr.bf16.mxu0 %v1891
    %2020 = vmatpush2.bf16.msra.mxu0 %v1890
    %2021 = vmatprep.subr.bf16.mxu0 %v1889
    %2022 = vmatpush2.bf16.msra.mxu0 %v1888
    %2023 = vmatprep.mubr.bf16.mxu0 %v1989
    %2024 = vmatmul.mubr.bf16.gmra.mxu0 %v1984
    %v2025 = vpop.f32.mrf.mxu0
    %v2026 = vadd.f32 %v1971, %v2025
    %v2027 = vpop.f32.mrf.mxu0
    %v2028 = vadd.f32 %v1971, %v2027
    %v2029 = vpop.f32.mrf.mxu0
    %v2030 = vadd.f32 %v1976, %v2029
    %v2031 = vpop.f32.mrf.mxu0
    %v2032 = vadd.f32 %v1976, %v2031
    %2033 = vdwg.mxu0
    %v2034 = vmax.f32 %v2026, 0.0
    %v2035 = vmax.f32 %v2028, 0.0
    %v2036 = vmax.f32 %v2030, 0.0
    %v2037 = vmax.f32 %v2032, 0.0
    %2038 = vrot.lane.b32.xlu0 %v2034, 2
    %v2039 = vpop.permute.xlu0 %2038
    %2040 = vrot.lane.b32.xlu0 %v2036, 2
    %v2041 = vpop.permute.xlu0 %2040
    %2042 = vrot.lane.b32.xlu0 %v2035, 2
    %v2043 = vpop.permute.xlu0 %2042
    %2044 = vrot.lane.b32.xlu0 %v2037, 2
    %v2045 = vpop.permute.xlu0 %2044
    %v2046 = vsel %vm266, %v2039, %v2043
    %v2047 = vsel %vm266, %v2041, %v2045
    %v2048 = vsel %vm266, %v2043, %v2039
    %v2049 = vsel %vm266, %v2045, %v2041
    %v2050 = vmul.f32 %v2048, %v279
    %v2051 = vmul.f32 %v2046, %v280
    %v2052 = vmul.f32 %v2049, %v279
    %v2053 = vmul.f32 %v2047, %v280
    %v2054 = vpack.c.bf16 %v2052, %v2050
    %v2055 = vpack.c.bf16 %v2053, %v2051
    %v2056 = vpack.c.bf16 %v2036, %v2034
    %v2057 = vpack.c.bf16 %v2037, %v2035
    %2058 = vrot.lane.b32.xlu0 %v2034, 126
    %v2059 = vpop.permute.xlu0 %2058
    %2060 = vrot.lane.b32.xlu0 %v2036, 126
    %v2061 = vpop.permute.xlu0 %2060
    %2062 = vrot.lane.b32.xlu0 %v2035, 126
    %v2063 = vpop.permute.xlu0 %2062
    %2064 = vrot.lane.b32.xlu0 %v2037, 126
    %v2065 = vpop.permute.xlu0 %2064
    %v2066 = vsel %vm337, %v2059, %v2063
    %v2067 = vsel %vm337, %v2061, %v2065
    %v2068 = vsel %vm337, %v2063, %v2059
    %v2069 = vsel %vm337, %v2065, %v2061
    %v2070 = vmul.f32 %v2066, %v350
    %v2071 = vmul.f32 %v2068, %v351
    %v2072 = vmul.f32 %v2067, %v350
    %v2073 = vmul.f32 %v2069, %v351
    %v2074 = vpack.c.bf16 %v2072, %v2070
    %v2075 = vpack.c.bf16 %v2073, %v2071
    %v2076 = vld [vmem:[%s51] sm:$0xf]
    %v2077 = vld [vmem:[%s53] sm:$0xff]
    %2079 = vset.pattern.permute.xlu0 0
    %2080 = vperm.xlu0 %2079, %v2077
    %v2081 = vpop.permute.xlu0 %2080
    %vm2083 = vcmask 392192
    %v2085 = vsel %vm2083, %v2076, 0
    %2087 = vmatprep.subr.bf16.mxu0 0
    %2088 = vmatpush1.bf16.msra.mxu0 0
    %2089 = vmatprep.subr.bf16.mxu0 0
    %2090 = vmatpush1.bf16.msra.mxu0 0
    %2091 = vmatprep.subr.bf16.mxu0 0
    %2092 = vmatpush1.bf16.msra.mxu0 0
    %2093 = vmatprep.subr.bf16.mxu0 0
    %2094 = vmatpush1.bf16.msra.mxu0 0
    %2095 = vmatprep.subr.bf16.mxu0 0
    %2096 = vmatpush1.bf16.msra.mxu0 0
    %2097 = vmatprep.subr.bf16.mxu0 %v2075
    %2098 = vmatpush1.bf16.msra.mxu0 %v2074
    %2099 = vmatprep.subr.bf16.mxu0 %v2057
    %2100 = vmatpush1.bf16.msra.mxu0 %v2056
    %2101 = vmatprep.subr.bf16.mxu0 %v2055
    %2102 = vmatpush1.bf16.msra.mxu0 %v2054
    %2103 = vmatprep.subr.bf16.mxu0 0
    %2104 = vmatpush2.bf16.msra.mxu0 0
    %2105 = vmatprep.subr.bf16.mxu0 0
    %2106 = vmatpush2.bf16.msra.mxu0 0
    %2107 = vmatprep.subr.bf16.mxu0 0
    %2108 = vmatpush2.bf16.msra.mxu0 0
    %2109 = vmatprep.subr.bf16.mxu0 0
    %2110 = vmatpush2.bf16.msra.mxu0 0
    %2111 = vmatprep.subr.bf16.mxu0 0
    %2112 = vmatpush2.bf16.msra.mxu0 0
    %2113 = vmatprep.subr.bf16.mxu0 0
    %2114 = vmatpush2.bf16.msra.mxu0 0
    %2115 = vmatprep.subr.bf16.mxu0 0
    %2116 = vmatpush2.bf16.msra.mxu0 0
    %2117 = vmatprep.subr.bf16.mxu0 0
    %2118 = vmatpush2.bf16.msra.mxu0 0
    %2119 = vmatprep.mubr.bf16.mxu0 0
    %2120 = vmatmul.mubr.bf16.gmra.mxu0 %v2085
    %v2121 = vpop.f32.mrf.mxu0
    %v2122 = vadd.f32 %v2081, %v2121
    %v2123 = vpop.f32.mrf.mxu0
    %v2124 = vadd.f32 %v2081, %v2123
    %v2125 = vpop.f32.mrf.mxu0
    %v2126 = vpop.f32.mrf.mxu0
    %2127 = vdwg.mxu0
    %v2128 = vmax.f32 %v2122, 0.0
    %v2129 = vmax.f32 %v2124, 0.0
    %2130 = vrot.lane.b32.xlu0 %v2128, 2
    %v2131 = vpop.permute.xlu0 %2130
    %2132 = vrot.lane.b32.xlu0 %v2129, 2
    %v2133 = vpop.permute.xlu0 %2132
    %v2134 = vsel %vm266, %v2131, %v2133
    %v2135 = vsel %vm266, %v2133, %v2131
    %v2136 = vmul.f32 %v2135, %v279
    %v2137 = vmul.f32 %v2134, %v280
    %v2138 = vpack.c.bf16 %v2136, %v2136
    %v2139 = vpack.c.bf16 %v2137, %v2137
    %v2140 = vpack.c.bf16 %v2128, %v2128
    %v2141 = vpack.c.bf16 %v2129, %v2129
    %2142 = vrot.lane.b32.xlu0 %v2128, 126
    %v2143 = vpop.permute.xlu0 %2142
    %2144 = vrot.lane.b32.xlu0 %v2129, 126
    %v2145 = vpop.permute.xlu0 %2144
    %v2146 = vsel %vm337, %v2143, %v2145
    %v2147 = vsel %vm337, %v2145, %v2143
    %v2148 = vmul.f32 %v2146, %v350
    %v2149 = vmul.f32 %v2147, %v351
    %v2150 = vpack.c.bf16 %v2148, %v2148
    %v2151 = vpack.c.bf16 %v2149, %v2149
    %v2154 = vrot.slane %v2140, 4
    %v2155 = vrot.slane %v2141, 4
    %v2158 = vsel %vm364, %v2138, %v2154
    %v2162 = vsel %vm364, %v2139, %v2155
    %v2164 = vld [vmem:[%s55] sm:$0xf]
    %v2165 = vld [vmem:[%s57] sm:$0xff]
    %2167 = vset.pattern.permute.xlu0 0
    %2168 = vperm.xlu0 %2167, %v2165
    %v2169 = vpop.permute.xlu0 %2168
    %v2172 = vsel %vm1102, %v2164, 0
    %v2175 = vsel %vm364, %v2150, 0
    %v2178 = vsel %vm364, %v2151, 0
    %2180 = vmatprep.subr.bf16.mxu0 0
    %2181 = vmatpush1.bf16.msra.mxu0 0
    %2182 = vmatprep.subr.bf16.mxu0 0
    %2183 = vmatpush1.bf16.msra.mxu0 0
    %2184 = vmatprep.subr.bf16.mxu0 0
    %2185 = vmatpush1.bf16.msra.mxu0 0
    %2186 = vmatprep.subr.bf16.mxu0 0
    %2187 = vmatpush1.bf16.msra.mxu0 0
    %2188 = vmatprep.subr.bf16.mxu0 0
    %2189 = vmatpush1.bf16.msra.mxu0 0
    %2190 = vmatprep.subr.bf16.mxu0 0
    %2191 = vmatpush1.bf16.msra.mxu0 0
    %2192 = vmatprep.subr.bf16.mxu0 %v2178
    %2193 = vmatpush1.bf16.msra.mxu0 %v2175
    %2194 = vmatprep.subr.bf16.mxu0 %v2162
    %2195 = vmatpush1.bf16.msra.mxu0 %v2158
    %2196 = vmatprep.subr.bf16.mxu0 0
    %2197 = vmatpush2.bf16.msra.mxu0 0
    %2198 = vmatprep.subr.bf16.mxu0 0
    %2199 = vmatpush2.bf16.msra.mxu0 0
    %2200 = vmatprep.subr.bf16.mxu0 0
    %2201 = vmatpush2.bf16.msra.mxu0 0
    %2202 = vmatprep.subr.bf16.mxu0 0
    %2203 = vmatpush2.bf16.msra.mxu0 0
    %2204 = vmatprep.subr.bf16.mxu0 0
    %2205 = vmatpush2.bf16.msra.mxu0 0
    %2206 = vmatprep.subr.bf16.mxu0 0
    %2207 = vmatpush2.bf16.msra.mxu0 0
    %2208 = vmatprep.subr.bf16.mxu0 0
    %2209 = vmatpush2.bf16.msra.mxu0 0
    %2210 = vmatprep.subr.bf16.mxu0 0
    %2211 = vmatpush2.bf16.msra.mxu0 0
    %2212 = vmatprep.mubr.bf16.mxu0 0
    %2213 = vmatmul.mubr.bf16.gmra.mxu0 %v2172
    %v2214 = vpop.f32.mrf.mxu0
    %v2215 = vadd.f32 %v2169, %v2214
    %v2216 = vpop.f32.mrf.mxu0
    %v2217 = vadd.f32 %v2169, %v2216
    %v2218 = vpop.f32.mrf.mxu0
    %v2219 = vpop.f32.mrf.mxu0
    %2220 = vdwg.mxu0
    %v2221 = vadd.f32 %v1246, %v2215
    %v2222 = vadd.f32 %v1247, %v2217
    %2223 = vrot.lane.b32.xlu0 %v2221, 127
    %v2224 = vpop.permute.xlu0 %2223
    %2225 = vrot.lane.b32.xlu0 %v2222, 127
    %v2226 = vpop.permute.xlu0 %2225
    %v2227 = vsel %vm314, %v2224, %v2226
    %v2228 = vsel %vm314, %v2226, %v2224
    %v2229 = vsub.f32 %v2227, %v2221
    %v2230 = vsub.f32 %v2228, %v2222
    %vm2231 = vcmp.gt.f32.partialorder %v2229, 20.0
    %vm2232 = vcmp.gt.f32.partialorder %v2230, 20.0
    %v2233 = vmin.f32 %v2229, 20.0
    %v2234 = vmin.f32 %v2230, 20.0
    %v2235 = vmul.f32 %v2233, 1.442695
    %v2236 = vpow.pop %v2235
    %v2237 = vmul.f32 %v2234, 1.442695
    %v2238 = vpow.pop %v2237
    %v2239 = vadd.f32 %v2236, 1.0
    %v2240 = vlog2.pop %v2239
    %v2241 = vmul.f32 %v2240, 0.6931472
    %v2242 = vmul.f32 -0.5, %v2236
    %v2243 = vadd.f32 %v2242, 1.0
    %v2244 = vmul.f32 %v2243, %v2236
    %v2245 = vand.u32 2147483647, %v2236
    %vm2246 = vcmp.lt.f32.partialorder %v2245, 0.0004427343
    %v2247 = vsel %vm2246, %v2244, %v2241
    %v2248 = vadd.f32 %v2238, 1.0
    %v2249 = vlog2.pop %v2248
    %v2250 = vmul.f32 %v2249, 0.6931472
    %v2251 = vmul.f32 -0.5, %v2238
    %v2252 = vadd.f32 %v2251, 1.0
    %v2253 = vmul.f32 %v2252, %v2238
    %v2254 = vand.u32 2147483647, %v2238
    %vm2255 = vcmp.lt.f32.partialorder %v2254, 0.0004427343
    %v2256 = vsel %vm2255, %v2253, %v2250
    %v2257 = vsel %vm2231, %v2229, %v2247
    %v2258 = vsel %vm2232, %v2230, %v2256
    %v2259 = vadd.f32 %v2257, 1e-08
    %v2260 = vadd.f32 %v2258, 1e-08
    %v2261 = vrcp.pop %v2259
    %v2262 = vmul.f32 1.0, %v2261
    %v2263 = vrcp.pop %v2260
    %v2264 = vmul.f32 1.0, %v2263
    %v2265 = vmul.f32 %v2229, %v2229
    %v2266 = vmul.f32 %v2230, %v2230
    %v2267 = vmul.f32 %v2265, 0.5
    %v2268 = vmul.f32 %v2266, 0.5
    %v2271 = vrot.slane %v2262, 7
    %v2272 = vrot.slane %v2264, 7
    %v2275 = vmul.f32 %v2267, %v2271
    %v2276 = vmul.f32 %v2268, %v2272
    %v2279 = vrot.slane %v2275, 7
    %v2280 = vrot.slane %v2276, 7
    %v2283 = vsub.f32 %v2257, %v2279
    %v2284 = vsub.f32 %v2258, %v2280
    %v2285 = vmul.f32 %v2283, 0.66667
    %v2286 = vmul.f32 %v2284, 0.66667
    %v2287 = vmul.f32 %v2229, %v2271
    %v2288 = vmul.f32 %v2230, %v2272
    %v2291 = vrot.slane %v2285, 1
    %v2292 = vrot.slane %v2286, 1
    %v2297 = vrot.slane %v2287, 7
    %v2298 = vrot.slane %v2288, 7
    %v2301 = vsel %vm235, %v2257, %v2291
    %v2302 = vsel %vm235, %v2258, %v2292
    %v2303 = vsel %vm256, %v2301, %v2297
    %v2304 = vsel %vm256, %v2302, %v2298
    %2305 = vst [vmem:[%s59] sm:$0x7] %v2303
    %s2306 = scalar_lea.vmem %s59, 4
    %2307 = vst [vmem:[%s2306] sm:$0x7] %v2304
    // Predicated region
    $region122: #{forward.1} parent=1 // pred_check
      _
    $region123: #{forward.1} parent=1 // pred_check_branch
      %2309 = sbr.rel (0) target = $region125
    $region124: #{forward.1} parent=1 // pred_region
      _
    $region125: #{forward.1} parent=1 // pred_fallthru
      _
    // Predicated region
    $region126: #{forward.1} parent=1 // pred_check
      _
    $region127: #{forward.1} parent=1 // pred_check_branch
      %2311 = sbr.rel (0) target = $region129
    $region128: #{forward.1} parent=1 // pred_region
      _
    $region129: #{forward.1} parent=1 // pred_fallthru
      _
    %2312 = vsyncpa [#allocation3], 1

</llo_original>
